<compile_context>
chip_gen: v7x
topology: tpu7x:2x2x1
jax: 0.10.0
libtpu: 0.0.40
codegen_flags: <defaults>
</compile_context>

<pallas_src>
import functools

import jax
import jax.numpy as jnp
from jax import lax
from jax.experimental import pallas as pl
from jax.experimental.pallas import tpu as pltpu


# --------------------------- fused Pallas kernel ----------------------------
def _decoder_kernel(*refs, acts):
    """refs = (x_ref, [v_ref, het_ref, b_ref] * n_layers, o_ref).

    x_ref : (1, H0, C0*W0)        input batch element, layout [y, (c, x)]
    v_ref : (k, Cin*Wi, Cout*Wo)  width-spreading weight matrices (per ky)
    het_ref: (k, Ho, Hi)          0/1 height-spreading matrices (HE_ky^T)
    b_ref : (1, Cout*Wo)          bias tiled over output width
    o_ref : (1, Ho, Cout*Wo)      final image, layout [y, (c, x)]
    """
    x_ref, o_ref = refs[0], refs[-1]
    wrefs = refs[1:-1]

    a = x_ref[0].astype(jnp.float32)                       # (Hi, Cin*Wi)
    for li, act in enumerate(acts):
        v_ref = wrefs[3 * li]
        het_ref = wrefs[3 * li + 1]
        b_ref = wrefs[3 * li + 2]
        k = v_ref.shape[0]
        ho = het_ref.shape[1]
        cout_wo = v_ref.shape[2]

        acc = jnp.zeros((ho, cout_wo), jnp.float32)
        for ky in range(k):                                 # static unroll, k in {3,5}
            # width expansion + channel mixing: (Hi, Cin*Wi) @ (Cin*Wi, Cout*Wo)
            z = jnp.dot(a, v_ref[ky], preferred_element_type=jnp.float32)
            # height spreading: (Ho, Hi) @ (Hi, Cout*Wo)
            acc = acc + jnp.dot(het_ref[ky], z, preferred_element_type=jnp.float32)
        acc = acc + b_ref[...]

        if act == "relu":
            a = jnp.maximum(acc, 0.0)
        else:  # sigmoid, reciprocal on the (otherwise idle) EUP
            a = pl.reciprocal(1.0 + jnp.exp(-acc), approx=True)

    o_ref[0] = a.astype(o_ref.dtype)


def _const_index_map(ndim):
    def im(i):
        return (0,) * ndim
    return im


def _fused_decoder(x2d, mats, acts, out_h, out_cw):
    n, h0, cw0 = x2d.shape
    operands = [x2d]
    in_specs = [pl.BlockSpec((1, h0, cw0), lambda i: (i, 0, 0))]
    for (v, het, bw) in mats:
        for arr in (v, het, bw):
            operands.append(arr)
            in_specs.append(pl.BlockSpec(arr.shape, _const_index_map(arr.ndim)))

    kern = functools.partial(_decoder_kernel, acts=tuple(acts))
    return pl.pallas_call(
        kern,
        out_shape=jax.ShapeDtypeStruct((n, out_h, out_cw), jnp.float32),
        grid=(n,),
        in_specs=in_specs,
        out_specs=pl.BlockSpec((1, out_h, out_cw), lambda i: (i, 0, 0)),
        compiler_params=pltpu.CompilerParams(
            dimension_semantics=("parallel",)),   # batch -> both v7x TCs
    )(*operands)


# ----------------- wrapper: turn ConvTranspose2d into matmuls ----------------
def _build_layer_mats(w, b, s, p, op, hi, wi):
    """PyTorch ConvTranspose2d weights (Cin, Cout, kH, kW) -> matmul operands.

    y[co, yo, xo] = b[co] + sum_ky sum_yi [yo == yi*s-p+ky] *
                    sum_{ci,xi,kx} x[ci,yi,xi] * w[ci,co,ky,kx] * [xo == xi*s-p+kx]
    """
    cin, cout, k, _ = w.shape
    ho = (hi - 1) * s - 2 * p + k + op
    wo = (wi - 1) * s - 2 * p + k + op

    # V_ky[(ci,xi), (co,xo)] = w[ci, co, ky, xo - xi*s + p]  (0 outside kernel)
    xi = jnp.arange(wi)
    xo = jnp.arange(wo)
    kx = xo[None, :] - xi[:, None] * s + p                     # (wi, wo)
    valid = (kx >= 0) & (kx < k)
    kxc = jnp.clip(kx, 0, k - 1)
    wg = w[:, :, :, kxc]                                       # (cin,cout,k,wi,wo)
    wg = jnp.where(valid[None, None, None, :, :], wg, 0.0)
    v = jnp.transpose(wg, (2, 0, 3, 1, 4)).reshape(k, cin * wi, cout * wo)

    # HE_ky^T[yo, yi] = [yo == yi*s - p + ky]
    yi = jnp.arange(hi)
    yo = jnp.arange(ho)
    ky = jnp.arange(k)
    het = (yo[None, :, None] ==
           yi[None, None, :] * s - p + ky[:, None, None]).astype(jnp.float32)

    b_wide = jnp.broadcast_to(b[:, None], (cout, wo)).reshape(1, cout * wo)
    return (v.astype(jnp.float32), het, b_wide.astype(jnp.float32)), ho, wo, cout


class ViewDecoderPallas:
    """Mirror of openpoints ViewDecoder: 4 ConvTranspose2d upsampling layers."""

    def __init__(self, in_channels, out_channels, key):
        specs = [
            (in_channels,       in_channels // 2, 5, 4, 1, 1, "relu"),
            (in_channels // 2,  in_channels // 4, 3, 2, 1, 1, "relu"),
            (in_channels // 4,  in_channels // 8, 3, 2, 1, 1, "relu"),
            (in_channels // 8,  out_channels,     3, 2, 1, 1, "sigmoid"),
        ]
        self.layers = []
        for (ci, co, k, s, p, op, act) in specs:
            key, kw, kb = jax.random.split(key, 3)
            fan = ci * k * k
            w = jax.random.normal(kw, (ci, co, k, k), jnp.float32) / jnp.sqrt(fan)
            b = 0.01 * jax.random.normal(kb, (co,), jnp.float32)
            self.layers.append((w, b, s, p, op, act))
        self._mat_cache = {}                       # keyed by input (H, W)

    def _mats_for(self, h, w):
        key = (h, w)
        if key not in self._mat_cache:
            mats, acts = [], []
            hi, wi, cout = h, w, None
            for (wt, b, s, p, op, act) in self.layers:
                m, hi, wi, cout = _build_layer_mats(wt, b, s, p, op, hi, wi)
                mats.append(m)
                acts.append(act)
            self._mat_cache[key] = (mats, acts, hi, wi, cout)
        return self._mat_cache[key]

    def __call__(self, feats_img):                 # NCHW in, NCHW out
        n, c, h, w = feats_img.shape
        mats, acts, ho, wo, cout = self._mats_for(h, w)
        # NCHW -> (N, H, C*W): layout [y, (c, x)], kept for the whole decoder.
        x2d = jnp.transpose(feats_img, (0, 2, 1, 3)).reshape(n, h, c * w)
        out2d = _fused_decoder(x2d, mats, acts, ho, cout * wo)
        out = out2d.reshape(n, ho, cout, wo).transpose(0, 2, 1, 3)
        return out


# ------------------------- pure-JAX reference ------------------------------
def _convt_ref(x, w, b, stride, padding, output_padding):
    k = w.shape[-1]
    wf = jnp.transpose(w[:, :, ::-1, ::-1], (1, 0, 2, 3))      # OIHW
    pad_lo, pad_hi = k - 1 - padding, k - 1 - padding + output_padding
    y = lax.conv_general_dilated(
        x, wf, window_strides=(1, 1),
        padding=[(pad_lo, pad_hi), (pad_lo, pad_hi)],
        lhs_dilation=(stride, stride),
        dimension_numbers=("NCHW", "OIHW", "NCHW"))
    return y + b[None, :, None, None]


def view_decoder_ref(layers, x):
    for (w, b, s, p, op, act) in layers:
        x = _convt_ref(x, w, b, s, p, op)
        x = jnp.maximum(x, 0.0) if act == "relu" else jax.nn.sigmoid(x)
    return x


if __name__ == "__main__":
    in_channels, out_channels = 32, 3
    batch, h, w = 2, 2, 2                      # 2x2 feature map -> 64x64 image

    key = jax.random.PRNGKey(0)
    key, kx = jax.random.split(key)
    feats_img = jax.random.normal(kx, (batch, in_channels, h, w), jnp.float32)

    model = ViewDecoderPallas(in_channels, out_channels, key)

    img = jax.block_until_ready(model(feats_img))
    assert img.shape == (batch, out_channels, 64, 64), img.shape

    ref = jax.block_until_ready(view_decoder_ref(model.layers, feats_img))
    max_err = float(jnp.max(jnp.abs(img - ref)))
    # 5e-3 tolerance: sigmoid uses the EUP approximate reciprocal.
    assert max_err < 5e-3, f"mismatch vs reference: {max_err}"

    print("KERNEL_OK")
</pallas_src>

<mosaic_0001>
module attributes {stable_mosaic.version = 11 : i64} {
  func.func @_decoder_kernel(%arg0: i32, %arg1: memref<1x2x64xf32, #tpu.memory_space<vmem>>, %arg2: memref<5x64x128xf32, #tpu.memory_space<vmem>>, %arg3: memref<5x8x2xf32, #tpu.memory_space<vmem>>, %arg4: memref<1x128xf32, #tpu.memory_space<vmem>>, %arg5: memref<3x128x128xf32, #tpu.memory_space<vmem>>, %arg6: memref<3x16x8xf32, #tpu.memory_space<vmem>>, %arg7: memref<1x128xf32, #tpu.memory_space<vmem>>, %arg8: memref<3x128x128xf32, #tpu.memory_space<vmem>>, %arg9: memref<3x32x16xf32, #tpu.memory_space<vmem>>, %arg10: memref<1x128xf32, #tpu.memory_space<vmem>>, %arg11: memref<3x128x192xf32, #tpu.memory_space<vmem>>, %arg12: memref<3x64x32xf32, #tpu.memory_space<vmem>>, %arg13: memref<1x192xf32, #tpu.memory_space<vmem>>, %arg14: memref<1x64x192xf32, #tpu.memory_space<vmem>>) attributes {dimension_semantics = [#tpu.dimension_semantics<parallel>], iteration_bounds = array<i64: 2>, scalar_prefetch = 0 : i64, scratch_operands = 0 : i64, tpu.core_type = #tpu.core_type<tc>, window_params = [{transform_indices = @transform_0, window_bounds = array<i64: 1, 2, 64>}, {pipeline_mode = #tpu.pipeline_mode<synchronous>, transform_indices = @transform_1, window_bounds = array<i64: 5, 64, 128>}, {pipeline_mode = #tpu.pipeline_mode<synchronous>, transform_indices = @transform_2, window_bounds = array<i64: 5, 8, 2>}, {pipeline_mode = #tpu.pipeline_mode<synchronous>, transform_indices = @transform_3, window_bounds = array<i64: 1, 128>}, {pipeline_mode = #tpu.pipeline_mode<synchronous>, transform_indices = @transform_4, window_bounds = array<i64: 3, 128, 128>}, {pipeline_mode = #tpu.pipeline_mode<synchronous>, transform_indices = @transform_5, window_bounds = array<i64: 3, 16, 8>}, {pipeline_mode = #tpu.pipeline_mode<synchronous>, transform_indices = @transform_6, window_bounds = array<i64: 1, 128>}, {pipeline_mode = #tpu.pipeline_mode<synchronous>, transform_indices = @transform_7, window_bounds = array<i64: 3, 128, 128>}, {pipeline_mode = #tpu.pipeline_mode<synchronous>, transform_indices = @transform_8, window_bounds = array<i64: 3, 32, 16>}, {pipeline_mode = #tpu.pipeline_mode<synchronous>, transform_indices = @transform_9, window_bounds = array<i64: 1, 128>}, {pipeline_mode = #tpu.pipeline_mode<synchronous>, transform_indices = @transform_10, window_bounds = array<i64: 3, 128, 192>}, {pipeline_mode = #tpu.pipeline_mode<synchronous>, transform_indices = @transform_11, window_bounds = array<i64: 3, 64, 32>}, {pipeline_mode = #tpu.pipeline_mode<synchronous>, transform_indices = @transform_12, window_bounds = array<i64: 1, 192>}, {transform_indices = @transform_13, window_bounds = array<i64: 1, 64, 192>}]} {
    %c0 = arith.constant 0 : index
    %c0_0 = arith.constant 0 : index
    %c0_1 = arith.constant 0 : index
    %0 = vector.load %arg1[%c0, %c0_0, %c0_1] : memref<1x2x64xf32, #tpu.memory_space<vmem>>, vector<1x2x64xf32>
    %1 = vector.shape_cast %0 : vector<1x2x64xf32> to vector<2x64xf32>
    %cst = arith.constant 0.000000e+00 : f32
    %2 = vector.broadcast %cst : f32 to vector<8x128xf32>
    %c0_2 = arith.constant 0 : index
    %c0_3 = arith.constant 0 : index
    %c0_4 = arith.constant 0 : index
    %3 = vector.load %arg2[%c0_2, %c0_3, %c0_4] : memref<5x64x128xf32, #tpu.memory_space<vmem>>, vector<1x64x128xf32>
    %4 = vector.shape_cast %3 : vector<1x64x128xf32> to vector<64x128xf32>
    %cst_5 = arith.constant dense<0.000000e+00> : vector<2x128xf32>
    %5 = tpu.matmul %1, %4, %cst_5 {dimension_numbers = #tpu.dot_dimension_numbers<[1], [0], [0], [1], [0, 0, 1, 1], [], []>} : vector<2x64xf32>, vector<64x128xf32>, vector<2x128xf32> -> vector<2x128xf32>
    %c0_6 = arith.constant 0 : index
    %c0_7 = arith.constant 0 : index
    %c0_8 = arith.constant 0 : index
    %6 = vector.load %arg3[%c0_6, %c0_7, %c0_8] : memref<5x8x2xf32, #tpu.memory_space<vmem>>, vector<1x8x2xf32>
    %7 = vector.shape_cast %6 : vector<1x8x2xf32> to vector<8x2xf32>
    %cst_9 = arith.constant dense<0.000000e+00> : vector<8x128xf32>
    %8 = tpu.matmul %7, %5, %cst_9 {dimension_numbers = #tpu.dot_dimension_numbers<[1], [0], [0], [1], [0, 0, 1, 1], [], []>} : vector<8x2xf32>, vector<2x128xf32>, vector<8x128xf32> -> vector<8x128xf32>
    %9 = arith.addf %2, %8 : vector<8x128xf32>
    %c1 = arith.constant 1 : index
    %c0_10 = arith.constant 0 : index
    %c0_11 = arith.constant 0 : index
    %10 = vector.load %arg2[%c1, %c0_10, %c0_11] : memref<5x64x128xf32, #tpu.memory_space<vmem>>, vector<1x64x128xf32>
    %11 = vector.shape_cast %10 : vector<1x64x128xf32> to vector<64x128xf32>
    %cst_12 = arith.constant dense<0.000000e+00> : vector<2x128xf32>
    %12 = tpu.matmul %1, %11, %cst_12 {dimension_numbers = #tpu.dot_dimension_numbers<[1], [0], [0], [1], [0, 0, 1, 1], [], []>} : vector<2x64xf32>, vector<64x128xf32>, vector<2x128xf32> -> vector<2x128xf32>
    %c1_13 = arith.constant 1 : index
    %c0_14 = arith.constant 0 : index
    %c0_15 = arith.constant 0 : index
    %13 = vector.load %arg3[%c1_13, %c0_14, %c0_15] : memref<5x8x2xf32, #tpu.memory_space<vmem>>, vector<1x8x2xf32>
    %14 = vector.shape_cast %13 : vector<1x8x2xf32> to vector<8x2xf32>
    %cst_16 = arith.constant dense<0.000000e+00> : vector<8x128xf32>
    %15 = tpu.matmul %14, %12, %cst_16 {dimension_numbers = #tpu.dot_dimension_numbers<[1], [0], [0], [1], [0, 0, 1, 1], [], []>} : vector<8x2xf32>, vector<2x128xf32>, vector<8x128xf32> -> vector<8x128xf32>
    %16 = arith.addf %9, %15 : vector<8x128xf32>
    %c2 = arith.constant 2 : index
    %c0_17 = arith.constant 0 : index
    %c0_18 = arith.constant 0 : index
    %17 = vector.load %arg2[%c2, %c0_17, %c0_18] : memref<5x64x128xf32, #tpu.memory_space<vmem>>, vector<1x64x128xf32>
    %18 = vector.shape_cast %17 : vector<1x64x128xf32> to vector<64x128xf32>
    %cst_19 = arith.constant dense<0.000000e+00> : vector<2x128xf32>
    %19 = tpu.matmul %1, %18, %cst_19 {dimension_numbers = #tpu.dot_dimension_numbers<[1], [0], [0], [1], [0, 0, 1, 1], [], []>} : vector<2x64xf32>, vector<64x128xf32>, vector<2x128xf32> -> vector<2x128xf32>
    %c2_20 = arith.constant 2 : index
    %c0_21 = arith.constant 0 : index
    %c0_22 = arith.constant 0 : index
    %20 = vector.load %arg3[%c2_20, %c0_21, %c0_22] : memref<5x8x2xf32, #tpu.memory_space<vmem>>, vector<1x8x2xf32>
    %21 = vector.shape_cast %20 : vector<1x8x2xf32> to vector<8x2xf32>
    %cst_23 = arith.constant dense<0.000000e+00> : vector<8x128xf32>
    %22 = tpu.matmul %21, %19, %cst_23 {dimension_numbers = #tpu.dot_dimension_numbers<[1], [0], [0], [1], [0, 0, 1, 1], [], []>} : vector<8x2xf32>, vector<2x128xf32>, vector<8x128xf32> -> vector<8x128xf32>
    %23 = arith.addf %16, %22 : vector<8x128xf32>
    %c3 = arith.constant 3 : index
    %c0_24 = arith.constant 0 : index
    %c0_25 = arith.constant 0 : index
    %24 = vector.load %arg2[%c3, %c0_24, %c0_25] : memref<5x64x128xf32, #tpu.memory_space<vmem>>, vector<1x64x128xf32>
    %25 = vector.shape_cast %24 : vector<1x64x128xf32> to vector<64x128xf32>
    %cst_26 = arith.constant dense<0.000000e+00> : vector<2x128xf32>
    %26 = tpu.matmul %1, %25, %cst_26 {dimension_numbers = #tpu.dot_dimension_numbers<[1], [0], [0], [1], [0, 0, 1, 1], [], []>} : vector<2x64xf32>, vector<64x128xf32>, vector<2x128xf32> -> vector<2x128xf32>
    %c3_27 = arith.constant 3 : index
    %c0_28 = arith.constant 0 : index
    %c0_29 = arith.constant 0 : index
    %27 = vector.load %arg3[%c3_27, %c0_28, %c0_29] : memref<5x8x2xf32, #tpu.memory_space<vmem>>, vector<1x8x2xf32>
    %28 = vector.shape_cast %27 : vector<1x8x2xf32> to vector<8x2xf32>
    %cst_30 = arith.constant dense<0.000000e+00> : vector<8x128xf32>
    %29 = tpu.matmul %28, %26, %cst_30 {dimension_numbers = #tpu.dot_dimension_numbers<[1], [0], [0], [1], [0, 0, 1, 1], [], []>} : vector<8x2xf32>, vector<2x128xf32>, vector<8x128xf32> -> vector<8x128xf32>
    %30 = arith.addf %23, %29 : vector<8x128xf32>
    %c4 = arith.constant 4 : index
    %c0_31 = arith.constant 0 : index
    %c0_32 = arith.constant 0 : index
    %31 = vector.load %arg2[%c4, %c0_31, %c0_32] : memref<5x64x128xf32, #tpu.memory_space<vmem>>, vector<1x64x128xf32>
    %32 = vector.shape_cast %31 : vector<1x64x128xf32> to vector<64x128xf32>
    %cst_33 = arith.constant dense<0.000000e+00> : vector<2x128xf32>
    %33 = tpu.matmul %1, %32, %cst_33 {dimension_numbers = #tpu.dot_dimension_numbers<[1], [0], [0], [1], [0, 0, 1, 1], [], []>} : vector<2x64xf32>, vector<64x128xf32>, vector<2x128xf32> -> vector<2x128xf32>
    %c4_34 = arith.constant 4 : index
    %c0_35 = arith.constant 0 : index
    %c0_36 = arith.constant 0 : index
    %34 = vector.load %arg3[%c4_34, %c0_35, %c0_36] : memref<5x8x2xf32, #tpu.memory_space<vmem>>, vector<1x8x2xf32>
    %35 = vector.shape_cast %34 : vector<1x8x2xf32> to vector<8x2xf32>
    %cst_37 = arith.constant dense<0.000000e+00> : vector<8x128xf32>
    %36 = tpu.matmul %35, %33, %cst_37 {dimension_numbers = #tpu.dot_dimension_numbers<[1], [0], [0], [1], [0, 0, 1, 1], [], []>} : vector<8x2xf32>, vector<2x128xf32>, vector<8x128xf32> -> vector<8x128xf32>
    %37 = arith.addf %30, %36 : vector<8x128xf32>
    %c0_38 = arith.constant 0 : index
    %c0_39 = arith.constant 0 : index
    %38 = vector.load %arg4[%c0_38, %c0_39] : memref<1x128xf32, #tpu.memory_space<vmem>>, vector<1x128xf32>
    %39 = vector.broadcast %38 : vector<1x128xf32> to vector<8x128xf32>
    %40 = arith.addf %37, %39 : vector<8x128xf32>
    %cst_40 = arith.constant 0.000000e+00 : f32
    %41 = vector.broadcast %cst_40 : f32 to vector<8x128xf32>
    %42 = arith.maximumf %40, %41 : vector<8x128xf32>
    %cst_41 = arith.constant 0.000000e+00 : f32
    %43 = vector.broadcast %cst_41 : f32 to vector<16x128xf32>
    %c0_42 = arith.constant 0 : index
    %c0_43 = arith.constant 0 : index
    %c0_44 = arith.constant 0 : index
    %44 = vector.load %arg5[%c0_42, %c0_43, %c0_44] : memref<3x128x128xf32, #tpu.memory_space<vmem>>, vector<1x128x128xf32>
    %45 = vector.shape_cast %44 : vector<1x128x128xf32> to vector<128x128xf32>
    %cst_45 = arith.constant dense<0.000000e+00> : vector<8x128xf32>
    %46 = tpu.matmul %42, %45, %cst_45 {dimension_numbers = #tpu.dot_dimension_numbers<[1], [0], [0], [1], [0, 0, 1, 1], [], []>} : vector<8x128xf32>, vector<128x128xf32>, vector<8x128xf32> -> vector<8x128xf32>
    %c0_46 = arith.constant 0 : index
    %c0_47 = arith.constant 0 : index
    %c0_48 = arith.constant 0 : index
    %47 = vector.load %arg6[%c0_46, %c0_47, %c0_48] : memref<3x16x8xf32, #tpu.memory_space<vmem>>, vector<1x16x8xf32>
    %48 = vector.shape_cast %47 : vector<1x16x8xf32> to vector<16x8xf32>
    %cst_49 = arith.constant dense<0.000000e+00> : vector<16x128xf32>
    %49 = tpu.matmul %48, %46, %cst_49 {dimension_numbers = #tpu.dot_dimension_numbers<[1], [0], [0], [1], [0, 0, 1, 1], [], []>} : vector<16x8xf32>, vector<8x128xf32>, vector<16x128xf32> -> vector<16x128xf32>
    %50 = arith.addf %43, %49 : vector<16x128xf32>
    %c1_50 = arith.constant 1 : index
    %c0_51 = arith.constant 0 : index
    %c0_52 = arith.constant 0 : index
    %51 = vector.load %arg5[%c1_50, %c0_51, %c0_52] : memref<3x128x128xf32, #tpu.memory_space<vmem>>, vector<1x128x128xf32>
    %52 = vector.shape_cast %51 : vector<1x128x128xf32> to vector<128x128xf32>
    %cst_53 = arith.constant dense<0.000000e+00> : vector<8x128xf32>
    %53 = tpu.matmul %42, %52, %cst_53 {dimension_numbers = #tpu.dot_dimension_numbers<[1], [0], [0], [1], [0, 0, 1, 1], [], []>} : vector<8x128xf32>, vector<128x128xf32>, vector<8x128xf32> -> vector<8x128xf32>
    %c1_54 = arith.constant 1 : index
    %c0_55 = arith.constant 0 : index
    %c0_56 = arith.constant 0 : index
    %54 = vector.load %arg6[%c1_54, %c0_55, %c0_56] : memref<3x16x8xf32, #tpu.memory_space<vmem>>, vector<1x16x8xf32>
    %55 = vector.shape_cast %54 : vector<1x16x8xf32> to vector<16x8xf32>
    %cst_57 = arith.constant dense<0.000000e+00> : vector<16x128xf32>
    %56 = tpu.matmul %55, %53, %cst_57 {dimension_numbers = #tpu.dot_dimension_numbers<[1], [0], [0], [1], [0, 0, 1, 1], [], []>} : vector<16x8xf32>, vector<8x128xf32>, vector<16x128xf32> -> vector<16x128xf32>
    %57 = arith.addf %50, %56 : vector<16x128xf32>
    %c2_58 = arith.constant 2 : index
    %c0_59 = arith.constant 0 : index
    %c0_60 = arith.constant 0 : index
    %58 = vector.load %arg5[%c2_58, %c0_59, %c0_60] : memref<3x128x128xf32, #tpu.memory_space<vmem>>, vector<1x128x128xf32>
    %59 = vector.shape_cast %58 : vector<1x128x128xf32> to vector<128x128xf32>
    %cst_61 = arith.constant dense<0.000000e+00> : vector<8x128xf32>
    %60 = tpu.matmul %42, %59, %cst_61 {dimension_numbers = #tpu.dot_dimension_numbers<[1], [0], [0], [1], [0, 0, 1, 1], [], []>} : vector<8x128xf32>, vector<128x128xf32>, vector<8x128xf32> -> vector<8x128xf32>
    %c2_62 = arith.constant 2 : index
    %c0_63 = arith.constant 0 : index
    %c0_64 = arith.constant 0 : index
    %61 = vector.load %arg6[%c2_62, %c0_63, %c0_64] : memref<3x16x8xf32, #tpu.memory_space<vmem>>, vector<1x16x8xf32>
    %62 = vector.shape_cast %61 : vector<1x16x8xf32> to vector<16x8xf32>
    %cst_65 = arith.constant dense<0.000000e+00> : vector<16x128xf32>
    %63 = tpu.matmul %62, %60, %cst_65 {dimension_numbers = #tpu.dot_dimension_numbers<[1], [0], [0], [1], [0, 0, 1, 1], [], []>} : vector<16x8xf32>, vector<8x128xf32>, vector<16x128xf32> -> vector<16x128xf32>
    %64 = arith.addf %57, %63 : vector<16x128xf32>
    %c0_66 = arith.constant 0 : index
    %c0_67 = arith.constant 0 : index
    %65 = vector.load %arg7[%c0_66, %c0_67] : memref<1x128xf32, #tpu.memory_space<vmem>>, vector<1x128xf32>
    %66 = vector.broadcast %65 : vector<1x128xf32> to vector<16x128xf32>
    %67 = arith.addf %64, %66 : vector<16x128xf32>
    %cst_68 = arith.constant 0.000000e+00 : f32
    %68 = vector.broadcast %cst_68 : f32 to vector<16x128xf32>
    %69 = arith.maximumf %67, %68 : vector<16x128xf32>
    %cst_69 = arith.constant 0.000000e+00 : f32
    %70 = vector.broadcast %cst_69 : f32 to vector<32x128xf32>
    %c0_70 = arith.constant 0 : index
    %c0_71 = arith.constant 0 : index
    %c0_72 = arith.constant 0 : index
    %71 = vector.load %arg8[%c0_70, %c0_71, %c0_72] : memref<3x128x128xf32, #tpu.memory_space<vmem>>, vector<1x128x128xf32>
    %72 = vector.shape_cast %71 : vector<1x128x128xf32> to vector<128x128xf32>
    %cst_73 = arith.constant dense<0.000000e+00> : vector<16x128xf32>
    %73 = tpu.matmul %69, %72, %cst_73 {dimension_numbers = #tpu.dot_dimension_numbers<[1], [0], [0], [1], [0, 0, 1, 1], [], []>} : vector<16x128xf32>, vector<128x128xf32>, vector<16x128xf32> -> vector<16x128xf32>
    %c0_74 = arith.constant 0 : index
    %c0_75 = arith.constant 0 : index
    %c0_76 = arith.constant 0 : index
    %74 = vector.load %arg9[%c0_74, %c0_75, %c0_76] : memref<3x32x16xf32, #tpu.memory_space<vmem>>, vector<1x32x16xf32>
    %75 = vector.shape_cast %74 : vector<1x32x16xf32> to vector<32x16xf32>
    %cst_77 = arith.constant dense<0.000000e+00> : vector<32x128xf32>
    %76 = tpu.matmul %75, %73, %cst_77 {dimension_numbers = #tpu.dot_dimension_numbers<[1], [0], [0], [1], [0, 0, 1, 1], [], []>} : vector<32x16xf32>, vector<16x128xf32>, vector<32x128xf32> -> vector<32x128xf32>
    %77 = arith.addf %70, %76 : vector<32x128xf32>
    %c1_78 = arith.constant 1 : index
    %c0_79 = arith.constant 0 : index
    %c0_80 = arith.constant 0 : index
    %78 = vector.load %arg8[%c1_78, %c0_79, %c0_80] : memref<3x128x128xf32, #tpu.memory_space<vmem>>, vector<1x128x128xf32>
    %79 = vector.shape_cast %78 : vector<1x128x128xf32> to vector<128x128xf32>
    %cst_81 = arith.constant dense<0.000000e+00> : vector<16x128xf32>
    %80 = tpu.matmul %69, %79, %cst_81 {dimension_numbers = #tpu.dot_dimension_numbers<[1], [0], [0], [1], [0, 0, 1, 1], [], []>} : vector<16x128xf32>, vector<128x128xf32>, vector<16x128xf32> -> vector<16x128xf32>
    %c1_82 = arith.constant 1 : index
    %c0_83 = arith.constant 0 : index
    %c0_84 = arith.constant 0 : index
    %81 = vector.load %arg9[%c1_82, %c0_83, %c0_84] : memref<3x32x16xf32, #tpu.memory_space<vmem>>, vector<1x32x16xf32>
    %82 = vector.shape_cast %81 : vector<1x32x16xf32> to vector<32x16xf32>
    %cst_85 = arith.constant dense<0.000000e+00> : vector<32x128xf32>
    %83 = tpu.matmul %82, %80, %cst_85 {dimension_numbers = #tpu.dot_dimension_numbers<[1], [0], [0], [1], [0, 0, 1, 1], [], []>} : vector<32x16xf32>, vector<16x128xf32>, vector<32x128xf32> -> vector<32x128xf32>
    %84 = arith.addf %77, %83 : vector<32x128xf32>
    %c2_86 = arith.constant 2 : index
    %c0_87 = arith.constant 0 : index
    %c0_88 = arith.constant 0 : index
    %85 = vector.load %arg8[%c2_86, %c0_87, %c0_88] : memref<3x128x128xf32, #tpu.memory_space<vmem>>, vector<1x128x128xf32>
    %86 = vector.shape_cast %85 : vector<1x128x128xf32> to vector<128x128xf32>
    %cst_89 = arith.constant dense<0.000000e+00> : vector<16x128xf32>
    %87 = tpu.matmul %69, %86, %cst_89 {dimension_numbers = #tpu.dot_dimension_numbers<[1], [0], [0], [1], [0, 0, 1, 1], [], []>} : vector<16x128xf32>, vector<128x128xf32>, vector<16x128xf32> -> vector<16x128xf32>
    %c2_90 = arith.constant 2 : index
    %c0_91 = arith.constant 0 : index
    %c0_92 = arith.constant 0 : index
    %88 = vector.load %arg9[%c2_90, %c0_91, %c0_92] : memref<3x32x16xf32, #tpu.memory_space<vmem>>, vector<1x32x16xf32>
    %89 = vector.shape_cast %88 : vector<1x32x16xf32> to vector<32x16xf32>
    %cst_93 = arith.constant dense<0.000000e+00> : vector<32x128xf32>
    %90 = tpu.matmul %89, %87, %cst_93 {dimension_numbers = #tpu.dot_dimension_numbers<[1], [0], [0], [1], [0, 0, 1, 1], [], []>} : vector<32x16xf32>, vector<16x128xf32>, vector<32x128xf32> -> vector<32x128xf32>
    %91 = arith.addf %84, %90 : vector<32x128xf32>
    %c0_94 = arith.constant 0 : index
    %c0_95 = arith.constant 0 : index
    %92 = vector.load %arg10[%c0_94, %c0_95] : memref<1x128xf32, #tpu.memory_space<vmem>>, vector<1x128xf32>
    %93 = vector.broadcast %92 : vector<1x128xf32> to vector<32x128xf32>
    %94 = arith.addf %91, %93 : vector<32x128xf32>
    %cst_96 = arith.constant 0.000000e+00 : f32
    %95 = vector.broadcast %cst_96 : f32 to vector<32x128xf32>
    %96 = arith.maximumf %94, %95 : vector<32x128xf32>
    %cst_97 = arith.constant 0.000000e+00 : f32
    %97 = vector.broadcast %cst_97 : f32 to vector<64x192xf32>
    %c0_98 = arith.constant 0 : index
    %c0_99 = arith.constant 0 : index
    %c0_100 = arith.constant 0 : index
    %98 = vector.load %arg11[%c0_98, %c0_99, %c0_100] : memref<3x128x192xf32, #tpu.memory_space<vmem>>, vector<1x128x192xf32>
    %99 = vector.shape_cast %98 : vector<1x128x192xf32> to vector<128x192xf32>
    %cst_101 = arith.constant dense<0.000000e+00> : vector<32x192xf32>
    %100 = tpu.matmul %96, %99, %cst_101 {dimension_numbers = #tpu.dot_dimension_numbers<[1], [0], [0], [1], [0, 0, 1, 1], [], []>} : vector<32x128xf32>, vector<128x192xf32>, vector<32x192xf32> -> vector<32x192xf32>
    %c0_102 = arith.constant 0 : index
    %c0_103 = arith.constant 0 : index
    %c0_104 = arith.constant 0 : index
    %101 = vector.load %arg12[%c0_102, %c0_103, %c0_104] : memref<3x64x32xf32, #tpu.memory_space<vmem>>, vector<1x64x32xf32>
    %102 = vector.shape_cast %101 : vector<1x64x32xf32> to vector<64x32xf32>
    %cst_105 = arith.constant dense<0.000000e+00> : vector<64x192xf32>
    %103 = tpu.matmul %102, %100, %cst_105 {dimension_numbers = #tpu.dot_dimension_numbers<[1], [0], [0], [1], [0, 0, 1, 1], [], []>} : vector<64x32xf32>, vector<32x192xf32>, vector<64x192xf32> -> vector<64x192xf32>
    %104 = arith.addf %97, %103 : vector<64x192xf32>
    %c1_106 = arith.constant 1 : index
    %c0_107 = arith.constant 0 : index
    %c0_108 = arith.constant 0 : index
    %105 = vector.load %arg11[%c1_106, %c0_107, %c0_108] : memref<3x128x192xf32, #tpu.memory_space<vmem>>, vector<1x128x192xf32>
    %106 = vector.shape_cast %105 : vector<1x128x192xf32> to vector<128x192xf32>
    %cst_109 = arith.constant dense<0.000000e+00> : vector<32x192xf32>
    %107 = tpu.matmul %96, %106, %cst_109 {dimension_numbers = #tpu.dot_dimension_numbers<[1], [0], [0], [1], [0, 0, 1, 1], [], []>} : vector<32x128xf32>, vector<128x192xf32>, vector<32x192xf32> -> vector<32x192xf32>
    %c1_110 = arith.constant 1 : index
    %c0_111 = arith.constant 0 : index
    %c0_112 = arith.constant 0 : index
    %108 = vector.load %arg12[%c1_110, %c0_111, %c0_112] : memref<3x64x32xf32, #tpu.memory_space<vmem>>, vector<1x64x32xf32>
    %109 = vector.shape_cast %108 : vector<1x64x32xf32> to vector<64x32xf32>
    %cst_113 = arith.constant dense<0.000000e+00> : vector<64x192xf32>
    %110 = tpu.matmul %109, %107, %cst_113 {dimension_numbers = #tpu.dot_dimension_numbers<[1], [0], [0], [1], [0, 0, 1, 1], [], []>} : vector<64x32xf32>, vector<32x192xf32>, vector<64x192xf32> -> vector<64x192xf32>
    %111 = arith.addf %104, %110 : vector<64x192xf32>
    %c2_114 = arith.constant 2 : index
    %c0_115 = arith.constant 0 : index
    %c0_116 = arith.constant 0 : index
    %112 = vector.load %arg11[%c2_114, %c0_115, %c0_116] : memref<3x128x192xf32, #tpu.memory_space<vmem>>, vector<1x128x192xf32>
    %113 = vector.shape_cast %112 : vector<1x128x192xf32> to vector<128x192xf32>
    %cst_117 = arith.constant dense<0.000000e+00> : vector<32x192xf32>
    %114 = tpu.matmul %96, %113, %cst_117 {dimension_numbers = #tpu.dot_dimension_numbers<[1], [0], [0], [1], [0, 0, 1, 1], [], []>} : vector<32x128xf32>, vector<128x192xf32>, vector<32x192xf32> -> vector<32x192xf32>
    %c2_118 = arith.constant 2 : index
    %c0_119 = arith.constant 0 : index
    %c0_120 = arith.constant 0 : index
    %115 = vector.load %arg12[%c2_118, %c0_119, %c0_120] : memref<3x64x32xf32, #tpu.memory_space<vmem>>, vector<1x64x32xf32>
    %116 = vector.shape_cast %115 : vector<1x64x32xf32> to vector<64x32xf32>
    %cst_121 = arith.constant dense<0.000000e+00> : vector<64x192xf32>
    %117 = tpu.matmul %116, %114, %cst_121 {dimension_numbers = #tpu.dot_dimension_numbers<[1], [0], [0], [1], [0, 0, 1, 1], [], []>} : vector<64x32xf32>, vector<32x192xf32>, vector<64x192xf32> -> vector<64x192xf32>
    %118 = arith.addf %111, %117 : vector<64x192xf32>
    %c0_122 = arith.constant 0 : index
    %c0_123 = arith.constant 0 : index
    %119 = vector.load %arg13[%c0_122, %c0_123] : memref<1x192xf32, #tpu.memory_space<vmem>>, vector<1x192xf32>
    %120 = vector.broadcast %119 : vector<1x192xf32> to vector<64x192xf32>
    %121 = arith.addf %118, %120 : vector<64x192xf32>
    %cst_124 = arith.constant 0.000000e+00 : f32
    %122 = vector.broadcast %cst_124 : f32 to vector<64x192xf32>
    %123 = arith.subf %122, %121 : vector<64x192xf32>
    %124 = math.exp %123 : vector<64x192xf32>
    %cst_125 = arith.constant 1.000000e+00 : f32
    %125 = vector.broadcast %cst_125 : f32 to vector<64x192xf32>
    %126 = arith.addf %125, %124 : vector<64x192xf32>
    %127 = tpu.reciprocal %126 {approx = true} : vector<64x192xf32> -> vector<64x192xf32>
    %c0_126 = arith.constant 0 : index
    %c0_127 = arith.constant 0 : index
    %c0_128 = arith.constant 0 : index
    %128 = vector.load %arg14[%c0_126, %c0_127, %c0_128] : memref<1x64x192xf32, #tpu.memory_space<vmem>>, vector<1x64x192xf32>
    %129 = vector.shape_cast %128 : vector<1x64x192xf32> to vector<64x192xf32>
    %130 = vector.shape_cast %127 : vector<64x192xf32> to vector<1x64x192xf32>
    tpu.vector_store %arg14[%c0_126, %c0_127, %c0_128], %130 {strides = array<i32>} : memref<1x64x192xf32, #tpu.memory_space<vmem>>, vector<1x64x192xf32>,
    return
  }
  func.func @transform_0(%arg0: i32) -> (i32, i32, i32) {
    %c0_i32 = arith.constant 0 : i32
    %c0_i32_0 = arith.constant 0 : i32
    %c0_i32_1 = arith.constant 0 : i32
    return %arg0, %c0_i32, %c0_i32_0 : i32, i32, i32
  }
  func.func @transform_1(%arg0: i32) -> (i32, i32, i32) {
    %c0_i32 = arith.constant 0 : i32
    %c0_i32_0 = arith.constant 0 : i32
    %c0_i32_1 = arith.constant 0 : i32
    %c0_i32_2 = arith.constant 0 : i32
    return %c0_i32, %c0_i32_0, %c0_i32_1 : i32, i32, i32
  }
  func.func @transform_2(%arg0: i32) -> (i32, i32, i32) {
    %c0_i32 = arith.constant 0 : i32
    %c0_i32_0 = arith.constant 0 : i32
    %c0_i32_1 = arith.constant 0 : i32
    %c0_i32_2 = arith.constant 0 : i32
    return %c0_i32, %c0_i32_0, %c0_i32_1 : i32, i32, i32
  }
  func.func @transform_3(%arg0: i32) -> (i32, i32) {
    %c0_i32 = arith.constant 0 : i32
    %c0_i32_0 = arith.constant 0 : i32
    %c0_i32_1 = arith.constant 0 : i32
    return %c0_i32, %c0_i32_0 : i32, i32
  }
  func.func @transform_4(%arg0: i32) -> (i32, i32, i32) {
    %c0_i32 = arith.constant 0 : i32
    %c0_i32_0 = arith.constant 0 : i32
    %c0_i32_1 = arith.constant 0 : i32
    %c0_i32_2 = arith.constant 0 : i32
    return %c0_i32, %c0_i32_0, %c0_i32_1 : i32, i32, i32
  }
  func.func @transform_5(%arg0: i32) -> (i32, i32, i32) {
    %c0_i32 = arith.constant 0 : i32
    %c0_i32_0 = arith.constant 0 : i32
    %c0_i32_1 = arith.constant 0 : i32
    %c0_i32_2 = arith.constant 0 : i32
    return %c0_i32, %c0_i32_0, %c0_i32_1 : i32, i32, i32
  }
  func.func @transform_6(%arg0: i32) -> (i32, i32) {
    %c0_i32 = arith.constant 0 : i32
    %c0_i32_0 = arith.constant 0 : i32
    %c0_i32_1 = arith.constant 0 : i32
    return %c0_i32, %c0_i32_0 : i32, i32
  }
  func.func @transform_7(%arg0: i32) -> (i32, i32, i32) {
    %c0_i32 = arith.constant 0 : i32
    %c0_i32_0 = arith.constant 0 : i32
    %c0_i32_1 = arith.constant 0 : i32
    %c0_i32_2 = arith.constant 0 : i32
    return %c0_i32, %c0_i32_0, %c0_i32_1 : i32, i32, i32
  }
  func.func @transform_8(%arg0: i32) -> (i32, i32, i32) {
    %c0_i32 = arith.constant 0 : i32
    %c0_i32_0 = arith.constant 0 : i32
    %c0_i32_1 = arith.constant 0 : i32
    %c0_i32_2 = arith.constant 0 : i32
    return %c0_i32, %c0_i32_0, %c0_i32_1 : i32, i32, i32
  }
  func.func @transform_9(%arg0: i32) -> (i32, i32) {
    %c0_i32 = arith.constant 0 : i32
    %c0_i32_0 = arith.constant 0 : i32
    %c0_i32_1 = arith.constant 0 : i32
    return %c0_i32, %c0_i32_0 : i32, i32
  }
  func.func @transform_10(%arg0: i32) -> (i32, i32, i32) {
    %c0_i32 = arith.constant 0 : i32
    %c0_i32_0 = arith.constant 0 : i32
    %c0_i32_1 = arith.constant 0 : i32
    %c0_i32_2 = arith.constant 0 : i32
    return %c0_i32, %c0_i32_0, %c0_i32_1 : i32, i32, i32
  }
  func.func @transform_11(%arg0: i32) -> (i32, i32, i32) {
    %c0_i32 = arith.constant 0 : i32
    %c0_i32_0 = arith.constant 0 : i32
    %c0_i32_1 = arith.constant 0 : i32
    %c0_i32_2 = arith.constant 0 : i32
    return %c0_i32, %c0_i32_0, %c0_i32_1 : i32, i32, i32
  }
  func.func @transform_12(%arg0: i32) -> (i32, i32) {
    %c0_i32 = arith.constant 0 : i32
    %c0_i32_0 = arith.constant 0 : i32
    %c0_i32_1 = arith.constant 0 : i32
    return %c0_i32, %c0_i32_0 : i32, i32
  }
  func.func @transform_13(%arg0: i32) -> (i32, i32, i32) {
    %c0_i32 = arith.constant 0 : i32
    %c0_i32_0 = arith.constant 0 : i32
    %c0_i32_1 = arith.constant 0 : i32
    return %arg0, %c0_i32, %c0_i32_0 : i32, i32, i32
  }
}

</mosaic_0001>

<llo_original>
// kernel: tpu_custom_call.1
$region0: #{tpu_custom_call.1}
  #allocation0 [shape = 'u32[]', space=smem, size = 0x4, offset = 0x4, fixed_abs, tag = 'smem constant byte address 0x4 - core index']
  #allocation1 [shape = 'u32[144,128]{1,0:T(1,128)}', space=vmem, size = 0x12000, scoped, tag = 'internal scratch']
  %s0 = inlined_call_operand.vmem [shape: f32[2,2,64], index: 0, kind: input, shape index: {}]
  %s1 = inlined_call_operand.vmem [shape: f32[5,64,128], index: 1, kind: input, shape index: {}]
  %s2 = inlined_call_operand.vmem [shape: f32[5,8,2], index: 2, kind: input, shape index: {}]
  %s3 = inlined_call_operand.vmem [shape: f32[1,128], index: 3, kind: input, shape index: {}]
  %s4 = inlined_call_operand.vmem [shape: f32[3,128,128], index: 4, kind: input, shape index: {}]
  %s5 = inlined_call_operand.vmem [shape: f32[3,16,8], index: 5, kind: input, shape index: {}]
  %s6 = inlined_call_operand.vmem [shape: f32[1,128], index: 6, kind: input, shape index: {}]
  %s7 = inlined_call_operand.vmem [shape: f32[3,128,128], index: 7, kind: input, shape index: {}]
  %s8 = inlined_call_operand.vmem [shape: f32[3,32,16], index: 8, kind: input, shape index: {}]
  %s9 = inlined_call_operand.vmem [shape: f32[1,128], index: 9, kind: input, shape index: {}]
  %s10 = inlined_call_operand.vmem [shape: f32[3,128,192], index: 10, kind: input, shape index: {}]
  %s11 = inlined_call_operand.vmem [shape: f32[3,64,32], index: 11, kind: input, shape index: {}]
  %s12 = inlined_call_operand.vmem [shape: f32[1,192], index: 12, kind: input, shape index: {}]
  %s13 = inlined_call_operand.hbm [shape: f32[2,64,192], index: 13, kind: output, shape index: {}]
  %s14 = sld [smem:[#allocation0]]
  $region85: #{tpu_custom_call.1} parent=0
    _
  %s16 = ssub.s32 1, %s14
  %s17 = scalar_select 0, %s16, %s14
  $region1: #{tpu_custom_call.1} parent=0
    #allocation2 [shape = 'u8[131072]{0}', space=vmem, size = 0x20000, scoped, tag = 'output window, operand 0']
    #allocation3 [shape = 's32[2]{0}', space=sflag, size = 0x8, scoped, tag = 'scoped memory for tpu_custom_call.1']
    %18 = vsyncpa [#allocation3], 0
    %s19 = scalar_lea.sflag [#allocation3], 1
    %20 = vsyncpa %s19, 0
    loop: start=0, step=1, limit=4
    $region2: #{tpu_custom_call.1} parent=1 // loop_pre_header
      _
    $region3: #{tpu_custom_call.1} parent=1 // loop_header
      %s22 = sphi 0, %s26
      %p23 = scmp.ge.s32.totalorder %s22, 4
      %s32 = sphi 0, %s34
      %s35 = sphi 0, %s32
      %s36 = sphi 0, %s35
      %s52 = sphi 0, %s36
      %s56 = sphi 0, %s56
      %s58 = sphi 0, %s56
      %s59 = sphi 0, %s58
      %s73 = sphi 0, %s59
      %s77 = sphi 0, %s77
      %s79 = sphi 0, %s77
      %s80 = sphi 0, %s79
      %s94 = sphi 0, %s80
      %s98 = sphi 0, %s98
      %s100 = sphi 0, %s98
      %s101 = sphi 0, %s100
      %s115 = sphi 0, %s101
      %s119 = sphi 0, %s119
      %s121 = sphi 0, %s119
      %s122 = sphi 0, %s121
      %s136 = sphi 0, %s122
      %s140 = sphi 0, %s140
      %s142 = sphi 0, %s140
      %s143 = sphi 0, %s142
      %s157 = sphi 0, %s143
      %s161 = sphi 0, %s161
      %s163 = sphi 0, %s161
      %s164 = sphi 0, %s163
      %s178 = sphi 0, %s164
      %s182 = sphi 0, %s182
      %s184 = sphi 0, %s182
      %s185 = sphi 0, %s184
      %s199 = sphi 0, %s185
      %s203 = sphi 0, %s203
      %s205 = sphi 0, %s203
      %s206 = sphi 0, %s205
      %s220 = sphi 0, %s206
      %s224 = sphi 0, %s224
      %s226 = sphi 0, %s224
      %s227 = sphi 0, %s226
      %s241 = sphi 0, %s227
      %s245 = sphi 0, %s245
      %s247 = sphi 0, %s245
      %s248 = sphi 0, %s247
      %s262 = sphi 0, %s248
      %s266 = sphi 0, %s266
      %s268 = sphi 0, %s266
      %s269 = sphi 0, %s268
      %s283 = sphi 0, %s269
      %s287 = sphi 0, %s287
      %s289 = sphi 0, %s287
      %s290 = sphi 0, %s289
      %s304 = sphi 0, %s290
      %s310 = sphi 0, %s312
      %s313 = sphi 0, %s310
      %s314 = sphi 0, %s313
      %s330 = sphi 0, %s314
    $region4: #{tpu_custom_call.1} parent=1 // loop_header_branch
      %25 = sbr.rel (%p23) target = $region8
    $region5: #{tpu_custom_call.1} parent=1 // loop_body
      %s27 = ssub.s32 %s22, 1
      %s28 = ssub.s32 %s22, 2
      %s29 = sadd.s32 %s22, 1
      %s30 = ssub.s32 %s22, %s29
      %p31 = scmp.eq.s32.totalorder %s30, 0
      %s33 = sadd.s32 %s32, 1
      %s34 = scalar_select %p31, %s32, %s33
      %p37 = pneg %p31
      %p38 = scmp.eq.s32.totalorder %s22, 1
      %p39 = por %p37, %p38
      %p40 = scmp.ne.s32.totalorder %s32, %s35
      %p41 = scmp.eq.s32.totalorder %s22, 0
      %p42 = por %p40, %p41
      %p43 = scmp.ne.s32.totalorder %s32, %s35
      %p44 = scmp.eq.s32.totalorder %s27, 1
      %p45 = por %p43, %p44
      %p46 = scmp.ne.s32.totalorder %s35, %s36
      %p47 = scmp.eq.s32.totalorder %s27, 0
      %p48 = por %p46, %p47
      %p49 = scmp.ne.s32.totalorder %s35, %s36
      %p50 = scmp.eq.s32.totalorder %s28, 1
      %p51 = por %p49, %p50
      %p53 = scmp.ne.s32.totalorder %s36, %s52
      %p54 = scmp.eq.s32.totalorder %s28, 0
      %p55 = por %p53, %p54
      %s57 = sadd.s32 %s56, 1
      %p60 = scmp.eq.s32.totalorder %s22, 1
      %p61 = scmp.ne.s32.totalorder %s56, %s58
      %p62 = scmp.eq.s32.totalorder %s22, 0
      %p63 = por %p61, %p62
      %p64 = scmp.ne.s32.totalorder %s56, %s58
      %p65 = scmp.eq.s32.totalorder %s27, 1
      %p66 = por %p64, %p65
      %p67 = scmp.ne.s32.totalorder %s58, %s59
      %p68 = scmp.eq.s32.totalorder %s27, 0
      %p69 = por %p67, %p68
      %p70 = scmp.ne.s32.totalorder %s58, %s59
      %p71 = scmp.eq.s32.totalorder %s28, 1
      %p72 = por %p70, %p71
      %p74 = scmp.ne.s32.totalorder %s59, %s73
      %p75 = scmp.eq.s32.totalorder %s28, 0
      %p76 = por %p74, %p75
      %s78 = sadd.s32 %s77, 1
      %p81 = scmp.eq.s32.totalorder %s22, 1
      %p82 = scmp.ne.s32.totalorder %s77, %s79
      %p83 = scmp.eq.s32.totalorder %s22, 0
      %p84 = por %p82, %p83
      %p85 = scmp.ne.s32.totalorder %s77, %s79
      %p86 = scmp.eq.s32.totalorder %s27, 1
      %p87 = por %p85, %p86
      %p88 = scmp.ne.s32.totalorder %s79, %s80
      %p89 = scmp.eq.s32.totalorder %s27, 0
      %p90 = por %p88, %p89
      %p91 = scmp.ne.s32.totalorder %s79, %s80
      %p92 = scmp.eq.s32.totalorder %s28, 1
      %p93 = por %p91, %p92
      %p95 = scmp.ne.s32.totalorder %s80, %s94
      %p96 = scmp.eq.s32.totalorder %s28, 0
      %p97 = por %p95, %p96
      %s99 = sadd.s32 %s98, 1
      %p102 = scmp.eq.s32.totalorder %s22, 1
      %p103 = scmp.ne.s32.totalorder %s98, %s100
      %p104 = scmp.eq.s32.totalorder %s22, 0
      %p105 = por %p103, %p104
      %p106 = scmp.ne.s32.totalorder %s98, %s100
      %p107 = scmp.eq.s32.totalorder %s27, 1
      %p108 = por %p106, %p107
      %p109 = scmp.ne.s32.totalorder %s100, %s101
      %p110 = scmp.eq.s32.totalorder %s27, 0
      %p111 = por %p109, %p110
      %p112 = scmp.ne.s32.totalorder %s100, %s101
      %p113 = scmp.eq.s32.totalorder %s28, 1
      %p114 = por %p112, %p113
      %p116 = scmp.ne.s32.totalorder %s101, %s115
      %p117 = scmp.eq.s32.totalorder %s28, 0
      %p118 = por %p116, %p117
      %s120 = sadd.s32 %s119, 1
      %p123 = scmp.eq.s32.totalorder %s22, 1
      %p124 = scmp.ne.s32.totalorder %s119, %s121
      %p125 = scmp.eq.s32.totalorder %s22, 0
      %p126 = por %p124, %p125
      %p127 = scmp.ne.s32.totalorder %s119, %s121
      %p128 = scmp.eq.s32.totalorder %s27, 1
      %p129 = por %p127, %p128
      %p130 = scmp.ne.s32.totalorder %s121, %s122
      %p131 = scmp.eq.s32.totalorder %s27, 0
      %p132 = por %p130, %p131
      %p133 = scmp.ne.s32.totalorder %s121, %s122
      %p134 = scmp.eq.s32.totalorder %s28, 1
      %p135 = por %p133, %p134
      %p137 = scmp.ne.s32.totalorder %s122, %s136
      %p138 = scmp.eq.s32.totalorder %s28, 0
      %p139 = por %p137, %p138
      %s141 = sadd.s32 %s140, 1
      %p144 = scmp.eq.s32.totalorder %s22, 1
      %p145 = scmp.ne.s32.totalorder %s140, %s142
      %p146 = scmp.eq.s32.totalorder %s22, 0
      %p147 = por %p145, %p146
      %p148 = scmp.ne.s32.totalorder %s140, %s142
      %p149 = scmp.eq.s32.totalorder %s27, 1
      %p150 = por %p148, %p149
      %p151 = scmp.ne.s32.totalorder %s142, %s143
      %p152 = scmp.eq.s32.totalorder %s27, 0
      %p153 = por %p151, %p152
      %p154 = scmp.ne.s32.totalorder %s142, %s143
      %p155 = scmp.eq.s32.totalorder %s28, 1
      %p156 = por %p154, %p155
      %p158 = scmp.ne.s32.totalorder %s143, %s157
      %p159 = scmp.eq.s32.totalorder %s28, 0
      %p160 = por %p158, %p159
      %s162 = sadd.s32 %s161, 1
      %p165 = scmp.eq.s32.totalorder %s22, 1
      %p166 = scmp.ne.s32.totalorder %s161, %s163
      %p167 = scmp.eq.s32.totalorder %s22, 0
      %p168 = por %p166, %p167
      %p169 = scmp.ne.s32.totalorder %s161, %s163
      %p170 = scmp.eq.s32.totalorder %s27, 1
      %p171 = por %p169, %p170
      %p172 = scmp.ne.s32.totalorder %s163, %s164
      %p173 = scmp.eq.s32.totalorder %s27, 0
      %p174 = por %p172, %p173
      %p175 = scmp.ne.s32.totalorder %s163, %s164
      %p176 = scmp.eq.s32.totalorder %s28, 1
      %p177 = por %p175, %p176
      %p179 = scmp.ne.s32.totalorder %s164, %s178
      %p180 = scmp.eq.s32.totalorder %s28, 0
      %p181 = por %p179, %p180
      %s183 = sadd.s32 %s182, 1
      %p186 = scmp.eq.s32.totalorder %s22, 1
      %p187 = scmp.ne.s32.totalorder %s182, %s184
      %p188 = scmp.eq.s32.totalorder %s22, 0
      %p189 = por %p187, %p188
      %p190 = scmp.ne.s32.totalorder %s182, %s184
      %p191 = scmp.eq.s32.totalorder %s27, 1
      %p192 = por %p190, %p191
      %p193 = scmp.ne.s32.totalorder %s184, %s185
      %p194 = scmp.eq.s32.totalorder %s27, 0
      %p195 = por %p193, %p194
      %p196 = scmp.ne.s32.totalorder %s184, %s185
      %p197 = scmp.eq.s32.totalorder %s28, 1
      %p198 = por %p196, %p197
      %p200 = scmp.ne.s32.totalorder %s185, %s199
      %p201 = scmp.eq.s32.totalorder %s28, 0
      %p202 = por %p200, %p201
      %s204 = sadd.s32 %s203, 1
      %p207 = scmp.eq.s32.totalorder %s22, 1
      %p208 = scmp.ne.s32.totalorder %s203, %s205
      %p209 = scmp.eq.s32.totalorder %s22, 0
      %p210 = por %p208, %p209
      %p211 = scmp.ne.s32.totalorder %s203, %s205
      %p212 = scmp.eq.s32.totalorder %s27, 1
      %p213 = por %p211, %p212
      %p214 = scmp.ne.s32.totalorder %s205, %s206
      %p215 = scmp.eq.s32.totalorder %s27, 0
      %p216 = por %p214, %p215
      %p217 = scmp.ne.s32.totalorder %s205, %s206
      %p218 = scmp.eq.s32.totalorder %s28, 1
      %p219 = por %p217, %p218
      %p221 = scmp.ne.s32.totalorder %s206, %s220
      %p222 = scmp.eq.s32.totalorder %s28, 0
      %p223 = por %p221, %p222
      %s225 = sadd.s32 %s224, 1
      %p228 = scmp.eq.s32.totalorder %s22, 1
      %p229 = scmp.ne.s32.totalorder %s224, %s226
      %p230 = scmp.eq.s32.totalorder %s22, 0
      %p231 = por %p229, %p230
      %p232 = scmp.ne.s32.totalorder %s224, %s226
      %p233 = scmp.eq.s32.totalorder %s27, 1
      %p234 = por %p232, %p233
      %p235 = scmp.ne.s32.totalorder %s226, %s227
      %p236 = scmp.eq.s32.totalorder %s27, 0
      %p237 = por %p235, %p236
      %p238 = scmp.ne.s32.totalorder %s226, %s227
      %p239 = scmp.eq.s32.totalorder %s28, 1
      %p240 = por %p238, %p239
      %p242 = scmp.ne.s32.totalorder %s227, %s241
      %p243 = scmp.eq.s32.totalorder %s28, 0
      %p244 = por %p242, %p243
      %s246 = sadd.s32 %s245, 1
      %p249 = scmp.eq.s32.totalorder %s22, 1
      %p250 = scmp.ne.s32.totalorder %s245, %s247
      %p251 = scmp.eq.s32.totalorder %s22, 0
      %p252 = por %p250, %p251
      %p253 = scmp.ne.s32.totalorder %s245, %s247
      %p254 = scmp.eq.s32.totalorder %s27, 1
      %p255 = por %p253, %p254
      %p256 = scmp.ne.s32.totalorder %s247, %s248
      %p257 = scmp.eq.s32.totalorder %s27, 0
      %p258 = por %p256, %p257
      %p259 = scmp.ne.s32.totalorder %s247, %s248
      %p260 = scmp.eq.s32.totalorder %s28, 1
      %p261 = por %p259, %p260
      %p263 = scmp.ne.s32.totalorder %s248, %s262
      %p264 = scmp.eq.s32.totalorder %s28, 0
      %p265 = por %p263, %p264
      %s267 = sadd.s32 %s266, 1
      %p270 = scmp.eq.s32.totalorder %s22, 1
      %p271 = scmp.ne.s32.totalorder %s266, %s268
      %p272 = scmp.eq.s32.totalorder %s22, 0
      %p273 = por %p271, %p272
      %p274 = scmp.ne.s32.totalorder %s266, %s268
      %p275 = scmp.eq.s32.totalorder %s27, 1
      %p276 = por %p274, %p275
      %p277 = scmp.ne.s32.totalorder %s268, %s269
      %p278 = scmp.eq.s32.totalorder %s27, 0
      %p279 = por %p277, %p278
      %p280 = scmp.ne.s32.totalorder %s268, %s269
      %p281 = scmp.eq.s32.totalorder %s28, 1
      %p282 = por %p280, %p281
      %p284 = scmp.ne.s32.totalorder %s269, %s283
      %p285 = scmp.eq.s32.totalorder %s28, 0
      %p286 = por %p284, %p285
      %s288 = sadd.s32 %s287, 1
      %p291 = scmp.eq.s32.totalorder %s22, 1
      %p292 = scmp.ne.s32.totalorder %s287, %s289
      %p293 = scmp.eq.s32.totalorder %s22, 0
      %p294 = por %p292, %p293
      %p295 = scmp.ne.s32.totalorder %s287, %s289
      %p296 = scmp.eq.s32.totalorder %s27, 1
      %p297 = por %p295, %p296
      %p298 = scmp.ne.s32.totalorder %s289, %s290
      %p299 = scmp.eq.s32.totalorder %s27, 0
      %p300 = por %p298, %p299
      %p301 = scmp.ne.s32.totalorder %s289, %s290
      %p302 = scmp.eq.s32.totalorder %s28, 1
      %p303 = por %p301, %p302
      %p305 = scmp.ne.s32.totalorder %s290, %s304
      %p306 = scmp.eq.s32.totalorder %s28, 0
      %p307 = por %p305, %p306
      %s308 = ssub.s32 %s22, %s29
      %p309 = scmp.eq.s32.totalorder %s308, 0
      %s311 = sadd.s32 %s310, 1
      %s312 = scalar_select %p309, %s310, %s311
      %p315 = pneg %p309
      %p316 = scmp.eq.s32.totalorder %s22, 1
      %p317 = por %p315, %p316
      %p318 = scmp.ne.s32.totalorder %s310, %s313
      %p319 = scmp.eq.s32.totalorder %s22, 0
      %p320 = por %p318, %p319
      %p321 = scmp.ne.s32.totalorder %s310, %s313
      %p322 = scmp.eq.s32.totalorder %s27, 1
      %p323 = por %p321, %p322
      %p324 = scmp.ne.s32.totalorder %s313, %s314
      %p325 = scmp.eq.s32.totalorder %s27, 0
      %p326 = por %p324, %p325
      %p327 = scmp.ne.s32.totalorder %s313, %s314
      %p328 = scmp.eq.s32.totalorder %s28, 1
      %p329 = por %p327, %p328
      %p331 = scmp.ne.s32.totalorder %s314, %s330
      %p332 = scmp.eq.s32.totalorder %s28, 0
      %p333 = por %p331, %p332
      %p334 = scmp.le.s32.totalorder 1, %s22
      %p335 = scmp.lt.s32.totalorder %s22, 3
      %p336 = pnand %p334, %p335
      %p337 = pneg %p336
      // Predicated region
      $region9: #{tpu_custom_call.1} parent=5 // pred_check
        _
      $region10: #{tpu_custom_call.1} parent=5 // pred_check_branch
        %339 = sbr.rel (%p336) target = $region12
      $region11: #{tpu_custom_call.1} parent=5 // pred_region
        %s340 = ssub.s32 %s22, 1
        // Predicated region
        $region13: #{tpu_custom_call.1} parent=11 // pred_check
          %p341 = pneg %p69
        $region14: #{tpu_custom_call.1} parent=11 // pred_check_branch
          %343 = sbr.rel (%p341) target = $region16
        $region15: #{tpu_custom_call.1} parent=11 // pred_region
          _
        $region16: #{tpu_custom_call.1} parent=11 // pred_fallthru
          _
        // Predicated region
        $region17: #{tpu_custom_call.1} parent=11 // pred_check
          %p344 = pneg %p90
        $region18: #{tpu_custom_call.1} parent=11 // pred_check_branch
          %346 = sbr.rel (%p344) target = $region20
        $region19: #{tpu_custom_call.1} parent=11 // pred_region
          _
        $region20: #{tpu_custom_call.1} parent=11 // pred_fallthru
          _
        // Predicated region
        $region21: #{tpu_custom_call.1} parent=11 // pred_check
          %p347 = pneg %p111
        $region22: #{tpu_custom_call.1} parent=11 // pred_check_branch
          %349 = sbr.rel (%p347) target = $region24
        $region23: #{tpu_custom_call.1} parent=11 // pred_region
          _
        $region24: #{tpu_custom_call.1} parent=11 // pred_fallthru
          _
        // Predicated region
        $region25: #{tpu_custom_call.1} parent=11 // pred_check
          %p350 = pneg %p132
        $region26: #{tpu_custom_call.1} parent=11 // pred_check_branch
          %352 = sbr.rel (%p350) target = $region28
        $region27: #{tpu_custom_call.1} parent=11 // pred_region
          _
        $region28: #{tpu_custom_call.1} parent=11 // pred_fallthru
          _
        // Predicated region
        $region29: #{tpu_custom_call.1} parent=11 // pred_check
          %p353 = pneg %p153
        $region30: #{tpu_custom_call.1} parent=11 // pred_check_branch
          %355 = sbr.rel (%p353) target = $region32
        $region31: #{tpu_custom_call.1} parent=11 // pred_region
          _
        $region32: #{tpu_custom_call.1} parent=11 // pred_fallthru
          _
        // Predicated region
        $region33: #{tpu_custom_call.1} parent=11 // pred_check
          %p356 = pneg %p174
        $region34: #{tpu_custom_call.1} parent=11 // pred_check_branch
          %358 = sbr.rel (%p356) target = $region36
        $region35: #{tpu_custom_call.1} parent=11 // pred_region
          _
        $region36: #{tpu_custom_call.1} parent=11 // pred_fallthru
          _
        // Predicated region
        $region37: #{tpu_custom_call.1} parent=11 // pred_check
          %p359 = pneg %p195
        $region38: #{tpu_custom_call.1} parent=11 // pred_check_branch
          %361 = sbr.rel (%p359) target = $region40
        $region39: #{tpu_custom_call.1} parent=11 // pred_region
          _
        $region40: #{tpu_custom_call.1} parent=11 // pred_fallthru
          _
        // Predicated region
        $region41: #{tpu_custom_call.1} parent=11 // pred_check
          %p362 = pneg %p216
        $region42: #{tpu_custom_call.1} parent=11 // pred_check_branch
          %364 = sbr.rel (%p362) target = $region44
        $region43: #{tpu_custom_call.1} parent=11 // pred_region
          _
        $region44: #{tpu_custom_call.1} parent=11 // pred_fallthru
          _
        // Predicated region
        $region45: #{tpu_custom_call.1} parent=11 // pred_check
          %p365 = pneg %p237
        $region46: #{tpu_custom_call.1} parent=11 // pred_check_branch
          %367 = sbr.rel (%p365) target = $region48
        $region47: #{tpu_custom_call.1} parent=11 // pred_region
          _
        $region48: #{tpu_custom_call.1} parent=11 // pred_fallthru
          _
        // Predicated region
        $region49: #{tpu_custom_call.1} parent=11 // pred_check
          %p368 = pneg %p258
        $region50: #{tpu_custom_call.1} parent=11 // pred_check_branch
          %370 = sbr.rel (%p368) target = $region52
        $region51: #{tpu_custom_call.1} parent=11 // pred_region
          _
        $region52: #{tpu_custom_call.1} parent=11 // pred_fallthru
          _
        // Predicated region
        $region53: #{tpu_custom_call.1} parent=11 // pred_check
          %p371 = pneg %p279
        $region54: #{tpu_custom_call.1} parent=11 // pred_check_branch
          %373 = sbr.rel (%p371) target = $region56
        $region55: #{tpu_custom_call.1} parent=11 // pred_region
          _
        $region56: #{tpu_custom_call.1} parent=11 // pred_fallthru
          _
        // Predicated region
        $region57: #{tpu_custom_call.1} parent=11 // pred_check
          %p374 = pneg %p300
        $region58: #{tpu_custom_call.1} parent=11 // pred_check_branch
          %376 = sbr.rel (%p374) target = $region60
        $region59: #{tpu_custom_call.1} parent=11 // pred_region
          _
        $region60: #{tpu_custom_call.1} parent=11 // pred_fallthru
          _
      $region12: #{tpu_custom_call.1} parent=5 // pred_fallthru
        _
      %p377 = scmp.lt.s32.totalorder %s22, 2
      // Predicated region
      $region61: #{tpu_custom_call.1} parent=5 // pred_check
        %p378 = pneg %p377
      $region62: #{tpu_custom_call.1} parent=5 // pred_check_branch
        %380 = sbr.rel (%p378) target = $region64
      $region63: #{tpu_custom_call.1} parent=5 // pred_region
        // Predicated region
        $region65: #{tpu_custom_call.1} parent=63 // pred_check
          %p381 = pneg %p42
        $region66: #{tpu_custom_call.1} parent=63 // pred_check_branch
          %383 = sbr.rel (%p381) target = $region68
        $region67: #{tpu_custom_call.1} parent=63 // pred_region
          %p384 = scmp.lt.s32.totalorder %s22, 1
          %s385 = scalar_select %p384, %s22, 1
          %s386 = smul.addr %s385, 2
          %s387 = scalar_lea.vmem %s0, %s386
        $region68: #{tpu_custom_call.1} parent=63 // pred_fallthru
          _
      $region64: #{tpu_custom_call.1} parent=5 // pred_fallthru
        _
      %p388 = scmp.le.s32.totalorder 1, %s22
      %p389 = scmp.lt.s32.totalorder %s22, 3
      %p390 = pnand %p388, %p389
      %p391 = pneg %p390
      // Predicated region
      $region69: #{tpu_custom_call.1} parent=5 // pred_check
        _
      $region70: #{tpu_custom_call.1} parent=5 // pred_check_branch
        %393 = sbr.rel (%p390) target = $region72
      $region71: #{tpu_custom_call.1} parent=5 // pred_region
        %s394 = ssub.s32 %s22, 1
        %p395 = scmp.lt.s32.totalorder %s27, 1
        %s396 = scalar_select %p395, %s27, 1
        %s397 = smul.addr %s396, 2
        %s398 = scalar_lea.vmem %s0, %s397
        %p399 = pneg %p48
        %p400 = pneg %p45
        %p401 = pneg %p69
        %p402 = pneg %p66
        %p403 = pneg %p90
        %p404 = pneg %p87
        %p405 = pneg %p111
        %p406 = pneg %p108
        %p407 = pneg %p132
        %p408 = pneg %p129
        %p409 = pneg %p153
        %p410 = pneg %p150
        %p411 = pneg %p174
        %p412 = pneg %p171
        %p413 = pneg %p195
        %p414 = pneg %p192
        %p415 = pneg %p216
        %p416 = pneg %p213
        %p417 = pneg %p237
        %p418 = pneg %p234
        %p419 = pneg %p258
        %p420 = pneg %p255
        %p421 = pneg %p279
        %p422 = pneg %p276
        %p423 = pneg %p300
        %p424 = pneg %p297
        %p425 = pneg %p326
        %p426 = pneg %p323
        %s427 = sand.u32 %s313, 1
        %s428 = scalar_lea.sflag [#allocation3], %s427
        %s429 = sand.u32 %s313, 1
        %s430 = smul.addr %s429, 128
        %s431 = scalar_lea.vmem [#allocation2], %s430
        %p432 = scmp.lt.s32.totalorder %s27, 1
        %s433 = scalar_select %p432, %s27, 1
        %s434 = smul.addr %s433, 2
        %s435 = scalar_lea.vmem %s0, %s434
        %v436 = vld [vmem:[%s435] sm:$0x3]
        %v437 = vld [vmem:[%s1] sm:$0xff]
        %v438 = vld [vmem:[%s1 + $0x8] sm:$0xff]
        %v439 = vld [vmem:[%s1 + $0x10] sm:$0xff]
        %v440 = vld [vmem:[%s1 + $0x18] sm:$0xff]
        %v441 = vld [vmem:[%s1 + $0x20] sm:$0xff]
        %v442 = vld [vmem:[%s1 + $0x28] sm:$0xff]
        %v443 = vld [vmem:[%s1 + $0x30] sm:$0xff]
        %v444 = vld [vmem:[%s1 + $0x38] sm:$0xff]
        %vm445 = vcmask 523264
        %v447 = vsel %vm445, %v436, 0
        %449 = vmatprep.subr.mxu0 0.0
        %450 = vmatpush1.msra.mxu0 %v437
        %451 = vmatprep.subr.mxu0 0.0
        %452 = vmatpush1.msra.mxu0 %v438
        %453 = vmatprep.subr.mxu0 0.0
        %454 = vmatpush1.msra.mxu0 %v439
        %455 = vmatprep.subr.mxu0 0.0
        %456 = vmatpush1.msra.mxu0 %v440
        %457 = vmatprep.subr.mxu0 0.0
        %458 = vmatpush1.msra.mxu0 %v441
        %459 = vmatprep.subr.mxu0 0.0
        %460 = vmatpush1.msra.mxu0 %v442
        %461 = vmatprep.subr.mxu0 0.0
        %462 = vmatpush1.msra.mxu0 %v443
        %463 = vmatprep.subr.mxu0 0.0
        %464 = vmatpush1.msra.mxu0 %v444
        %465 = vmatprep.subr.mxu0 0.0
        %466 = vmatpush1.msra.mxu0 0.0
        %467 = vmatprep.subr.mxu0 0.0
        %468 = vmatpush1.msra.mxu0 0.0
        %469 = vmatprep.subr.mxu0 0.0
        %470 = vmatpush1.msra.mxu0 0.0
        %471 = vmatprep.subr.mxu0 0.0
        %472 = vmatpush1.msra.mxu0 0.0
        %473 = vmatprep.subr.mxu0 0.0
        %474 = vmatpush1.msra.mxu0 0.0
        %475 = vmatprep.subr.mxu0 0.0
        %476 = vmatpush1.msra.mxu0 0.0
        %477 = vmatprep.subr.mxu0 0.0
        %478 = vmatpush1.msra.mxu0 0.0
        %479 = vmatprep.subr.mxu0 0.0
        %480 = vmatpush1.msra.mxu0 0.0
        %481 = vmatprep.subr.mxu0 0.0
        %482 = vmatpush1.msra.mxu0 0.0
        %483 = vmatprep.subr.mxu0 0.0
        %484 = vmatpush1.msra.mxu0 0.0
        %485 = vmatprep.subr.mxu0 0.0
        %486 = vmatpush1.msra.mxu0 0.0
        %487 = vmatprep.subr.mxu0 0.0
        %488 = vmatpush1.msra.mxu0 0.0
        %489 = vmatprep.subr.mxu0 0.0
        %490 = vmatpush1.msra.mxu0 0.0
        %491 = vmatprep.subr.mxu0 0.0
        %492 = vmatpush1.msra.mxu0 0.0
        %493 = vmatprep.subr.mxu0 0.0
        %494 = vmatpush1.msra.mxu0 0.0
        %495 = vmatprep.subr.mxu0 0.0
        %496 = vmatpush1.msra.mxu0 0.0
        %497 = vmatprep.subr.mxu0 0.0
        %498 = vmatpush1.msra.mxu0 0.0
        %499 = vmatprep.subr.mxu0 0.0
        %500 = vmatpush1.msra.mxu0 0.0
        %501 = vmatprep.subr.mxu0 0.0
        %502 = vmatpush1.msra.mxu0 0.0
        %503 = vmatprep.subr.mxu0 0.0
        %504 = vmatpush1.msra.mxu0 0.0
        %505 = vmatprep.subr.mxu0 0.0
        %506 = vmatpush1.msra.mxu0 0.0
        %507 = vmatprep.subr.mxu0 0.0
        %508 = vmatpush1.msra.mxu0 0.0
        %509 = vmatprep.subr.mxu0 0.0
        %510 = vmatpush1.msra.mxu0 0.0
        %511 = vmatprep.subr.mxu0 0.0
        %512 = vmatpush1.msra.mxu0 0.0
        %513 = vmatprep.mubr.f32.mxu0 0.0
        %514 = vmatmul.mubr.f32.gmra.mrb[0].mxu0 %v447
        %v515 = vpop.f32.mrb[0].mxu0
        %v516 = vadd.f32 0.0, %v515
        %v517 = vpop.f32.mrb[0].mxu0
        %518 = vdwg.mxu0
        %v519 = vld [vmem:[%s2] sm:$0xff]
        %s520 = scalar_lea.vmem %s1, 64
        %v521 = vld [vmem:[%s520] sm:$0xff]
        %v522 = vld [vmem:[%s520 + $0x8] sm:$0xff]
        %v523 = vld [vmem:[%s520 + $0x10] sm:$0xff]
        %v524 = vld [vmem:[%s520 + $0x18] sm:$0xff]
        %v525 = vld [vmem:[%s520 + $0x20] sm:$0xff]
        %v526 = vld [vmem:[%s520 + $0x28] sm:$0xff]
        %v527 = vld [vmem:[%s520 + $0x30] sm:$0xff]
        %v528 = vld [vmem:[%s520 + $0x38] sm:$0xff]
        %529 = vmatprep.subr.mxu0 0.0
        %530 = vmatpush1.msra.mxu0 %v521
        %531 = vmatprep.subr.mxu0 0.0
        %532 = vmatpush1.msra.mxu0 %v522
        %533 = vmatprep.subr.mxu0 0.0
        %534 = vmatpush1.msra.mxu0 %v523
        %535 = vmatprep.subr.mxu0 0.0
        %536 = vmatpush1.msra.mxu0 %v524
        %537 = vmatprep.subr.mxu0 0.0
        %538 = vmatpush1.msra.mxu0 %v525
        %539 = vmatprep.subr.mxu0 0.0
        %540 = vmatpush1.msra.mxu0 %v526
        %541 = vmatprep.subr.mxu0 0.0
        %542 = vmatpush1.msra.mxu0 %v527
        %543 = vmatprep.subr.mxu0 0.0
        %544 = vmatpush1.msra.mxu0 %v528
        %545 = vmatprep.subr.mxu0 0.0
        %546 = vmatpush1.msra.mxu0 0.0
        %547 = vmatprep.subr.mxu0 0.0
        %548 = vmatpush1.msra.mxu0 0.0
        %549 = vmatprep.subr.mxu0 0.0
        %550 = vmatpush1.msra.mxu0 0.0
        %551 = vmatprep.subr.mxu0 0.0
        %552 = vmatpush1.msra.mxu0 0.0
        %553 = vmatprep.subr.mxu0 0.0
        %554 = vmatpush1.msra.mxu0 0.0
        %555 = vmatprep.subr.mxu0 0.0
        %556 = vmatpush1.msra.mxu0 0.0
        %557 = vmatprep.subr.mxu0 0.0
        %558 = vmatpush1.msra.mxu0 0.0
        %559 = vmatprep.subr.mxu0 0.0
        %560 = vmatpush1.msra.mxu0 0.0
        %561 = vmatprep.subr.mxu0 0.0
        %562 = vmatpush1.msra.mxu0 0.0
        %563 = vmatprep.subr.mxu0 0.0
        %564 = vmatpush1.msra.mxu0 0.0
        %565 = vmatprep.subr.mxu0 0.0
        %566 = vmatpush1.msra.mxu0 0.0
        %567 = vmatprep.subr.mxu0 0.0
        %568 = vmatpush1.msra.mxu0 0.0
        %569 = vmatprep.subr.mxu0 0.0
        %570 = vmatpush1.msra.mxu0 0.0
        %571 = vmatprep.subr.mxu0 0.0
        %572 = vmatpush1.msra.mxu0 0.0
        %573 = vmatprep.subr.mxu0 0.0
        %574 = vmatpush1.msra.mxu0 0.0
        %575 = vmatprep.subr.mxu0 0.0
        %576 = vmatpush1.msra.mxu0 0.0
        %577 = vmatprep.subr.mxu0 0.0
        %578 = vmatpush1.msra.mxu0 0.0
        %579 = vmatprep.subr.mxu0 0.0
        %580 = vmatpush1.msra.mxu0 0.0
        %581 = vmatprep.subr.mxu0 0.0
        %582 = vmatpush1.msra.mxu0 0.0
        %583 = vmatprep.subr.mxu0 0.0
        %584 = vmatpush1.msra.mxu0 0.0
        %585 = vmatprep.subr.mxu0 0.0
        %586 = vmatpush1.msra.mxu0 0.0
        %587 = vmatprep.subr.mxu0 0.0
        %588 = vmatpush1.msra.mxu0 0.0
        %589 = vmatprep.subr.mxu0 0.0
        %590 = vmatpush1.msra.mxu0 0.0
        %591 = vmatprep.subr.mxu0 0.0
        %592 = vmatpush1.msra.mxu0 0.0
        %593 = vmatprep.mubr.f32.mxu0 0.0
        %594 = vmatmul.mubr.f32.gmra.mrb[0].mxu0 %v447
        %v595 = vpop.f32.mrb[0].mxu0
        %v596 = vadd.f32 0.0, %v595
        %v597 = vpop.f32.mrb[0].mxu0
        %598 = vdwg.mxu0
        %s599 = scalar_lea.vmem %s2, 8
        %v600 = vld [vmem:[%s599] sm:$0xff]
        %vm601 = vcmask 15360
        %v603 = vsel %vm601, %v600, 0
        %vm605 = vcmask 1041408
        %v607 = vsel %vm605, %v596, 0
        %609 = vmatprep.subr.mxu0 0.0
        %610 = vmatpush1.msra.mxu0 %v607
        %611 = vmatprep.subr.mxu0 0.0
        %612 = vmatpush1.msra.mxu0 0.0
        %613 = vmatprep.subr.mxu0 0.0
        %614 = vmatpush1.msra.mxu0 0.0
        %615 = vmatprep.subr.mxu0 0.0
        %616 = vmatpush1.msra.mxu0 0.0
        %617 = vmatprep.subr.mxu0 0.0
        %618 = vmatpush1.msra.mxu0 0.0
        %619 = vmatprep.subr.mxu0 0.0
        %620 = vmatpush1.msra.mxu0 0.0
        %621 = vmatprep.subr.mxu0 0.0
        %622 = vmatpush1.msra.mxu0 0.0
        %623 = vmatprep.subr.mxu0 0.0
        %624 = vmatpush1.msra.mxu0 0.0
        %625 = vmatprep.subr.mxu0 0.0
        %626 = vmatpush1.msra.mxu0 0.0
        %627 = vmatprep.subr.mxu0 0.0
        %628 = vmatpush1.msra.mxu0 0.0
        %629 = vmatprep.subr.mxu0 0.0
        %630 = vmatpush1.msra.mxu0 0.0
        %631 = vmatprep.subr.mxu0 0.0
        %632 = vmatpush1.msra.mxu0 0.0
        %633 = vmatprep.subr.mxu0 0.0
        %634 = vmatpush1.msra.mxu0 0.0
        %635 = vmatprep.subr.mxu0 0.0
        %636 = vmatpush1.msra.mxu0 0.0
        %637 = vmatprep.subr.mxu0 0.0
        %638 = vmatpush1.msra.mxu0 0.0
        %639 = vmatprep.subr.mxu0 0.0
        %640 = vmatpush1.msra.mxu0 0.0
        %641 = vmatprep.subr.mxu0 0.0
        %642 = vmatpush1.msra.mxu0 0.0
        %643 = vmatprep.subr.mxu0 0.0
        %644 = vmatpush1.msra.mxu0 0.0
        %645 = vmatprep.subr.mxu0 0.0
        %646 = vmatpush1.msra.mxu0 0.0
        %647 = vmatprep.subr.mxu0 0.0
        %648 = vmatpush1.msra.mxu0 0.0
        %649 = vmatprep.subr.mxu0 0.0
        %650 = vmatpush1.msra.mxu0 0.0
        %651 = vmatprep.subr.mxu0 0.0
        %652 = vmatpush1.msra.mxu0 0.0
        %653 = vmatprep.subr.mxu0 0.0
        %654 = vmatpush1.msra.mxu0 0.0
        %655 = vmatprep.subr.mxu0 0.0
        %656 = vmatpush1.msra.mxu0 0.0
        %657 = vmatprep.subr.mxu0 0.0
        %658 = vmatpush1.msra.mxu0 0.0
        %659 = vmatprep.subr.mxu0 0.0
        %660 = vmatpush1.msra.mxu0 0.0
        %661 = vmatprep.subr.mxu0 0.0
        %662 = vmatpush1.msra.mxu0 0.0
        %663 = vmatprep.subr.mxu0 0.0
        %664 = vmatpush1.msra.mxu0 0.0
        %665 = vmatprep.subr.mxu0 0.0
        %666 = vmatpush1.msra.mxu0 0.0
        %667 = vmatprep.subr.mxu0 0.0
        %668 = vmatpush1.msra.mxu0 0.0
        %669 = vmatprep.subr.mxu0 0.0
        %670 = vmatpush1.msra.mxu0 0.0
        %671 = vmatprep.subr.mxu0 0.0
        %672 = vmatpush1.msra.mxu0 0.0
        %673 = vmatprep.mubr.f32.mxu0 0.0
        %674 = vmatmul.mubr.f32.gmra.mrb[0].mxu0 %v603
        %v675 = vpop.f32.mrb[0].mxu0
        %v676 = vadd.f32 0.0, %v675
        %v677 = vpop.f32.mrb[0].mxu0
        %678 = vdwg.mxu0
        %v680 = vsel %vm601, %v519, 0
        %v683 = vsel %vm605, %v516, 0
        %685 = vmatprep.subr.mxu0 0.0
        %686 = vmatpush1.msra.mxu0 %v683
        %687 = vmatprep.subr.mxu0 0.0
        %688 = vmatpush1.msra.mxu0 0.0
        %689 = vmatprep.subr.mxu0 0.0
        %690 = vmatpush1.msra.mxu0 0.0
        %691 = vmatprep.subr.mxu0 0.0
        %692 = vmatpush1.msra.mxu0 0.0
        %693 = vmatprep.subr.mxu0 0.0
        %694 = vmatpush1.msra.mxu0 0.0
        %695 = vmatprep.subr.mxu0 0.0
        %696 = vmatpush1.msra.mxu0 0.0
        %697 = vmatprep.subr.mxu0 0.0
        %698 = vmatpush1.msra.mxu0 0.0
        %699 = vmatprep.subr.mxu0 0.0
        %700 = vmatpush1.msra.mxu0 0.0
        %701 = vmatprep.subr.mxu0 0.0
        %702 = vmatpush1.msra.mxu0 0.0
        %703 = vmatprep.subr.mxu0 0.0
        %704 = vmatpush1.msra.mxu0 0.0
        %705 = vmatprep.subr.mxu0 0.0
        %706 = vmatpush1.msra.mxu0 0.0
        %707 = vmatprep.subr.mxu0 0.0
        %708 = vmatpush1.msra.mxu0 0.0
        %709 = vmatprep.subr.mxu0 0.0
        %710 = vmatpush1.msra.mxu0 0.0
        %711 = vmatprep.subr.mxu0 0.0
        %712 = vmatpush1.msra.mxu0 0.0
        %713 = vmatprep.subr.mxu0 0.0
        %714 = vmatpush1.msra.mxu0 0.0
        %715 = vmatprep.subr.mxu0 0.0
        %716 = vmatpush1.msra.mxu0 0.0
        %717 = vmatprep.subr.mxu0 0.0
        %718 = vmatpush1.msra.mxu0 0.0
        %719 = vmatprep.subr.mxu0 0.0
        %720 = vmatpush1.msra.mxu0 0.0
        %721 = vmatprep.subr.mxu0 0.0
        %722 = vmatpush1.msra.mxu0 0.0
        %723 = vmatprep.subr.mxu0 0.0
        %724 = vmatpush1.msra.mxu0 0.0
        %725 = vmatprep.subr.mxu0 0.0
        %726 = vmatpush1.msra.mxu0 0.0
        %727 = vmatprep.subr.mxu0 0.0
        %728 = vmatpush1.msra.mxu0 0.0
        %729 = vmatprep.subr.mxu0 0.0
        %730 = vmatpush1.msra.mxu0 0.0
        %731 = vmatprep.subr.mxu0 0.0
        %732 = vmatpush1.msra.mxu0 0.0
        %733 = vmatprep.subr.mxu0 0.0
        %734 = vmatpush1.msra.mxu0 0.0
        %735 = vmatprep.subr.mxu0 0.0
        %736 = vmatpush1.msra.mxu0 0.0
        %737 = vmatprep.subr.mxu0 0.0
        %738 = vmatpush1.msra.mxu0 0.0
        %739 = vmatprep.subr.mxu0 0.0
        %740 = vmatpush1.msra.mxu0 0.0
        %741 = vmatprep.subr.mxu0 0.0
        %742 = vmatpush1.msra.mxu0 0.0
        %743 = vmatprep.subr.mxu0 0.0
        %744 = vmatpush1.msra.mxu0 0.0
        %745 = vmatprep.subr.mxu0 0.0
        %746 = vmatpush1.msra.mxu0 0.0
        %747 = vmatprep.subr.mxu0 0.0
        %748 = vmatpush1.msra.mxu0 0.0
        %749 = vmatprep.mubr.f32.mxu0 0.0
        %750 = vmatmul.mubr.f32.gmra.mrb[0].mxu0 %v680
        %v751 = vpop.f32.mrb[0].mxu0
        %v752 = vadd.f32 %v676, %v751
        %v753 = vpop.f32.mrb[0].mxu0
        %754 = vdwg.mxu0
        %s755 = scalar_lea.vmem %s1, 128
        %v756 = vld [vmem:[%s755] sm:$0xff]
        %v757 = vld [vmem:[%s755 + $0x8] sm:$0xff]
        %v758 = vld [vmem:[%s755 + $0x10] sm:$0xff]
        %v759 = vld [vmem:[%s755 + $0x18] sm:$0xff]
        %v760 = vld [vmem:[%s755 + $0x20] sm:$0xff]
        %v761 = vld [vmem:[%s755 + $0x28] sm:$0xff]
        %v762 = vld [vmem:[%s755 + $0x30] sm:$0xff]
        %v763 = vld [vmem:[%s755 + $0x38] sm:$0xff]
        %764 = vmatprep.subr.mxu0 0.0
        %765 = vmatpush1.msra.mxu0 %v756
        %766 = vmatprep.subr.mxu0 0.0
        %767 = vmatpush1.msra.mxu0 %v757
        %768 = vmatprep.subr.mxu0 0.0
        %769 = vmatpush1.msra.mxu0 %v758
        %770 = vmatprep.subr.mxu0 0.0
        %771 = vmatpush1.msra.mxu0 %v759
        %772 = vmatprep.subr.mxu0 0.0
        %773 = vmatpush1.msra.mxu0 %v760
        %774 = vmatprep.subr.mxu0 0.0
        %775 = vmatpush1.msra.mxu0 %v761
        %776 = vmatprep.subr.mxu0 0.0
        %777 = vmatpush1.msra.mxu0 %v762
        %778 = vmatprep.subr.mxu0 0.0
        %779 = vmatpush1.msra.mxu0 %v763
        %780 = vmatprep.subr.mxu0 0.0
        %781 = vmatpush1.msra.mxu0 0.0
        %782 = vmatprep.subr.mxu0 0.0
        %783 = vmatpush1.msra.mxu0 0.0
        %784 = vmatprep.subr.mxu0 0.0
        %785 = vmatpush1.msra.mxu0 0.0
        %786 = vmatprep.subr.mxu0 0.0
        %787 = vmatpush1.msra.mxu0 0.0
        %788 = vmatprep.subr.mxu0 0.0
        %789 = vmatpush1.msra.mxu0 0.0
        %790 = vmatprep.subr.mxu0 0.0
        %791 = vmatpush1.msra.mxu0 0.0
        %792 = vmatprep.subr.mxu0 0.0
        %793 = vmatpush1.msra.mxu0 0.0
        %794 = vmatprep.subr.mxu0 0.0
        %795 = vmatpush1.msra.mxu0 0.0
        %796 = vmatprep.subr.mxu0 0.0
        %797 = vmatpush1.msra.mxu0 0.0
        %798 = vmatprep.subr.mxu0 0.0
        %799 = vmatpush1.msra.mxu0 0.0
        %800 = vmatprep.subr.mxu0 0.0
        %801 = vmatpush1.msra.mxu0 0.0
        %802 = vmatprep.subr.mxu0 0.0
        %803 = vmatpush1.msra.mxu0 0.0
        %804 = vmatprep.subr.mxu0 0.0
        %805 = vmatpush1.msra.mxu0 0.0
        %806 = vmatprep.subr.mxu0 0.0
        %807 = vmatpush1.msra.mxu0 0.0
        %808 = vmatprep.subr.mxu0 0.0
        %809 = vmatpush1.msra.mxu0 0.0
        %810 = vmatprep.subr.mxu0 0.0
        %811 = vmatpush1.msra.mxu0 0.0
        %812 = vmatprep.subr.mxu0 0.0
        %813 = vmatpush1.msra.mxu0 0.0
        %814 = vmatprep.subr.mxu0 0.0
        %815 = vmatpush1.msra.mxu0 0.0
        %816 = vmatprep.subr.mxu0 0.0
        %817 = vmatpush1.msra.mxu0 0.0
        %818 = vmatprep.subr.mxu0 0.0
        %819 = vmatpush1.msra.mxu0 0.0
        %820 = vmatprep.subr.mxu0 0.0
        %821 = vmatpush1.msra.mxu0 0.0
        %822 = vmatprep.subr.mxu0 0.0
        %823 = vmatpush1.msra.mxu0 0.0
        %824 = vmatprep.subr.mxu0 0.0
        %825 = vmatpush1.msra.mxu0 0.0
        %826 = vmatprep.subr.mxu0 0.0
        %827 = vmatpush1.msra.mxu0 0.0
        %828 = vmatprep.mubr.f32.mxu0 0.0
        %829 = vmatmul.mubr.f32.gmra.mrb[0].mxu0 %v447
        %v830 = vpop.f32.mrb[0].mxu0
        %v831 = vadd.f32 0.0, %v830
        %v832 = vpop.f32.mrb[0].mxu0
        %833 = vdwg.mxu0
        %s834 = scalar_lea.vmem %s2, 16
        %v835 = vld [vmem:[%s834] sm:$0xff]
        %v837 = vsel %vm601, %v835, 0
        %v840 = vsel %vm605, %v831, 0
        %842 = vmatprep.subr.mxu0 0.0
        %843 = vmatpush1.msra.mxu0 %v840
        %844 = vmatprep.subr.mxu0 0.0
        %845 = vmatpush1.msra.mxu0 0.0
        %846 = vmatprep.subr.mxu0 0.0
        %847 = vmatpush1.msra.mxu0 0.0
        %848 = vmatprep.subr.mxu0 0.0
        %849 = vmatpush1.msra.mxu0 0.0
        %850 = vmatprep.subr.mxu0 0.0
        %851 = vmatpush1.msra.mxu0 0.0
        %852 = vmatprep.subr.mxu0 0.0
        %853 = vmatpush1.msra.mxu0 0.0
        %854 = vmatprep.subr.mxu0 0.0
        %855 = vmatpush1.msra.mxu0 0.0
        %856 = vmatprep.subr.mxu0 0.0
        %857 = vmatpush1.msra.mxu0 0.0
        %858 = vmatprep.subr.mxu0 0.0
        %859 = vmatpush1.msra.mxu0 0.0
        %860 = vmatprep.subr.mxu0 0.0
        %861 = vmatpush1.msra.mxu0 0.0
        %862 = vmatprep.subr.mxu0 0.0
        %863 = vmatpush1.msra.mxu0 0.0
        %864 = vmatprep.subr.mxu0 0.0
        %865 = vmatpush1.msra.mxu0 0.0
        %866 = vmatprep.subr.mxu0 0.0
        %867 = vmatpush1.msra.mxu0 0.0
        %868 = vmatprep.subr.mxu0 0.0
        %869 = vmatpush1.msra.mxu0 0.0
        %870 = vmatprep.subr.mxu0 0.0
        %871 = vmatpush1.msra.mxu0 0.0
        %872 = vmatprep.subr.mxu0 0.0
        %873 = vmatpush1.msra.mxu0 0.0
        %874 = vmatprep.subr.mxu0 0.0
        %875 = vmatpush1.msra.mxu0 0.0
        %876 = vmatprep.subr.mxu0 0.0
        %877 = vmatpush1.msra.mxu0 0.0
        %878 = vmatprep.subr.mxu0 0.0
        %879 = vmatpush1.msra.mxu0 0.0
        %880 = vmatprep.subr.mxu0 0.0
        %881 = vmatpush1.msra.mxu0 0.0
        %882 = vmatprep.subr.mxu0 0.0
        %883 = vmatpush1.msra.mxu0 0.0
        %884 = vmatprep.subr.mxu0 0.0
        %885 = vmatpush1.msra.mxu0 0.0
        %886 = vmatprep.subr.mxu0 0.0
        %887 = vmatpush1.msra.mxu0 0.0
        %888 = vmatprep.subr.mxu0 0.0
        %889 = vmatpush1.msra.mxu0 0.0
        %890 = vmatprep.subr.mxu0 0.0
        %891 = vmatpush1.msra.mxu0 0.0
        %892 = vmatprep.subr.mxu0 0.0
        %893 = vmatpush1.msra.mxu0 0.0
        %894 = vmatprep.subr.mxu0 0.0
        %895 = vmatpush1.msra.mxu0 0.0
        %896 = vmatprep.subr.mxu0 0.0
        %897 = vmatpush1.msra.mxu0 0.0
        %898 = vmatprep.subr.mxu0 0.0
        %899 = vmatpush1.msra.mxu0 0.0
        %900 = vmatprep.subr.mxu0 0.0
        %901 = vmatpush1.msra.mxu0 0.0
        %902 = vmatprep.subr.mxu0 0.0
        %903 = vmatpush1.msra.mxu0 0.0
        %904 = vmatprep.subr.mxu0 0.0
        %905 = vmatpush1.msra.mxu0 0.0
        %906 = vmatprep.mubr.f32.mxu0 0.0
        %907 = vmatmul.mubr.f32.gmra.mrb[0].mxu0 %v837
        %v908 = vpop.f32.mrb[0].mxu0
        %v909 = vadd.f32 0.0, %v908
        %v910 = vpop.f32.mrb[0].mxu0
        %911 = vdwg.mxu0
        %v912 = vadd.f32 %v752, %v909
        %s913 = scalar_lea.vmem %s1, 192
        %v914 = vld [vmem:[%s913] sm:$0xff]
        %v915 = vld [vmem:[%s913 + $0x8] sm:$0xff]
        %v916 = vld [vmem:[%s913 + $0x10] sm:$0xff]
        %v917 = vld [vmem:[%s913 + $0x18] sm:$0xff]
        %v918 = vld [vmem:[%s913 + $0x20] sm:$0xff]
        %v919 = vld [vmem:[%s913 + $0x28] sm:$0xff]
        %v920 = vld [vmem:[%s913 + $0x30] sm:$0xff]
        %v921 = vld [vmem:[%s913 + $0x38] sm:$0xff]
        %922 = vmatprep.subr.mxu0 0.0
        %923 = vmatpush1.msra.mxu0 %v914
        %924 = vmatprep.subr.mxu0 0.0
        %925 = vmatpush1.msra.mxu0 %v915
        %926 = vmatprep.subr.mxu0 0.0
        %927 = vmatpush1.msra.mxu0 %v916
        %928 = vmatprep.subr.mxu0 0.0
        %929 = vmatpush1.msra.mxu0 %v917
        %930 = vmatprep.subr.mxu0 0.0
        %931 = vmatpush1.msra.mxu0 %v918
        %932 = vmatprep.subr.mxu0 0.0
        %933 = vmatpush1.msra.mxu0 %v919
        %934 = vmatprep.subr.mxu0 0.0
        %935 = vmatpush1.msra.mxu0 %v920
        %936 = vmatprep.subr.mxu0 0.0
        %937 = vmatpush1.msra.mxu0 %v921
        %938 = vmatprep.subr.mxu0 0.0
        %939 = vmatpush1.msra.mxu0 0.0
        %940 = vmatprep.subr.mxu0 0.0
        %941 = vmatpush1.msra.mxu0 0.0
        %942 = vmatprep.subr.mxu0 0.0
        %943 = vmatpush1.msra.mxu0 0.0
        %944 = vmatprep.subr.mxu0 0.0
        %945 = vmatpush1.msra.mxu0 0.0
        %946 = vmatprep.subr.mxu0 0.0
        %947 = vmatpush1.msra.mxu0 0.0
        %948 = vmatprep.subr.mxu0 0.0
        %949 = vmatpush1.msra.mxu0 0.0
        %950 = vmatprep.subr.mxu0 0.0
        %951 = vmatpush1.msra.mxu0 0.0
        %952 = vmatprep.subr.mxu0 0.0
        %953 = vmatpush1.msra.mxu0 0.0
        %954 = vmatprep.subr.mxu0 0.0
        %955 = vmatpush1.msra.mxu0 0.0
        %956 = vmatprep.subr.mxu0 0.0
        %957 = vmatpush1.msra.mxu0 0.0
        %958 = vmatprep.subr.mxu0 0.0
        %959 = vmatpush1.msra.mxu0 0.0
        %960 = vmatprep.subr.mxu0 0.0
        %961 = vmatpush1.msra.mxu0 0.0
        %962 = vmatprep.subr.mxu0 0.0
        %963 = vmatpush1.msra.mxu0 0.0
        %964 = vmatprep.subr.mxu0 0.0
        %965 = vmatpush1.msra.mxu0 0.0
        %966 = vmatprep.subr.mxu0 0.0
        %967 = vmatpush1.msra.mxu0 0.0
        %968 = vmatprep.subr.mxu0 0.0
        %969 = vmatpush1.msra.mxu0 0.0
        %970 = vmatprep.subr.mxu0 0.0
        %971 = vmatpush1.msra.mxu0 0.0
        %972 = vmatprep.subr.mxu0 0.0
        %973 = vmatpush1.msra.mxu0 0.0
        %974 = vmatprep.subr.mxu0 0.0
        %975 = vmatpush1.msra.mxu0 0.0
        %976 = vmatprep.subr.mxu0 0.0
        %977 = vmatpush1.msra.mxu0 0.0
        %978 = vmatprep.subr.mxu0 0.0
        %979 = vmatpush1.msra.mxu0 0.0
        %980 = vmatprep.subr.mxu0 0.0
        %981 = vmatpush1.msra.mxu0 0.0
        %982 = vmatprep.subr.mxu0 0.0
        %983 = vmatpush1.msra.mxu0 0.0
        %984 = vmatprep.subr.mxu0 0.0
        %985 = vmatpush1.msra.mxu0 0.0
        %986 = vmatprep.mubr.f32.mxu0 0.0
        %987 = vmatmul.mubr.f32.gmra.mrb[0].mxu0 %v447
        %v988 = vpop.f32.mrb[0].mxu0
        %v989 = vadd.f32 0.0, %v988
        %v990 = vpop.f32.mrb[0].mxu0
        %991 = vdwg.mxu0
        %s992 = scalar_lea.vmem %s2, 24
        %v993 = vld [vmem:[%s992] sm:$0xff]
        %v995 = vsel %vm601, %v993, 0
        %v998 = vsel %vm605, %v989, 0
        %1000 = vmatprep.subr.mxu0 0.0
        %1001 = vmatpush1.msra.mxu0 %v998
        %1002 = vmatprep.subr.mxu0 0.0
        %1003 = vmatpush1.msra.mxu0 0.0
        %1004 = vmatprep.subr.mxu0 0.0
        %1005 = vmatpush1.msra.mxu0 0.0
        %1006 = vmatprep.subr.mxu0 0.0
        %1007 = vmatpush1.msra.mxu0 0.0
        %1008 = vmatprep.subr.mxu0 0.0
        %1009 = vmatpush1.msra.mxu0 0.0
        %1010 = vmatprep.subr.mxu0 0.0
        %1011 = vmatpush1.msra.mxu0 0.0
        %1012 = vmatprep.subr.mxu0 0.0
        %1013 = vmatpush1.msra.mxu0 0.0
        %1014 = vmatprep.subr.mxu0 0.0
        %1015 = vmatpush1.msra.mxu0 0.0
        %1016 = vmatprep.subr.mxu0 0.0
        %1017 = vmatpush1.msra.mxu0 0.0
        %1018 = vmatprep.subr.mxu0 0.0
        %1019 = vmatpush1.msra.mxu0 0.0
        %1020 = vmatprep.subr.mxu0 0.0
        %1021 = vmatpush1.msra.mxu0 0.0
        %1022 = vmatprep.subr.mxu0 0.0
        %1023 = vmatpush1.msra.mxu0 0.0
        %1024 = vmatprep.subr.mxu0 0.0
        %1025 = vmatpush1.msra.mxu0 0.0
        %1026 = vmatprep.subr.mxu0 0.0
        %1027 = vmatpush1.msra.mxu0 0.0
        %1028 = vmatprep.subr.mxu0 0.0
        %1029 = vmatpush1.msra.mxu0 0.0
        %1030 = vmatprep.subr.mxu0 0.0
        %1031 = vmatpush1.msra.mxu0 0.0
        %1032 = vmatprep.subr.mxu0 0.0
        %1033 = vmatpush1.msra.mxu0 0.0
        %1034 = vmatprep.subr.mxu0 0.0
        %1035 = vmatpush1.msra.mxu0 0.0
        %1036 = vmatprep.subr.mxu0 0.0
        %1037 = vmatpush1.msra.mxu0 0.0
        %1038 = vmatprep.subr.mxu0 0.0
        %1039 = vmatpush1.msra.mxu0 0.0
        %1040 = vmatprep.subr.mxu0 0.0
        %1041 = vmatpush1.msra.mxu0 0.0
        %1042 = vmatprep.subr.mxu0 0.0
        %1043 = vmatpush1.msra.mxu0 0.0
        %1044 = vmatprep.subr.mxu0 0.0
        %1045 = vmatpush1.msra.mxu0 0.0
        %1046 = vmatprep.subr.mxu0 0.0
        %1047 = vmatpush1.msra.mxu0 0.0
        %1048 = vmatprep.subr.mxu0 0.0
        %1049 = vmatpush1.msra.mxu0 0.0
        %1050 = vmatprep.subr.mxu0 0.0
        %1051 = vmatpush1.msra.mxu0 0.0
        %1052 = vmatprep.subr.mxu0 0.0
        %1053 = vmatpush1.msra.mxu0 0.0
        %1054 = vmatprep.subr.mxu0 0.0
        %1055 = vmatpush1.msra.mxu0 0.0
        %1056 = vmatprep.subr.mxu0 0.0
        %1057 = vmatpush1.msra.mxu0 0.0
        %1058 = vmatprep.subr.mxu0 0.0
        %1059 = vmatpush1.msra.mxu0 0.0
        %1060 = vmatprep.subr.mxu0 0.0
        %1061 = vmatpush1.msra.mxu0 0.0
        %1062 = vmatprep.subr.mxu0 0.0
        %1063 = vmatpush1.msra.mxu0 0.0
        %1064 = vmatprep.mubr.f32.mxu0 0.0
        %1065 = vmatmul.mubr.f32.gmra.mrb[0].mxu0 %v995
        %v1066 = vpop.f32.mrb[0].mxu0
        %v1067 = vadd.f32 0.0, %v1066
        %v1068 = vpop.f32.mrb[0].mxu0
        %1069 = vdwg.mxu0
        %v1070 = vadd.f32 %v912, %v1067
        %s1071 = scalar_lea.vmem %s1, 256
        %v1072 = vld [vmem:[%s1071] sm:$0xff]
        %v1073 = vld [vmem:[%s1071 + $0x8] sm:$0xff]
        %v1074 = vld [vmem:[%s1071 + $0x10] sm:$0xff]
        %v1075 = vld [vmem:[%s1071 + $0x18] sm:$0xff]
        %v1076 = vld [vmem:[%s1071 + $0x20] sm:$0xff]
        %v1077 = vld [vmem:[%s1071 + $0x28] sm:$0xff]
        %v1078 = vld [vmem:[%s1071 + $0x30] sm:$0xff]
        %v1079 = vld [vmem:[%s1071 + $0x38] sm:$0xff]
        %1080 = vmatprep.subr.mxu0 0.0
        %1081 = vmatpush1.msra.mxu0 %v1072
        %1082 = vmatprep.subr.mxu0 0.0
        %1083 = vmatpush1.msra.mxu0 %v1073
        %1084 = vmatprep.subr.mxu0 0.0
        %1085 = vmatpush1.msra.mxu0 %v1074
        %1086 = vmatprep.subr.mxu0 0.0
        %1087 = vmatpush1.msra.mxu0 %v1075
        %1088 = vmatprep.subr.mxu0 0.0
        %1089 = vmatpush1.msra.mxu0 %v1076
        %1090 = vmatprep.subr.mxu0 0.0
        %1091 = vmatpush1.msra.mxu0 %v1077
        %1092 = vmatprep.subr.mxu0 0.0
        %1093 = vmatpush1.msra.mxu0 %v1078
        %1094 = vmatprep.subr.mxu0 0.0
        %1095 = vmatpush1.msra.mxu0 %v1079
        %1096 = vmatprep.subr.mxu0 0.0
        %1097 = vmatpush1.msra.mxu0 0.0
        %1098 = vmatprep.subr.mxu0 0.0
        %1099 = vmatpush1.msra.mxu0 0.0
        %1100 = vmatprep.subr.mxu0 0.0
        %1101 = vmatpush1.msra.mxu0 0.0
        %1102 = vmatprep.subr.mxu0 0.0
        %1103 = vmatpush1.msra.mxu0 0.0
        %1104 = vmatprep.subr.mxu0 0.0
        %1105 = vmatpush1.msra.mxu0 0.0
        %1106 = vmatprep.subr.mxu0 0.0
        %1107 = vmatpush1.msra.mxu0 0.0
        %1108 = vmatprep.subr.mxu0 0.0
        %1109 = vmatpush1.msra.mxu0 0.0
        %1110 = vmatprep.subr.mxu0 0.0
        %1111 = vmatpush1.msra.mxu0 0.0
        %1112 = vmatprep.subr.mxu0 0.0
        %1113 = vmatpush1.msra.mxu0 0.0
        %1114 = vmatprep.subr.mxu0 0.0
        %1115 = vmatpush1.msra.mxu0 0.0
        %1116 = vmatprep.subr.mxu0 0.0
        %1117 = vmatpush1.msra.mxu0 0.0
        %1118 = vmatprep.subr.mxu0 0.0
        %1119 = vmatpush1.msra.mxu0 0.0
        %1120 = vmatprep.subr.mxu0 0.0
        %1121 = vmatpush1.msra.mxu0 0.0
        %1122 = vmatprep.subr.mxu0 0.0
        %1123 = vmatpush1.msra.mxu0 0.0
        %1124 = vmatprep.subr.mxu0 0.0
        %1125 = vmatpush1.msra.mxu0 0.0
        %1126 = vmatprep.subr.mxu0 0.0
        %1127 = vmatpush1.msra.mxu0 0.0
        %1128 = vmatprep.subr.mxu0 0.0
        %1129 = vmatpush1.msra.mxu0 0.0
        %1130 = vmatprep.subr.mxu0 0.0
        %1131 = vmatpush1.msra.mxu0 0.0
        %1132 = vmatprep.subr.mxu0 0.0
        %1133 = vmatpush1.msra.mxu0 0.0
        %1134 = vmatprep.subr.mxu0 0.0
        %1135 = vmatpush1.msra.mxu0 0.0
        %1136 = vmatprep.subr.mxu0 0.0
        %1137 = vmatpush1.msra.mxu0 0.0
        %1138 = vmatprep.subr.mxu0 0.0
        %1139 = vmatpush1.msra.mxu0 0.0
        %1140 = vmatprep.subr.mxu0 0.0
        %1141 = vmatpush1.msra.mxu0 0.0
        %1142 = vmatprep.subr.mxu0 0.0
        %1143 = vmatpush1.msra.mxu0 0.0
        %1144 = vmatprep.mubr.f32.mxu0 0.0
        %1145 = vmatmul.mubr.f32.gmra.mrb[0].mxu0 %v447
        %v1146 = vpop.f32.mrb[0].mxu0
        %v1147 = vadd.f32 0.0, %v1146
        %v1148 = vpop.f32.mrb[0].mxu0
        %1149 = vdwg.mxu0
        %s1150 = scalar_lea.vmem %s2, 32
        %v1151 = vld [vmem:[%s1150] sm:$0xff]
        %v1153 = vsel %vm601, %v1151, 0
        %v1156 = vsel %vm605, %v1147, 0
        %1158 = vmatprep.subr.mxu0 0.0
        %1159 = vmatpush1.msra.mxu0 %v1156
        %1160 = vmatprep.subr.mxu0 0.0
        %1161 = vmatpush1.msra.mxu0 0.0
        %1162 = vmatprep.subr.mxu0 0.0
        %1163 = vmatpush1.msra.mxu0 0.0
        %1164 = vmatprep.subr.mxu0 0.0
        %1165 = vmatpush1.msra.mxu0 0.0
        %1166 = vmatprep.subr.mxu0 0.0
        %1167 = vmatpush1.msra.mxu0 0.0
        %1168 = vmatprep.subr.mxu0 0.0
        %1169 = vmatpush1.msra.mxu0 0.0
        %1170 = vmatprep.subr.mxu0 0.0
        %1171 = vmatpush1.msra.mxu0 0.0
        %1172 = vmatprep.subr.mxu0 0.0
        %1173 = vmatpush1.msra.mxu0 0.0
        %1174 = vmatprep.subr.mxu0 0.0
        %1175 = vmatpush1.msra.mxu0 0.0
        %1176 = vmatprep.subr.mxu0 0.0
        %1177 = vmatpush1.msra.mxu0 0.0
        %1178 = vmatprep.subr.mxu0 0.0
        %1179 = vmatpush1.msra.mxu0 0.0
        %1180 = vmatprep.subr.mxu0 0.0
        %1181 = vmatpush1.msra.mxu0 0.0
        %1182 = vmatprep.subr.mxu0 0.0
        %1183 = vmatpush1.msra.mxu0 0.0
        %1184 = vmatprep.subr.mxu0 0.0
        %1185 = vmatpush1.msra.mxu0 0.0
        %1186 = vmatprep.subr.mxu0 0.0
        %1187 = vmatpush1.msra.mxu0 0.0
        %1188 = vmatprep.subr.mxu0 0.0
        %1189 = vmatpush1.msra.mxu0 0.0
        %1190 = vmatprep.subr.mxu0 0.0
        %1191 = vmatpush1.msra.mxu0 0.0
        %1192 = vmatprep.subr.mxu0 0.0
        %1193 = vmatpush1.msra.mxu0 0.0
        %1194 = vmatprep.subr.mxu0 0.0
        %1195 = vmatpush1.msra.mxu0 0.0
        %1196 = vmatprep.subr.mxu0 0.0
        %1197 = vmatpush1.msra.mxu0 0.0
        %1198 = vmatprep.subr.mxu0 0.0
        %1199 = vmatpush1.msra.mxu0 0.0
        %1200 = vmatprep.subr.mxu0 0.0
        %1201 = vmatpush1.msra.mxu0 0.0
        %1202 = vmatprep.subr.mxu0 0.0
        %1203 = vmatpush1.msra.mxu0 0.0
        %1204 = vmatprep.subr.mxu0 0.0
        %1205 = vmatpush1.msra.mxu0 0.0
        %1206 = vmatprep.subr.mxu0 0.0
        %1207 = vmatpush1.msra.mxu0 0.0
        %1208 = vmatprep.subr.mxu0 0.0
        %1209 = vmatpush1.msra.mxu0 0.0
        %1210 = vmatprep.subr.mxu0 0.0
        %1211 = vmatpush1.msra.mxu0 0.0
        %1212 = vmatprep.subr.mxu0 0.0
        %1213 = vmatpush1.msra.mxu0 0.0
        %1214 = vmatprep.subr.mxu0 0.0
        %1215 = vmatpush1.msra.mxu0 0.0
        %1216 = vmatprep.subr.mxu0 0.0
        %1217 = vmatpush1.msra.mxu0 0.0
        %1218 = vmatprep.subr.mxu0 0.0
        %1219 = vmatpush1.msra.mxu0 0.0
        %1220 = vmatprep.subr.mxu0 0.0
        %1221 = vmatpush1.msra.mxu0 0.0
        %1222 = vmatprep.mubr.f32.mxu0 0.0
        %1223 = vmatmul.mubr.f32.gmra.mrb[0].mxu0 %v1153
        %v1224 = vpop.f32.mrb[0].mxu0
        %v1225 = vadd.f32 0.0, %v1224
        %v1226 = vpop.f32.mrb[0].mxu0
        %1227 = vdwg.mxu0
        %v1228 = vadd.f32 %v1070, %v1225
        %v1229 = vld [vmem:[%s3] sm:$0x1]
        %v1231 = vlaneseq
        %v1232 = vshrl.u32 %v1231, 7
        %v1233 = vsub.s32 0, %v1232
        %v1234 = vrot.slane %v1229, %v1233
        %v1236 = vadd.f32 %v1228, %v1234
        %v1237 = vmax.f32 %v1236, 0.0
        %v1238 = vld [vmem:[%s4] sm:$0xff]
        %v1239 = vld [vmem:[%s4 + $0x8] sm:$0xff]
        %v1240 = vld [vmem:[%s4 + $0x10] sm:$0xff]
        %v1241 = vld [vmem:[%s4 + $0x18] sm:$0xff]
        %v1242 = vld [vmem:[%s4 + $0x20] sm:$0xff]
        %v1243 = vld [vmem:[%s4 + $0x28] sm:$0xff]
        %v1244 = vld [vmem:[%s4 + $0x30] sm:$0xff]
        %v1245 = vld [vmem:[%s4 + $0x38] sm:$0xff]
        %v1246 = vld [vmem:[%s4 + $0x40] sm:$0xff]
        %v1247 = vld [vmem:[%s4 + $0x48] sm:$0xff]
        %v1248 = vld [vmem:[%s4 + $0x50] sm:$0xff]
        %v1249 = vld [vmem:[%s4 + $0x58] sm:$0xff]
        %v1250 = vld [vmem:[%s4 + $0x60] sm:$0xff]
        %v1251 = vld [vmem:[%s4 + $0x68] sm:$0xff]
        %v1252 = vld [vmem:[%s4 + $0x70] sm:$0xff]
        %v1253 = vld [vmem:[%s4 + $0x78] sm:$0xff]
        %1254 = vmatprep.subr.mxu0 0.0
        %1255 = vmatpush1.msra.mxu0 %v1238
        %1256 = vmatprep.subr.mxu0 0.0
        %1257 = vmatpush1.msra.mxu0 %v1239
        %1258 = vmatprep.subr.mxu0 0.0
        %1259 = vmatpush1.msra.mxu0 %v1240
        %1260 = vmatprep.subr.mxu0 0.0
        %1261 = vmatpush1.msra.mxu0 %v1241
        %1262 = vmatprep.subr.mxu0 0.0
        %1263 = vmatpush1.msra.mxu0 %v1242
        %1264 = vmatprep.subr.mxu0 0.0
        %1265 = vmatpush1.msra.mxu0 %v1243
        %1266 = vmatprep.subr.mxu0 0.0
        %1267 = vmatpush1.msra.mxu0 %v1244
        %1268 = vmatprep.subr.mxu0 0.0
        %1269 = vmatpush1.msra.mxu0 %v1245
        %1270 = vmatprep.subr.mxu0 0.0
        %1271 = vmatpush1.msra.mxu0 %v1246
        %1272 = vmatprep.subr.mxu0 0.0
        %1273 = vmatpush1.msra.mxu0 %v1247
        %1274 = vmatprep.subr.mxu0 0.0
        %1275 = vmatpush1.msra.mxu0 %v1248
        %1276 = vmatprep.subr.mxu0 0.0
        %1277 = vmatpush1.msra.mxu0 %v1249
        %1278 = vmatprep.subr.mxu0 0.0
        %1279 = vmatpush1.msra.mxu0 %v1250
        %1280 = vmatprep.subr.mxu0 0.0
        %1281 = vmatpush1.msra.mxu0 %v1251
        %1282 = vmatprep.subr.mxu0 0.0
        %1283 = vmatpush1.msra.mxu0 %v1252
        %1284 = vmatprep.subr.mxu0 0.0
        %1285 = vmatpush1.msra.mxu0 %v1253
        %1286 = vmatprep.subr.mxu0 0.0
        %1287 = vmatpush1.msra.mxu0 0.0
        %1288 = vmatprep.subr.mxu0 0.0
        %1289 = vmatpush1.msra.mxu0 0.0
        %1290 = vmatprep.subr.mxu0 0.0
        %1291 = vmatpush1.msra.mxu0 0.0
        %1292 = vmatprep.subr.mxu0 0.0
        %1293 = vmatpush1.msra.mxu0 0.0
        %1294 = vmatprep.subr.mxu0 0.0
        %1295 = vmatpush1.msra.mxu0 0.0
        %1296 = vmatprep.subr.mxu0 0.0
        %1297 = vmatpush1.msra.mxu0 0.0
        %1298 = vmatprep.subr.mxu0 0.0
        %1299 = vmatpush1.msra.mxu0 0.0
        %1300 = vmatprep.subr.mxu0 0.0
        %1301 = vmatpush1.msra.mxu0 0.0
        %1302 = vmatprep.subr.mxu0 0.0
        %1303 = vmatpush1.msra.mxu0 0.0
        %1304 = vmatprep.subr.mxu0 0.0
        %1305 = vmatpush1.msra.mxu0 0.0
        %1306 = vmatprep.subr.mxu0 0.0
        %1307 = vmatpush1.msra.mxu0 0.0
        %1308 = vmatprep.subr.mxu0 0.0
        %1309 = vmatpush1.msra.mxu0 0.0
        %1310 = vmatprep.subr.mxu0 0.0
        %1311 = vmatpush1.msra.mxu0 0.0
        %1312 = vmatprep.subr.mxu0 0.0
        %1313 = vmatpush1.msra.mxu0 0.0
        %1314 = vmatprep.subr.mxu0 0.0
        %1315 = vmatpush1.msra.mxu0 0.0
        %1316 = vmatprep.subr.mxu0 0.0
        %1317 = vmatpush1.msra.mxu0 0.0
        %1318 = vmatprep.mubr.f32.mxu0 0.0
        %1319 = vmatmul.mubr.f32.gmra.mrb[0].mxu0 %v1237
        %v1320 = vpop.f32.mrb[0].mxu0
        %v1321 = vadd.f32 0.0, %v1320
        %v1322 = vpop.f32.mrb[0].mxu0
        %1323 = vdwg.mxu0
        %v1324 = vld [vmem:[%s5] sm:$0xff]
        %v1325 = vld [vmem:[%s5 + $0x8] sm:$0xff]
        %s1326 = scalar_lea.vmem %s4, 128
        %v1327 = vld [vmem:[%s1326] sm:$0xff]
        %v1328 = vld [vmem:[%s1326 + $0x8] sm:$0xff]
        %v1329 = vld [vmem:[%s1326 + $0x10] sm:$0xff]
        %v1330 = vld [vmem:[%s1326 + $0x18] sm:$0xff]
        %v1331 = vld [vmem:[%s1326 + $0x20] sm:$0xff]
        %v1332 = vld [vmem:[%s1326 + $0x28] sm:$0xff]
        %v1333 = vld [vmem:[%s1326 + $0x30] sm:$0xff]
        %v1334 = vld [vmem:[%s1326 + $0x38] sm:$0xff]
        %v1335 = vld [vmem:[%s1326 + $0x40] sm:$0xff]
        %v1336 = vld [vmem:[%s1326 + $0x48] sm:$0xff]
        %v1337 = vld [vmem:[%s1326 + $0x50] sm:$0xff]
        %v1338 = vld [vmem:[%s1326 + $0x58] sm:$0xff]
        %v1339 = vld [vmem:[%s1326 + $0x60] sm:$0xff]
        %v1340 = vld [vmem:[%s1326 + $0x68] sm:$0xff]
        %v1341 = vld [vmem:[%s1326 + $0x70] sm:$0xff]
        %v1342 = vld [vmem:[%s1326 + $0x78] sm:$0xff]
        %1343 = vmatprep.subr.mxu0 0.0
        %1344 = vmatpush1.msra.mxu0 %v1327
        %1345 = vmatprep.subr.mxu0 0.0
        %1346 = vmatpush1.msra.mxu0 %v1328
        %1347 = vmatprep.subr.mxu0 0.0
        %1348 = vmatpush1.msra.mxu0 %v1329
        %1349 = vmatprep.subr.mxu0 0.0
        %1350 = vmatpush1.msra.mxu0 %v1330
        %1351 = vmatprep.subr.mxu0 0.0
        %1352 = vmatpush1.msra.mxu0 %v1331
        %1353 = vmatprep.subr.mxu0 0.0
        %1354 = vmatpush1.msra.mxu0 %v1332
        %1355 = vmatprep.subr.mxu0 0.0
        %1356 = vmatpush1.msra.mxu0 %v1333
        %1357 = vmatprep.subr.mxu0 0.0
        %1358 = vmatpush1.msra.mxu0 %v1334
        %1359 = vmatprep.subr.mxu0 0.0
        %1360 = vmatpush1.msra.mxu0 %v1335
        %1361 = vmatprep.subr.mxu0 0.0
        %1362 = vmatpush1.msra.mxu0 %v1336
        %1363 = vmatprep.subr.mxu0 0.0
        %1364 = vmatpush1.msra.mxu0 %v1337
        %1365 = vmatprep.subr.mxu0 0.0
        %1366 = vmatpush1.msra.mxu0 %v1338
        %1367 = vmatprep.subr.mxu0 0.0
        %1368 = vmatpush1.msra.mxu0 %v1339
        %1369 = vmatprep.subr.mxu0 0.0
        %1370 = vmatpush1.msra.mxu0 %v1340
        %1371 = vmatprep.subr.mxu0 0.0
        %1372 = vmatpush1.msra.mxu0 %v1341
        %1373 = vmatprep.subr.mxu0 0.0
        %1374 = vmatpush1.msra.mxu0 %v1342
        %1375 = vmatprep.subr.mxu0 0.0
        %1376 = vmatpush1.msra.mxu0 0.0
        %1377 = vmatprep.subr.mxu0 0.0
        %1378 = vmatpush1.msra.mxu0 0.0
        %1379 = vmatprep.subr.mxu0 0.0
        %1380 = vmatpush1.msra.mxu0 0.0
        %1381 = vmatprep.subr.mxu0 0.0
        %1382 = vmatpush1.msra.mxu0 0.0
        %1383 = vmatprep.subr.mxu0 0.0
        %1384 = vmatpush1.msra.mxu0 0.0
        %1385 = vmatprep.subr.mxu0 0.0
        %1386 = vmatpush1.msra.mxu0 0.0
        %1387 = vmatprep.subr.mxu0 0.0
        %1388 = vmatpush1.msra.mxu0 0.0
        %1389 = vmatprep.subr.mxu0 0.0
        %1390 = vmatpush1.msra.mxu0 0.0
        %1391 = vmatprep.subr.mxu0 0.0
        %1392 = vmatpush1.msra.mxu0 0.0
        %1393 = vmatprep.subr.mxu0 0.0
        %1394 = vmatpush1.msra.mxu0 0.0
        %1395 = vmatprep.subr.mxu0 0.0
        %1396 = vmatpush1.msra.mxu0 0.0
        %1397 = vmatprep.subr.mxu0 0.0
        %1398 = vmatpush1.msra.mxu0 0.0
        %1399 = vmatprep.subr.mxu0 0.0
        %1400 = vmatpush1.msra.mxu0 0.0
        %1401 = vmatprep.subr.mxu0 0.0
        %1402 = vmatpush1.msra.mxu0 0.0
        %1403 = vmatprep.subr.mxu0 0.0
        %1404 = vmatpush1.msra.mxu0 0.0
        %1405 = vmatprep.subr.mxu0 0.0
        %1406 = vmatpush1.msra.mxu0 0.0
        %1407 = vmatprep.mubr.f32.mxu0 0.0
        %1408 = vmatmul.mubr.f32.gmra.mrb[0].mxu0 %v1237
        %v1409 = vpop.f32.mrb[0].mxu0
        %v1410 = vadd.f32 0.0, %v1409
        %v1411 = vpop.f32.mrb[0].mxu0
        %1412 = vdwg.mxu0
        %s1413 = scalar_lea.vmem %s5, 16
        %v1414 = vld [vmem:[%s1413] sm:$0xff]
        %v1415 = vld [vmem:[%s1413 + $0x8] sm:$0xff]
        %vm1416 = vcmask 64512
        %v1418 = vsel %vm1416, %v1414, 0
        %v1421 = vsel %vm1416, %v1415, 0
        %1423 = vmatprep.subr.mxu0 0.0
        %1424 = vmatpush1.msra.mxu0 %v1410
        %1425 = vmatprep.subr.mxu0 0.0
        %1426 = vmatpush1.msra.mxu0 0.0
        %1427 = vmatprep.subr.mxu0 0.0
        %1428 = vmatpush1.msra.mxu0 0.0
        %1429 = vmatprep.subr.mxu0 0.0
        %1430 = vmatpush1.msra.mxu0 0.0
        %1431 = vmatprep.subr.mxu0 0.0
        %1432 = vmatpush1.msra.mxu0 0.0
        %1433 = vmatprep.subr.mxu0 0.0
        %1434 = vmatpush1.msra.mxu0 0.0
        %1435 = vmatprep.subr.mxu0 0.0
        %1436 = vmatpush1.msra.mxu0 0.0
        %1437 = vmatprep.subr.mxu0 0.0
        %1438 = vmatpush1.msra.mxu0 0.0
        %1439 = vmatprep.subr.mxu0 0.0
        %1440 = vmatpush1.msra.mxu0 0.0
        %1441 = vmatprep.subr.mxu0 0.0
        %1442 = vmatpush1.msra.mxu0 0.0
        %1443 = vmatprep.subr.mxu0 0.0
        %1444 = vmatpush1.msra.mxu0 0.0
        %1445 = vmatprep.subr.mxu0 0.0
        %1446 = vmatpush1.msra.mxu0 0.0
        %1447 = vmatprep.subr.mxu0 0.0
        %1448 = vmatpush1.msra.mxu0 0.0
        %1449 = vmatprep.subr.mxu0 0.0
        %1450 = vmatpush1.msra.mxu0 0.0
        %1451 = vmatprep.subr.mxu0 0.0
        %1452 = vmatpush1.msra.mxu0 0.0
        %1453 = vmatprep.subr.mxu0 0.0
        %1454 = vmatpush1.msra.mxu0 0.0
        %1455 = vmatprep.subr.mxu0 0.0
        %1456 = vmatpush1.msra.mxu0 0.0
        %1457 = vmatprep.subr.mxu0 0.0
        %1458 = vmatpush1.msra.mxu0 0.0
        %1459 = vmatprep.subr.mxu0 0.0
        %1460 = vmatpush1.msra.mxu0 0.0
        %1461 = vmatprep.subr.mxu0 0.0
        %1462 = vmatpush1.msra.mxu0 0.0
        %1463 = vmatprep.subr.mxu0 0.0
        %1464 = vmatpush1.msra.mxu0 0.0
        %1465 = vmatprep.subr.mxu0 0.0
        %1466 = vmatpush1.msra.mxu0 0.0
        %1467 = vmatprep.subr.mxu0 0.0
        %1468 = vmatpush1.msra.mxu0 0.0
        %1469 = vmatprep.subr.mxu0 0.0
        %1470 = vmatpush1.msra.mxu0 0.0
        %1471 = vmatprep.subr.mxu0 0.0
        %1472 = vmatpush1.msra.mxu0 0.0
        %1473 = vmatprep.subr.mxu0 0.0
        %1474 = vmatpush1.msra.mxu0 0.0
        %1475 = vmatprep.subr.mxu0 0.0
        %1476 = vmatpush1.msra.mxu0 0.0
        %1477 = vmatprep.subr.mxu0 0.0
        %1478 = vmatpush1.msra.mxu0 0.0
        %1479 = vmatprep.subr.mxu0 0.0
        %1480 = vmatpush1.msra.mxu0 0.0
        %1481 = vmatprep.subr.mxu0 0.0
        %1482 = vmatpush1.msra.mxu0 0.0
        %1483 = vmatprep.subr.mxu0 0.0
        %1484 = vmatpush1.msra.mxu0 0.0
        %1485 = vmatprep.subr.mxu0 0.0
        %1486 = vmatpush1.msra.mxu0 0.0
        %1487 = vmatprep.mubr.f32.mxu0 0.0
        %1488 = vmatmul.mubr.f32.gmra.mrb[0].mxu0 %v1418
        %v1489 = vpop.f32.mrb[0].mxu0
        %v1490 = vadd.f32 0.0, %v1489
        %v1491 = vpop.f32.mrb[0].mxu0
        %1492 = vmatprep.mubr.f32.mxu0 0.0
        %1493 = vmatmul.mubr.f32.gmra.mrb[0].mxu0 %v1421
        %v1494 = vpop.f32.mrb[0].mxu0
        %v1495 = vadd.f32 0.0, %v1494
        %v1496 = vpop.f32.mrb[0].mxu0
        %1497 = vdwg.mxu0
        %v1499 = vsel %vm1416, %v1324, 0
        %v1502 = vsel %vm1416, %v1325, 0
        %1504 = vmatprep.subr.mxu0 0.0
        %1505 = vmatpush1.msra.mxu0 %v1321
        %1506 = vmatprep.subr.mxu0 0.0
        %1507 = vmatpush1.msra.mxu0 0.0
        %1508 = vmatprep.subr.mxu0 0.0
        %1509 = vmatpush1.msra.mxu0 0.0
        %1510 = vmatprep.subr.mxu0 0.0
        %1511 = vmatpush1.msra.mxu0 0.0
        %1512 = vmatprep.subr.mxu0 0.0
        %1513 = vmatpush1.msra.mxu0 0.0
        %1514 = vmatprep.subr.mxu0 0.0
        %1515 = vmatpush1.msra.mxu0 0.0
        %1516 = vmatprep.subr.mxu0 0.0
        %1517 = vmatpush1.msra.mxu0 0.0
        %1518 = vmatprep.subr.mxu0 0.0
        %1519 = vmatpush1.msra.mxu0 0.0
        %1520 = vmatprep.subr.mxu0 0.0
        %1521 = vmatpush1.msra.mxu0 0.0
        %1522 = vmatprep.subr.mxu0 0.0
        %1523 = vmatpush1.msra.mxu0 0.0
        %1524 = vmatprep.subr.mxu0 0.0
        %1525 = vmatpush1.msra.mxu0 0.0
        %1526 = vmatprep.subr.mxu0 0.0
        %1527 = vmatpush1.msra.mxu0 0.0
        %1528 = vmatprep.subr.mxu0 0.0
        %1529 = vmatpush1.msra.mxu0 0.0
        %1530 = vmatprep.subr.mxu0 0.0
        %1531 = vmatpush1.msra.mxu0 0.0
        %1532 = vmatprep.subr.mxu0 0.0
        %1533 = vmatpush1.msra.mxu0 0.0
        %1534 = vmatprep.subr.mxu0 0.0
        %1535 = vmatpush1.msra.mxu0 0.0
        %1536 = vmatprep.subr.mxu0 0.0
        %1537 = vmatpush1.msra.mxu0 0.0
        %1538 = vmatprep.subr.mxu0 0.0
        %1539 = vmatpush1.msra.mxu0 0.0
        %1540 = vmatprep.subr.mxu0 0.0
        %1541 = vmatpush1.msra.mxu0 0.0
        %1542 = vmatprep.subr.mxu0 0.0
        %1543 = vmatpush1.msra.mxu0 0.0
        %1544 = vmatprep.subr.mxu0 0.0
        %1545 = vmatpush1.msra.mxu0 0.0
        %1546 = vmatprep.subr.mxu0 0.0
        %1547 = vmatpush1.msra.mxu0 0.0
        %1548 = vmatprep.subr.mxu0 0.0
        %1549 = vmatpush1.msra.mxu0 0.0
        %1550 = vmatprep.subr.mxu0 0.0
        %1551 = vmatpush1.msra.mxu0 0.0
        %1552 = vmatprep.subr.mxu0 0.0
        %1553 = vmatpush1.msra.mxu0 0.0
        %1554 = vmatprep.subr.mxu0 0.0
        %1555 = vmatpush1.msra.mxu0 0.0
        %1556 = vmatprep.subr.mxu0 0.0
        %1557 = vmatpush1.msra.mxu0 0.0
        %1558 = vmatprep.subr.mxu0 0.0
        %1559 = vmatpush1.msra.mxu0 0.0
        %1560 = vmatprep.subr.mxu0 0.0
        %1561 = vmatpush1.msra.mxu0 0.0
        %1562 = vmatprep.subr.mxu0 0.0
        %1563 = vmatpush1.msra.mxu0 0.0
        %1564 = vmatprep.subr.mxu0 0.0
        %1565 = vmatpush1.msra.mxu0 0.0
        %1566 = vmatprep.subr.mxu0 0.0
        %1567 = vmatpush1.msra.mxu0 0.0
        %1568 = vmatprep.mubr.f32.mxu0 0.0
        %1569 = vmatmul.mubr.f32.gmra.mrb[0].mxu0 %v1499
        %v1570 = vpop.f32.mrb[0].mxu0
        %v1571 = vadd.f32 %v1490, %v1570
        %v1572 = vpop.f32.mrb[0].mxu0
        %1573 = vmatprep.mubr.f32.mxu0 0.0
        %1574 = vmatmul.mubr.f32.gmra.mrb[0].mxu0 %v1502
        %v1575 = vpop.f32.mrb[0].mxu0
        %v1576 = vadd.f32 %v1495, %v1575
        %v1577 = vpop.f32.mrb[0].mxu0
        %1578 = vdwg.mxu0
        %s1579 = scalar_lea.vmem %s4, 256
        %v1580 = vld [vmem:[%s1579] sm:$0xff]
        %v1581 = vld [vmem:[%s1579 + $0x8] sm:$0xff]
        %v1582 = vld [vmem:[%s1579 + $0x10] sm:$0xff]
        %v1583 = vld [vmem:[%s1579 + $0x18] sm:$0xff]
        %v1584 = vld [vmem:[%s1579 + $0x20] sm:$0xff]
        %v1585 = vld [vmem:[%s1579 + $0x28] sm:$0xff]
        %v1586 = vld [vmem:[%s1579 + $0x30] sm:$0xff]
        %v1587 = vld [vmem:[%s1579 + $0x38] sm:$0xff]
        %v1588 = vld [vmem:[%s1579 + $0x40] sm:$0xff]
        %v1589 = vld [vmem:[%s1579 + $0x48] sm:$0xff]
        %v1590 = vld [vmem:[%s1579 + $0x50] sm:$0xff]
        %v1591 = vld [vmem:[%s1579 + $0x58] sm:$0xff]
        %v1592 = vld [vmem:[%s1579 + $0x60] sm:$0xff]
        %v1593 = vld [vmem:[%s1579 + $0x68] sm:$0xff]
        %v1594 = vld [vmem:[%s1579 + $0x70] sm:$0xff]
        %v1595 = vld [vmem:[%s1579 + $0x78] sm:$0xff]
        %1596 = vmatprep.subr.mxu0 0.0
        %1597 = vmatpush1.msra.mxu0 %v1580
        %1598 = vmatprep.subr.mxu0 0.0
        %1599 = vmatpush1.msra.mxu0 %v1581
        %1600 = vmatprep.subr.mxu0 0.0
        %1601 = vmatpush1.msra.mxu0 %v1582
        %1602 = vmatprep.subr.mxu0 0.0
        %1603 = vmatpush1.msra.mxu0 %v1583
        %1604 = vmatprep.subr.mxu0 0.0
        %1605 = vmatpush1.msra.mxu0 %v1584
        %1606 = vmatprep.subr.mxu0 0.0
        %1607 = vmatpush1.msra.mxu0 %v1585
        %1608 = vmatprep.subr.mxu0 0.0
        %1609 = vmatpush1.msra.mxu0 %v1586
        %1610 = vmatprep.subr.mxu0 0.0
        %1611 = vmatpush1.msra.mxu0 %v1587
        %1612 = vmatprep.subr.mxu0 0.0
        %1613 = vmatpush1.msra.mxu0 %v1588
        %1614 = vmatprep.subr.mxu0 0.0
        %1615 = vmatpush1.msra.mxu0 %v1589
        %1616 = vmatprep.subr.mxu0 0.0
        %1617 = vmatpush1.msra.mxu0 %v1590
        %1618 = vmatprep.subr.mxu0 0.0
        %1619 = vmatpush1.msra.mxu0 %v1591
        %1620 = vmatprep.subr.mxu0 0.0
        %1621 = vmatpush1.msra.mxu0 %v1592
        %1622 = vmatprep.subr.mxu0 0.0
        %1623 = vmatpush1.msra.mxu0 %v1593
        %1624 = vmatprep.subr.mxu0 0.0
        %1625 = vmatpush1.msra.mxu0 %v1594
        %1626 = vmatprep.subr.mxu0 0.0
        %1627 = vmatpush1.msra.mxu0 %v1595
        %1628 = vmatprep.subr.mxu0 0.0
        %1629 = vmatpush1.msra.mxu0 0.0
        %1630 = vmatprep.subr.mxu0 0.0
        %1631 = vmatpush1.msra.mxu0 0.0
        %1632 = vmatprep.subr.mxu0 0.0
        %1633 = vmatpush1.msra.mxu0 0.0
        %1634 = vmatprep.subr.mxu0 0.0
        %1635 = vmatpush1.msra.mxu0 0.0
        %1636 = vmatprep.subr.mxu0 0.0
        %1637 = vmatpush1.msra.mxu0 0.0
        %1638 = vmatprep.subr.mxu0 0.0
        %1639 = vmatpush1.msra.mxu0 0.0
        %1640 = vmatprep.subr.mxu0 0.0
        %1641 = vmatpush1.msra.mxu0 0.0
        %1642 = vmatprep.subr.mxu0 0.0
        %1643 = vmatpush1.msra.mxu0 0.0
        %1644 = vmatprep.subr.mxu0 0.0
        %1645 = vmatpush1.msra.mxu0 0.0
        %1646 = vmatprep.subr.mxu0 0.0
        %1647 = vmatpush1.msra.mxu0 0.0
        %1648 = vmatprep.subr.mxu0 0.0
        %1649 = vmatpush1.msra.mxu0 0.0
        %1650 = vmatprep.subr.mxu0 0.0
        %1651 = vmatpush1.msra.mxu0 0.0
        %1652 = vmatprep.subr.mxu0 0.0
        %1653 = vmatpush1.msra.mxu0 0.0
        %1654 = vmatprep.subr.mxu0 0.0
        %1655 = vmatpush1.msra.mxu0 0.0
        %1656 = vmatprep.subr.mxu0 0.0
        %1657 = vmatpush1.msra.mxu0 0.0
        %1658 = vmatprep.subr.mxu0 0.0
        %1659 = vmatpush1.msra.mxu0 0.0
        %1660 = vmatprep.mubr.f32.mxu0 0.0
        %1661 = vmatmul.mubr.f32.gmra.mrb[0].mxu0 %v1237
        %v1662 = vpop.f32.mrb[0].mxu0
        %v1663 = vadd.f32 0.0, %v1662
        %v1664 = vpop.f32.mrb[0].mxu0
        %1665 = vdwg.mxu0
        %s1666 = scalar_lea.vmem %s5, 32
        %v1667 = vld [vmem:[%s1666] sm:$0xff]
        %v1668 = vld [vmem:[%s1666 + $0x8] sm:$0xff]
        %v1670 = vsel %vm1416, %v1667, 0
        %v1673 = vsel %vm1416, %v1668, 0
        %1675 = vmatprep.subr.mxu0 0.0
        %1676 = vmatpush1.msra.mxu0 %v1663
        %1677 = vmatprep.subr.mxu0 0.0
        %1678 = vmatpush1.msra.mxu0 0.0
        %1679 = vmatprep.subr.mxu0 0.0
        %1680 = vmatpush1.msra.mxu0 0.0
        %1681 = vmatprep.subr.mxu0 0.0
        %1682 = vmatpush1.msra.mxu0 0.0
        %1683 = vmatprep.subr.mxu0 0.0
        %1684 = vmatpush1.msra.mxu0 0.0
        %1685 = vmatprep.subr.mxu0 0.0
        %1686 = vmatpush1.msra.mxu0 0.0
        %1687 = vmatprep.subr.mxu0 0.0
        %1688 = vmatpush1.msra.mxu0 0.0
        %1689 = vmatprep.subr.mxu0 0.0
        %1690 = vmatpush1.msra.mxu0 0.0
        %1691 = vmatprep.subr.mxu0 0.0
        %1692 = vmatpush1.msra.mxu0 0.0
        %1693 = vmatprep.subr.mxu0 0.0
        %1694 = vmatpush1.msra.mxu0 0.0
        %1695 = vmatprep.subr.mxu0 0.0
        %1696 = vmatpush1.msra.mxu0 0.0
        %1697 = vmatprep.subr.mxu0 0.0
        %1698 = vmatpush1.msra.mxu0 0.0
        %1699 = vmatprep.subr.mxu0 0.0
        %1700 = vmatpush1.msra.mxu0 0.0
        %1701 = vmatprep.subr.mxu0 0.0
        %1702 = vmatpush1.msra.mxu0 0.0
        %1703 = vmatprep.subr.mxu0 0.0
        %1704 = vmatpush1.msra.mxu0 0.0
        %1705 = vmatprep.subr.mxu0 0.0
        %1706 = vmatpush1.msra.mxu0 0.0
        %1707 = vmatprep.subr.mxu0 0.0
        %1708 = vmatpush1.msra.mxu0 0.0
        %1709 = vmatprep.subr.mxu0 0.0
        %1710 = vmatpush1.msra.mxu0 0.0
        %1711 = vmatprep.subr.mxu0 0.0
        %1712 = vmatpush1.msra.mxu0 0.0
        %1713 = vmatprep.subr.mxu0 0.0
        %1714 = vmatpush1.msra.mxu0 0.0
        %1715 = vmatprep.subr.mxu0 0.0
        %1716 = vmatpush1.msra.mxu0 0.0
        %1717 = vmatprep.subr.mxu0 0.0
        %1718 = vmatpush1.msra.mxu0 0.0
        %1719 = vmatprep.subr.mxu0 0.0
        %1720 = vmatpush1.msra.mxu0 0.0
        %1721 = vmatprep.subr.mxu0 0.0
        %1722 = vmatpush1.msra.mxu0 0.0
        %1723 = vmatprep.subr.mxu0 0.0
        %1724 = vmatpush1.msra.mxu0 0.0
        %1725 = vmatprep.subr.mxu0 0.0
        %1726 = vmatpush1.msra.mxu0 0.0
        %1727 = vmatprep.subr.mxu0 0.0
        %1728 = vmatpush1.msra.mxu0 0.0
        %1729 = vmatprep.subr.mxu0 0.0
        %1730 = vmatpush1.msra.mxu0 0.0
        %1731 = vmatprep.subr.mxu0 0.0
        %1732 = vmatpush1.msra.mxu0 0.0
        %1733 = vmatprep.subr.mxu0 0.0
        %1734 = vmatpush1.msra.mxu0 0.0
        %1735 = vmatprep.subr.mxu0 0.0
        %1736 = vmatpush1.msra.mxu0 0.0
        %1737 = vmatprep.subr.mxu0 0.0
        %1738 = vmatpush1.msra.mxu0 0.0
        %1739 = vmatprep.mubr.f32.mxu0 0.0
        %1740 = vmatmul.mubr.f32.gmra.mrb[0].mxu0 %v1670
        %v1741 = vpop.f32.mrb[0].mxu0
        %v1742 = vadd.f32 0.0, %v1741
        %v1743 = vpop.f32.mrb[0].mxu0
        %1744 = vmatprep.mubr.f32.mxu0 0.0
        %1745 = vmatmul.mubr.f32.gmra.mrb[0].mxu0 %v1673
        %v1746 = vpop.f32.mrb[0].mxu0
        %v1747 = vadd.f32 0.0, %v1746
        %v1748 = vpop.f32.mrb[0].mxu0
        %1749 = vdwg.mxu0
        %v1750 = vadd.f32 %v1571, %v1742
        %v1751 = vadd.f32 %v1576, %v1747
        %v1752 = vld [vmem:[%s6] sm:$0x1]
        %v1754 = vlaneseq
        %v1755 = vshrl.u32 %v1754, 7
        %v1756 = vsub.s32 0, %v1755
        %v1757 = vrot.slane %v1752, %v1756
        %v1759 = vadd.f32 %v1750, %v1757
        %v1760 = vadd.f32 %v1751, %v1757
        %v1761 = vmax.f32 %v1759, 0.0
        %v1762 = vmax.f32 %v1760, 0.0
        %v1763 = vld [vmem:[%s7] sm:$0xff]
        %v1764 = vld [vmem:[%s7 + $0x8] sm:$0xff]
        %v1765 = vld [vmem:[%s7 + $0x10] sm:$0xff]
        %v1766 = vld [vmem:[%s7 + $0x18] sm:$0xff]
        %v1767 = vld [vmem:[%s7 + $0x20] sm:$0xff]
        %v1768 = vld [vmem:[%s7 + $0x28] sm:$0xff]
        %v1769 = vld [vmem:[%s7 + $0x30] sm:$0xff]
        %v1770 = vld [vmem:[%s7 + $0x38] sm:$0xff]
        %v1771 = vld [vmem:[%s7 + $0x40] sm:$0xff]
        %v1772 = vld [vmem:[%s7 + $0x48] sm:$0xff]
        %v1773 = vld [vmem:[%s7 + $0x50] sm:$0xff]
        %v1774 = vld [vmem:[%s7 + $0x58] sm:$0xff]
        %v1775 = vld [vmem:[%s7 + $0x60] sm:$0xff]
        %v1776 = vld [vmem:[%s7 + $0x68] sm:$0xff]
        %v1777 = vld [vmem:[%s7 + $0x70] sm:$0xff]
        %v1778 = vld [vmem:[%s7 + $0x78] sm:$0xff]
        %1779 = vmatprep.subr.mxu0 0.0
        %1780 = vmatpush1.msra.mxu0 %v1763
        %1781 = vmatprep.subr.mxu0 0.0
        %1782 = vmatpush1.msra.mxu0 %v1764
        %1783 = vmatprep.subr.mxu0 0.0
        %1784 = vmatpush1.msra.mxu0 %v1765
        %1785 = vmatprep.subr.mxu0 0.0
        %1786 = vmatpush1.msra.mxu0 %v1766
        %1787 = vmatprep.subr.mxu0 0.0
        %1788 = vmatpush1.msra.mxu0 %v1767
        %1789 = vmatprep.subr.mxu0 0.0
        %1790 = vmatpush1.msra.mxu0 %v1768
        %1791 = vmatprep.subr.mxu0 0.0
        %1792 = vmatpush1.msra.mxu0 %v1769
        %1793 = vmatprep.subr.mxu0 0.0
        %1794 = vmatpush1.msra.mxu0 %v1770
        %1795 = vmatprep.subr.mxu0 0.0
        %1796 = vmatpush1.msra.mxu0 %v1771
        %1797 = vmatprep.subr.mxu0 0.0
        %1798 = vmatpush1.msra.mxu0 %v1772
        %1799 = vmatprep.subr.mxu0 0.0
        %1800 = vmatpush1.msra.mxu0 %v1773
        %1801 = vmatprep.subr.mxu0 0.0
        %1802 = vmatpush1.msra.mxu0 %v1774
        %1803 = vmatprep.subr.mxu0 0.0
        %1804 = vmatpush1.msra.mxu0 %v1775
        %1805 = vmatprep.subr.mxu0 0.0
        %1806 = vmatpush1.msra.mxu0 %v1776
        %1807 = vmatprep.subr.mxu0 0.0
        %1808 = vmatpush1.msra.mxu0 %v1777
        %1809 = vmatprep.subr.mxu0 0.0
        %1810 = vmatpush1.msra.mxu0 %v1778
        %1811 = vmatprep.subr.mxu0 0.0
        %1812 = vmatpush1.msra.mxu0 0.0
        %1813 = vmatprep.subr.mxu0 0.0
        %1814 = vmatpush1.msra.mxu0 0.0
        %1815 = vmatprep.subr.mxu0 0.0
        %1816 = vmatpush1.msra.mxu0 0.0
        %1817 = vmatprep.subr.mxu0 0.0
        %1818 = vmatpush1.msra.mxu0 0.0
        %1819 = vmatprep.subr.mxu0 0.0
        %1820 = vmatpush1.msra.mxu0 0.0
        %1821 = vmatprep.subr.mxu0 0.0
        %1822 = vmatpush1.msra.mxu0 0.0
        %1823 = vmatprep.subr.mxu0 0.0
        %1824 = vmatpush1.msra.mxu0 0.0
        %1825 = vmatprep.subr.mxu0 0.0
        %1826 = vmatpush1.msra.mxu0 0.0
        %1827 = vmatprep.subr.mxu0 0.0
        %1828 = vmatpush1.msra.mxu0 0.0
        %1829 = vmatprep.subr.mxu0 0.0
        %1830 = vmatpush1.msra.mxu0 0.0
        %1831 = vmatprep.subr.mxu0 0.0
        %1832 = vmatpush1.msra.mxu0 0.0
        %1833 = vmatprep.subr.mxu0 0.0
        %1834 = vmatpush1.msra.mxu0 0.0
        %1835 = vmatprep.subr.mxu0 0.0
        %1836 = vmatpush1.msra.mxu0 0.0
        %1837 = vmatprep.subr.mxu0 0.0
        %1838 = vmatpush1.msra.mxu0 0.0
        %1839 = vmatprep.subr.mxu0 0.0
        %1840 = vmatpush1.msra.mxu0 0.0
        %1841 = vmatprep.subr.mxu0 0.0
        %1842 = vmatpush1.msra.mxu0 0.0
        %1843 = vmatprep.mubr.f32.mxu0 0.0
        %1844 = vmatmul.mubr.f32.gmra.mrb[0].mxu0 %v1761
        %v1845 = vpop.f32.mrb[0].mxu0
        %v1846 = vadd.f32 0.0, %v1845
        %v1847 = vpop.f32.mrb[0].mxu0
        %1848 = vmatprep.mubr.f32.mxu0 0.0
        %1849 = vmatmul.mubr.f32.gmra.mrb[0].mxu0 %v1762
        %v1850 = vpop.f32.mrb[0].mxu0
        %v1851 = vadd.f32 0.0, %v1850
        %v1852 = vpop.f32.mrb[0].mxu0
        %1853 = vdwg.mxu0
        %v1854 = vld [vmem:[%s8] sm:$0xff]
        %v1855 = vld [vmem:[%s8 + $0x8] sm:$0xff]
        %v1856 = vld [vmem:[%s8 + $0x10] sm:$0xff]
        %v1857 = vld [vmem:[%s8 + $0x18] sm:$0xff]
        %s1858 = scalar_lea.vmem %s7, 128
        %v1859 = vld [vmem:[%s1858] sm:$0xff]
        %v1860 = vld [vmem:[%s1858 + $0x8] sm:$0xff]
        %v1861 = vld [vmem:[%s1858 + $0x10] sm:$0xff]
        %v1862 = vld [vmem:[%s1858 + $0x18] sm:$0xff]
        %v1863 = vld [vmem:[%s1858 + $0x20] sm:$0xff]
        %v1864 = vld [vmem:[%s1858 + $0x28] sm:$0xff]
        %v1865 = vld [vmem:[%s1858 + $0x30] sm:$0xff]
        %v1866 = vld [vmem:[%s1858 + $0x38] sm:$0xff]
        %v1867 = vld [vmem:[%s1858 + $0x40] sm:$0xff]
        %v1868 = vld [vmem:[%s1858 + $0x48] sm:$0xff]
        %v1869 = vld [vmem:[%s1858 + $0x50] sm:$0xff]
        %v1870 = vld [vmem:[%s1858 + $0x58] sm:$0xff]
        %v1871 = vld [vmem:[%s1858 + $0x60] sm:$0xff]
        %v1872 = vld [vmem:[%s1858 + $0x68] sm:$0xff]
        %v1873 = vld [vmem:[%s1858 + $0x70] sm:$0xff]
        %v1874 = vld [vmem:[%s1858 + $0x78] sm:$0xff]
        %1875 = vmatprep.subr.mxu0 0.0
        %1876 = vmatpush1.msra.mxu0 %v1859
        %1877 = vmatprep.subr.mxu0 0.0
        %1878 = vmatpush1.msra.mxu0 %v1860
        %1879 = vmatprep.subr.mxu0 0.0
        %1880 = vmatpush1.msra.mxu0 %v1861
        %1881 = vmatprep.subr.mxu0 0.0
        %1882 = vmatpush1.msra.mxu0 %v1862
        %1883 = vmatprep.subr.mxu0 0.0
        %1884 = vmatpush1.msra.mxu0 %v1863
        %1885 = vmatprep.subr.mxu0 0.0
        %1886 = vmatpush1.msra.mxu0 %v1864
        %1887 = vmatprep.subr.mxu0 0.0
        %1888 = vmatpush1.msra.mxu0 %v1865
        %1889 = vmatprep.subr.mxu0 0.0
        %1890 = vmatpush1.msra.mxu0 %v1866
        %1891 = vmatprep.subr.mxu0 0.0
        %1892 = vmatpush1.msra.mxu0 %v1867
        %1893 = vmatprep.subr.mxu0 0.0
        %1894 = vmatpush1.msra.mxu0 %v1868
        %1895 = vmatprep.subr.mxu0 0.0
        %1896 = vmatpush1.msra.mxu0 %v1869
        %1897 = vmatprep.subr.mxu0 0.0
        %1898 = vmatpush1.msra.mxu0 %v1870
        %1899 = vmatprep.subr.mxu0 0.0
        %1900 = vmatpush1.msra.mxu0 %v1871
        %1901 = vmatprep.subr.mxu0 0.0
        %1902 = vmatpush1.msra.mxu0 %v1872
        %1903 = vmatprep.subr.mxu0 0.0
        %1904 = vmatpush1.msra.mxu0 %v1873
        %1905 = vmatprep.subr.mxu0 0.0
        %1906 = vmatpush1.msra.mxu0 %v1874
        %1907 = vmatprep.subr.mxu0 0.0
        %1908 = vmatpush1.msra.mxu0 0.0
        %1909 = vmatprep.subr.mxu0 0.0
        %1910 = vmatpush1.msra.mxu0 0.0
        %1911 = vmatprep.subr.mxu0 0.0
        %1912 = vmatpush1.msra.mxu0 0.0
        %1913 = vmatprep.subr.mxu0 0.0
        %1914 = vmatpush1.msra.mxu0 0.0
        %1915 = vmatprep.subr.mxu0 0.0
        %1916 = vmatpush1.msra.mxu0 0.0
        %1917 = vmatprep.subr.mxu0 0.0
        %1918 = vmatpush1.msra.mxu0 0.0
        %1919 = vmatprep.subr.mxu0 0.0
        %1920 = vmatpush1.msra.mxu0 0.0
        %1921 = vmatprep.subr.mxu0 0.0
        %1922 = vmatpush1.msra.mxu0 0.0
        %1923 = vmatprep.subr.mxu0 0.0
        %1924 = vmatpush1.msra.mxu0 0.0
        %1925 = vmatprep.subr.mxu0 0.0
        %1926 = vmatpush1.msra.mxu0 0.0
        %1927 = vmatprep.subr.mxu0 0.0
        %1928 = vmatpush1.msra.mxu0 0.0
        %1929 = vmatprep.subr.mxu0 0.0
        %1930 = vmatpush1.msra.mxu0 0.0
        %1931 = vmatprep.subr.mxu0 0.0
        %1932 = vmatpush1.msra.mxu0 0.0
        %1933 = vmatprep.subr.mxu0 0.0
        %1934 = vmatpush1.msra.mxu0 0.0
        %1935 = vmatprep.subr.mxu0 0.0
        %1936 = vmatpush1.msra.mxu0 0.0
        %1937 = vmatprep.subr.mxu0 0.0
        %1938 = vmatpush1.msra.mxu0 0.0
        %1939 = vmatprep.mubr.f32.mxu0 0.0
        %1940 = vmatmul.mubr.f32.gmra.mrb[0].mxu0 %v1761
        %v1941 = vpop.f32.mrb[0].mxu0
        %v1942 = vadd.f32 0.0, %v1941
        %v1943 = vpop.f32.mrb[0].mxu0
        %1944 = vmatprep.mubr.f32.mxu0 0.0
        %1945 = vmatmul.mubr.f32.gmra.mrb[0].mxu0 %v1762
        %v1946 = vpop.f32.mrb[0].mxu0
        %v1947 = vadd.f32 0.0, %v1946
        %v1948 = vpop.f32.mrb[0].mxu0
        %1949 = vdwg.mxu0
        %s1950 = scalar_lea.vmem %s8, 32
        %v1951 = vld [vmem:[%s1950] sm:$0xff]
        %v1952 = vld [vmem:[%s1950 + $0x8] sm:$0xff]
        %v1953 = vld [vmem:[%s1950 + $0x10] sm:$0xff]
        %v1954 = vld [vmem:[%s1950 + $0x18] sm:$0xff]
        %vm1955 = vcmask 130048
        %v1957 = vsel %vm1955, %v1951, 0
        %v1960 = vsel %vm1955, %v1952, 0
        %v1963 = vsel %vm1955, %v1953, 0
        %v1966 = vsel %vm1955, %v1954, 0
        %1968 = vmatprep.subr.mxu0 0.0
        %1969 = vmatpush1.msra.mxu0 %v1942
        %1970 = vmatprep.subr.mxu0 0.0
        %1971 = vmatpush1.msra.mxu0 %v1947
        %1972 = vmatprep.subr.mxu0 0.0
        %1973 = vmatpush1.msra.mxu0 0.0
        %1974 = vmatprep.subr.mxu0 0.0
        %1975 = vmatpush1.msra.mxu0 0.0
        %1976 = vmatprep.subr.mxu0 0.0
        %1977 = vmatpush1.msra.mxu0 0.0
        %1978 = vmatprep.subr.mxu0 0.0
        %1979 = vmatpush1.msra.mxu0 0.0
        %1980 = vmatprep.subr.mxu0 0.0
        %1981 = vmatpush1.msra.mxu0 0.0
        %1982 = vmatprep.subr.mxu0 0.0
        %1983 = vmatpush1.msra.mxu0 0.0
        %1984 = vmatprep.subr.mxu0 0.0
        %1985 = vmatpush1.msra.mxu0 0.0
        %1986 = vmatprep.subr.mxu0 0.0
        %1987 = vmatpush1.msra.mxu0 0.0
        %1988 = vmatprep.subr.mxu0 0.0
        %1989 = vmatpush1.msra.mxu0 0.0
        %1990 = vmatprep.subr.mxu0 0.0
        %1991 = vmatpush1.msra.mxu0 0.0
        %1992 = vmatprep.subr.mxu0 0.0
        %1993 = vmatpush1.msra.mxu0 0.0
        %1994 = vmatprep.subr.mxu0 0.0
        %1995 = vmatpush1.msra.mxu0 0.0
        %1996 = vmatprep.subr.mxu0 0.0
        %1997 = vmatpush1.msra.mxu0 0.0
        %1998 = vmatprep.subr.mxu0 0.0
        %1999 = vmatpush1.msra.mxu0 0.0
        %2000 = vmatprep.subr.mxu0 0.0
        %2001 = vmatpush1.msra.mxu0 0.0
        %2002 = vmatprep.subr.mxu0 0.0
        %2003 = vmatpush1.msra.mxu0 0.0
        %2004 = vmatprep.subr.mxu0 0.0
        %2005 = vmatpush1.msra.mxu0 0.0
        %2006 = vmatprep.subr.mxu0 0.0
        %2007 = vmatpush1.msra.mxu0 0.0
        %2008 = vmatprep.subr.mxu0 0.0
        %2009 = vmatpush1.msra.mxu0 0.0
        %2010 = vmatprep.subr.mxu0 0.0
        %2011 = vmatpush1.msra.mxu0 0.0
        %2012 = vmatprep.subr.mxu0 0.0
        %2013 = vmatpush1.msra.mxu0 0.0
        %2014 = vmatprep.subr.mxu0 0.0
        %2015 = vmatpush1.msra.mxu0 0.0
        %2016 = vmatprep.subr.mxu0 0.0
        %2017 = vmatpush1.msra.mxu0 0.0
        %2018 = vmatprep.subr.mxu0 0.0
        %2019 = vmatpush1.msra.mxu0 0.0
        %2020 = vmatprep.subr.mxu0 0.0
        %2021 = vmatpush1.msra.mxu0 0.0
        %2022 = vmatprep.subr.mxu0 0.0
        %2023 = vmatpush1.msra.mxu0 0.0
        %2024 = vmatprep.subr.mxu0 0.0
        %2025 = vmatpush1.msra.mxu0 0.0
        %2026 = vmatprep.subr.mxu0 0.0
        %2027 = vmatpush1.msra.mxu0 0.0
        %2028 = vmatprep.subr.mxu0 0.0
        %2029 = vmatpush1.msra.mxu0 0.0
        %2030 = vmatprep.subr.mxu0 0.0
        %2031 = vmatpush1.msra.mxu0 0.0
        %2032 = vmatprep.mubr.f32.mxu0 0.0
        %2033 = vmatmul.mubr.f32.gmra.mrb[0].mxu0 %v1957
        %v2034 = vpop.f32.mrb[0].mxu0
        %v2035 = vadd.f32 0.0, %v2034
        %v2036 = vpop.f32.mrb[0].mxu0
        %2037 = vmatprep.mubr.f32.mxu0 0.0
        %2038 = vmatmul.mubr.f32.gmra.mrb[0].mxu0 %v1960
        %v2039 = vpop.f32.mrb[0].mxu0
        %v2040 = vadd.f32 0.0, %v2039
        %v2041 = vpop.f32.mrb[0].mxu0
        %2042 = vmatprep.mubr.f32.mxu0 0.0
        %2043 = vmatmul.mubr.f32.gmra.mrb[0].mxu0 %v1963
        %v2044 = vpop.f32.mrb[0].mxu0
        %v2045 = vadd.f32 0.0, %v2044
        %v2046 = vpop.f32.mrb[0].mxu0
        %2047 = vmatprep.mubr.f32.mxu0 0.0
        %2048 = vmatmul.mubr.f32.gmra.mrb[0].mxu0 %v1966
        %v2049 = vpop.f32.mrb[0].mxu0
        %v2050 = vadd.f32 0.0, %v2049
        %v2051 = vpop.f32.mrb[0].mxu0
        %2052 = vdwg.mxu0
        %v2054 = vsel %vm1955, %v1854, 0
        %v2057 = vsel %vm1955, %v1855, 0
        %v2060 = vsel %vm1955, %v1856, 0
        %v2063 = vsel %vm1955, %v1857, 0
        %2065 = vmatprep.subr.mxu0 0.0
        %2066 = vmatpush1.msra.mxu0 %v1846
        %2067 = vmatprep.subr.mxu0 0.0
        %2068 = vmatpush1.msra.mxu0 %v1851
        %2069 = vmatprep.subr.mxu0 0.0
        %2070 = vmatpush1.msra.mxu0 0.0
        %2071 = vmatprep.subr.mxu0 0.0
        %2072 = vmatpush1.msra.mxu0 0.0
        %2073 = vmatprep.subr.mxu0 0.0
        %2074 = vmatpush1.msra.mxu0 0.0
        %2075 = vmatprep.subr.mxu0 0.0
        %2076 = vmatpush1.msra.mxu0 0.0
        %2077 = vmatprep.subr.mxu0 0.0
        %2078 = vmatpush1.msra.mxu0 0.0
        %2079 = vmatprep.subr.mxu0 0.0
        %2080 = vmatpush1.msra.mxu0 0.0
        %2081 = vmatprep.subr.mxu0 0.0
        %2082 = vmatpush1.msra.mxu0 0.0
        %2083 = vmatprep.subr.mxu0 0.0
        %2084 = vmatpush1.msra.mxu0 0.0
        %2085 = vmatprep.subr.mxu0 0.0
        %2086 = vmatpush1.msra.mxu0 0.0
        %2087 = vmatprep.subr.mxu0 0.0
        %2088 = vmatpush1.msra.mxu0 0.0
        %2089 = vmatprep.subr.mxu0 0.0
        %2090 = vmatpush1.msra.mxu0 0.0
        %2091 = vmatprep.subr.mxu0 0.0
        %2092 = vmatpush1.msra.mxu0 0.0
        %2093 = vmatprep.subr.mxu0 0.0
        %2094 = vmatpush1.msra.mxu0 0.0
        %2095 = vmatprep.subr.mxu0 0.0
        %2096 = vmatpush1.msra.mxu0 0.0
        %2097 = vmatprep.subr.mxu0 0.0
        %2098 = vmatpush1.msra.mxu0 0.0
        %2099 = vmatprep.subr.mxu0 0.0
        %2100 = vmatpush1.msra.mxu0 0.0
        %2101 = vmatprep.subr.mxu0 0.0
        %2102 = vmatpush1.msra.mxu0 0.0
        %2103 = vmatprep.subr.mxu0 0.0
        %2104 = vmatpush1.msra.mxu0 0.0
        %2105 = vmatprep.subr.mxu0 0.0
        %2106 = vmatpush1.msra.mxu0 0.0
        %2107 = vmatprep.subr.mxu0 0.0
        %2108 = vmatpush1.msra.mxu0 0.0
        %2109 = vmatprep.subr.mxu0 0.0
        %2110 = vmatpush1.msra.mxu0 0.0
        %2111 = vmatprep.subr.mxu0 0.0
        %2112 = vmatpush1.msra.mxu0 0.0
        %2113 = vmatprep.subr.mxu0 0.0
        %2114 = vmatpush1.msra.mxu0 0.0
        %2115 = vmatprep.subr.mxu0 0.0
        %2116 = vmatpush1.msra.mxu0 0.0
        %2117 = vmatprep.subr.mxu0 0.0
        %2118 = vmatpush1.msra.mxu0 0.0
        %2119 = vmatprep.subr.mxu0 0.0
        %2120 = vmatpush1.msra.mxu0 0.0
        %2121 = vmatprep.subr.mxu0 0.0
        %2122 = vmatpush1.msra.mxu0 0.0
        %2123 = vmatprep.subr.mxu0 0.0
        %2124 = vmatpush1.msra.mxu0 0.0
        %2125 = vmatprep.subr.mxu0 0.0
        %2126 = vmatpush1.msra.mxu0 0.0
        %2127 = vmatprep.subr.mxu0 0.0
        %2128 = vmatpush1.msra.mxu0 0.0
        %2129 = vmatprep.mubr.f32.mxu0 0.0
        %2130 = vmatmul.mubr.f32.gmra.mrb[0].mxu0 %v2054
        %v2131 = vpop.f32.mrb[0].mxu0
        %v2132 = vadd.f32 %v2035, %v2131
        %v2133 = vpop.f32.mrb[0].mxu0
        %2134 = vmatprep.mubr.f32.mxu0 0.0
        %2135 = vmatmul.mubr.f32.gmra.mrb[0].mxu0 %v2057
        %v2136 = vpop.f32.mrb[0].mxu0
        %v2137 = vadd.f32 %v2040, %v2136
        %v2138 = vpop.f32.mrb[0].mxu0
        %2139 = vmatprep.mubr.f32.mxu0 0.0
        %2140 = vmatmul.mubr.f32.gmra.mrb[0].mxu0 %v2060
        %v2141 = vpop.f32.mrb[0].mxu0
        %v2142 = vadd.f32 %v2045, %v2141
        %v2143 = vpop.f32.mrb[0].mxu0
        %2144 = vmatprep.mubr.f32.mxu0 0.0
        %2145 = vmatmul.mubr.f32.gmra.mrb[0].mxu0 %v2063
        %v2146 = vpop.f32.mrb[0].mxu0
        %v2147 = vadd.f32 %v2050, %v2146
        %v2148 = vpop.f32.mrb[0].mxu0
        %2149 = vdwg.mxu0
        %s2150 = scalar_lea.vmem %s7, 256
        %v2151 = vld [vmem:[%s2150] sm:$0xff]
        %v2152 = vld [vmem:[%s2150 + $0x8] sm:$0xff]
        %v2153 = vld [vmem:[%s2150 + $0x10] sm:$0xff]
        %v2154 = vld [vmem:[%s2150 + $0x18] sm:$0xff]
        %v2155 = vld [vmem:[%s2150 + $0x20] sm:$0xff]
        %v2156 = vld [vmem:[%s2150 + $0x28] sm:$0xff]
        %v2157 = vld [vmem:[%s2150 + $0x30] sm:$0xff]
        %v2158 = vld [vmem:[%s2150 + $0x38] sm:$0xff]
        %v2159 = vld [vmem:[%s2150 + $0x40] sm:$0xff]
        %v2160 = vld [vmem:[%s2150 + $0x48] sm:$0xff]
        %v2161 = vld [vmem:[%s2150 + $0x50] sm:$0xff]
        %v2162 = vld [vmem:[%s2150 + $0x58] sm:$0xff]
        %v2163 = vld [vmem:[%s2150 + $0x60] sm:$0xff]
        %v2164 = vld [vmem:[%s2150 + $0x68] sm:$0xff]
        %v2165 = vld [vmem:[%s2150 + $0x70] sm:$0xff]
        %v2166 = vld [vmem:[%s2150 + $0x78] sm:$0xff]
        %2167 = vmatprep.subr.mxu0 0.0
        %2168 = vmatpush1.msra.mxu0 %v2151
        %2169 = vmatprep.subr.mxu0 0.0
        %2170 = vmatpush1.msra.mxu0 %v2152
        %2171 = vmatprep.subr.mxu0 0.0
        %2172 = vmatpush1.msra.mxu0 %v2153
        %2173 = vmatprep.subr.mxu0 0.0
        %2174 = vmatpush1.msra.mxu0 %v2154
        %2175 = vmatprep.subr.mxu0 0.0
        %2176 = vmatpush1.msra.mxu0 %v2155
        %2177 = vmatprep.subr.mxu0 0.0
        %2178 = vmatpush1.msra.mxu0 %v2156
        %2179 = vmatprep.subr.mxu0 0.0
        %2180 = vmatpush1.msra.mxu0 %v2157
        %2181 = vmatprep.subr.mxu0 0.0
        %2182 = vmatpush1.msra.mxu0 %v2158
        %2183 = vmatprep.subr.mxu0 0.0
        %2184 = vmatpush1.msra.mxu0 %v2159
        %2185 = vmatprep.subr.mxu0 0.0
        %2186 = vmatpush1.msra.mxu0 %v2160
        %2187 = vmatprep.subr.mxu0 0.0
        %2188 = vmatpush1.msra.mxu0 %v2161
        %2189 = vmatprep.subr.mxu0 0.0
        %2190 = vmatpush1.msra.mxu0 %v2162
        %2191 = vmatprep.subr.mxu0 0.0
        %2192 = vmatpush1.msra.mxu0 %v2163
        %2193 = vmatprep.subr.mxu0 0.0
        %2194 = vmatpush1.msra.mxu0 %v2164
        %2195 = vmatprep.subr.mxu0 0.0
        %2196 = vmatpush1.msra.mxu0 %v2165
        %2197 = vmatprep.subr.mxu0 0.0
        %2198 = vmatpush1.msra.mxu0 %v2166
        %2199 = vmatprep.subr.mxu0 0.0
        %2200 = vmatpush1.msra.mxu0 0.0
        %2201 = vmatprep.subr.mxu0 0.0
        %2202 = vmatpush1.msra.mxu0 0.0
        %2203 = vmatprep.subr.mxu0 0.0
        %2204 = vmatpush1.msra.mxu0 0.0
        %2205 = vmatprep.subr.mxu0 0.0
        %2206 = vmatpush1.msra.mxu0 0.0
        %2207 = vmatprep.subr.mxu0 0.0
        %2208 = vmatpush1.msra.mxu0 0.0
        %2209 = vmatprep.subr.mxu0 0.0
        %2210 = vmatpush1.msra.mxu0 0.0
        %2211 = vmatprep.subr.mxu0 0.0
        %2212 = vmatpush1.msra.mxu0 0.0
        %2213 = vmatprep.subr.mxu0 0.0
        %2214 = vmatpush1.msra.mxu0 0.0
        %2215 = vmatprep.subr.mxu0 0.0
        %2216 = vmatpush1.msra.mxu0 0.0
        %2217 = vmatprep.subr.mxu0 0.0
        %2218 = vmatpush1.msra.mxu0 0.0
        %2219 = vmatprep.subr.mxu0 0.0
        %2220 = vmatpush1.msra.mxu0 0.0
        %2221 = vmatprep.subr.mxu0 0.0
        %2222 = vmatpush1.msra.mxu0 0.0
        %2223 = vmatprep.subr.mxu0 0.0
        %2224 = vmatpush1.msra.mxu0 0.0
        %2225 = vmatprep.subr.mxu0 0.0
        %2226 = vmatpush1.msra.mxu0 0.0
        %2227 = vmatprep.subr.mxu0 0.0
        %2228 = vmatpush1.msra.mxu0 0.0
        %2229 = vmatprep.subr.mxu0 0.0
        %2230 = vmatpush1.msra.mxu0 0.0
        %2231 = vmatprep.mubr.f32.mxu0 0.0
        %2232 = vmatmul.mubr.f32.gmra.mrb[0].mxu0 %v1761
        %v2233 = vpop.f32.mrb[0].mxu0
        %v2234 = vadd.f32 0.0, %v2233
        %v2235 = vpop.f32.mrb[0].mxu0
        %2236 = vmatprep.mubr.f32.mxu0 0.0
        %2237 = vmatmul.mubr.f32.gmra.mrb[0].mxu0 %v1762
        %v2238 = vpop.f32.mrb[0].mxu0
        %v2239 = vadd.f32 0.0, %v2238
        %v2240 = vpop.f32.mrb[0].mxu0
        %2241 = vdwg.mxu0
        %s2242 = scalar_lea.vmem %s8, 64
        %v2243 = vld [vmem:[%s2242] sm:$0xff]
        %v2244 = vld [vmem:[%s2242 + $0x8] sm:$0xff]
        %v2245 = vld [vmem:[%s2242 + $0x10] sm:$0xff]
        %v2246 = vld [vmem:[%s2242 + $0x18] sm:$0xff]
        %v2248 = vsel %vm1955, %v2243, 0
        %v2251 = vsel %vm1955, %v2244, 0
        %v2254 = vsel %vm1955, %v2245, 0
        %v2257 = vsel %vm1955, %v2246, 0
        %2259 = vmatprep.subr.mxu0 0.0
        %2260 = vmatpush1.msra.mxu0 %v2234
        %2261 = vmatprep.subr.mxu0 0.0
        %2262 = vmatpush1.msra.mxu0 %v2239
        %2263 = vmatprep.subr.mxu0 0.0
        %2264 = vmatpush1.msra.mxu0 0.0
        %2265 = vmatprep.subr.mxu0 0.0
        %2266 = vmatpush1.msra.mxu0 0.0
        %2267 = vmatprep.subr.mxu0 0.0
        %2268 = vmatpush1.msra.mxu0 0.0
        %2269 = vmatprep.subr.mxu0 0.0
        %2270 = vmatpush1.msra.mxu0 0.0
        %2271 = vmatprep.subr.mxu0 0.0
        %2272 = vmatpush1.msra.mxu0 0.0
        %2273 = vmatprep.subr.mxu0 0.0
        %2274 = vmatpush1.msra.mxu0 0.0
        %2275 = vmatprep.subr.mxu0 0.0
        %2276 = vmatpush1.msra.mxu0 0.0
        %2277 = vmatprep.subr.mxu0 0.0
        %2278 = vmatpush1.msra.mxu0 0.0
        %2279 = vmatprep.subr.mxu0 0.0
        %2280 = vmatpush1.msra.mxu0 0.0
        %2281 = vmatprep.subr.mxu0 0.0
        %2282 = vmatpush1.msra.mxu0 0.0
        %2283 = vmatprep.subr.mxu0 0.0
        %2284 = vmatpush1.msra.mxu0 0.0
        %2285 = vmatprep.subr.mxu0 0.0
        %2286 = vmatpush1.msra.mxu0 0.0
        %2287 = vmatprep.subr.mxu0 0.0
        %2288 = vmatpush1.msra.mxu0 0.0
        %2289 = vmatprep.subr.mxu0 0.0
        %2290 = vmatpush1.msra.mxu0 0.0
        %2291 = vmatprep.subr.mxu0 0.0
        %2292 = vmatpush1.msra.mxu0 0.0
        %2293 = vmatprep.subr.mxu0 0.0
        %2294 = vmatpush1.msra.mxu0 0.0
        %2295 = vmatprep.subr.mxu0 0.0
        %2296 = vmatpush1.msra.mxu0 0.0
        %2297 = vmatprep.subr.mxu0 0.0
        %2298 = vmatpush1.msra.mxu0 0.0
        %2299 = vmatprep.subr.mxu0 0.0
        %2300 = vmatpush1.msra.mxu0 0.0
        %2301 = vmatprep.subr.mxu0 0.0
        %2302 = vmatpush1.msra.mxu0 0.0
        %2303 = vmatprep.subr.mxu0 0.0
        %2304 = vmatpush1.msra.mxu0 0.0
        %2305 = vmatprep.subr.mxu0 0.0
        %2306 = vmatpush1.msra.mxu0 0.0
        %2307 = vmatprep.subr.mxu0 0.0
        %2308 = vmatpush1.msra.mxu0 0.0
        %2309 = vmatprep.subr.mxu0 0.0
        %2310 = vmatpush1.msra.mxu0 0.0
        %2311 = vmatprep.subr.mxu0 0.0
        %2312 = vmatpush1.msra.mxu0 0.0
        %2313 = vmatprep.subr.mxu0 0.0
        %2314 = vmatpush1.msra.mxu0 0.0
        %2315 = vmatprep.subr.mxu0 0.0
        %2316 = vmatpush1.msra.mxu0 0.0
        %2317 = vmatprep.subr.mxu0 0.0
        %2318 = vmatpush1.msra.mxu0 0.0
        %2319 = vmatprep.subr.mxu0 0.0
        %2320 = vmatpush1.msra.mxu0 0.0
        %2321 = vmatprep.subr.mxu0 0.0
        %2322 = vmatpush1.msra.mxu0 0.0
        %2323 = vmatprep.mubr.f32.mxu0 0.0
        %2324 = vmatmul.mubr.f32.gmra.mrb[0].mxu0 %v2248
        %v2325 = vpop.f32.mrb[0].mxu0
        %v2326 = vadd.f32 0.0, %v2325
        %v2327 = vpop.f32.mrb[0].mxu0
        %2328 = vmatprep.mubr.f32.mxu0 0.0
        %2329 = vmatmul.mubr.f32.gmra.mrb[0].mxu0 %v2251
        %v2330 = vpop.f32.mrb[0].mxu0
        %v2331 = vadd.f32 0.0, %v2330
        %v2332 = vpop.f32.mrb[0].mxu0
        %2333 = vmatprep.mubr.f32.mxu0 0.0
        %2334 = vmatmul.mubr.f32.gmra.mrb[0].mxu0 %v2254
        %v2335 = vpop.f32.mrb[0].mxu0
        %v2336 = vadd.f32 0.0, %v2335
        %v2337 = vpop.f32.mrb[0].mxu0
        %2338 = vmatprep.mubr.f32.mxu0 0.0
        %2339 = vmatmul.mubr.f32.gmra.mrb[0].mxu0 %v2257
        %v2340 = vpop.f32.mrb[0].mxu0
        %v2341 = vadd.f32 0.0, %v2340
        %v2342 = vpop.f32.mrb[0].mxu0
        %2343 = vdwg.mxu0
        %v2344 = vadd.f32 %v2132, %v2326
        %v2345 = vadd.f32 %v2137, %v2331
        %v2346 = vadd.f32 %v2142, %v2336
        %v2347 = vadd.f32 %v2147, %v2341
        %v2348 = vld [vmem:[%s9] sm:$0x1]
        %v2350 = vlaneseq
        %v2351 = vshrl.u32 %v2350, 7
        %v2352 = vsub.s32 0, %v2351
        %v2353 = vrot.slane %v2348, %v2352
        %v2355 = vadd.f32 %v2344, %v2353
        %v2356 = vadd.f32 %v2345, %v2353
        %v2357 = vadd.f32 %v2346, %v2353
        %v2358 = vadd.f32 %v2347, %v2353
        %v2359 = vmax.f32 %v2355, 0.0
        %v2360 = vmax.f32 %v2356, 0.0
        %v2361 = vmax.f32 %v2357, 0.0
        %v2362 = vmax.f32 %v2358, 0.0
        %v2363 = vld [vmem:[%s10] sm:$0xff]
        %v2364 = vld [vmem:[%s10 + $0x8] sm:$0xff]
        %v2365 = vld [vmem:[%s10 + $0x10] sm:$0xff]
        %v2366 = vld [vmem:[%s10 + $0x18] sm:$0xff]
        %v2367 = vld [vmem:[%s10 + $0x20] sm:$0xff]
        %v2368 = vld [vmem:[%s10 + $0x28] sm:$0xff]
        %v2369 = vld [vmem:[%s10 + $0x30] sm:$0xff]
        %v2370 = vld [vmem:[%s10 + $0x38] sm:$0xff]
        %v2371 = vld [vmem:[%s10 + $0x40] sm:$0xff]
        %v2372 = vld [vmem:[%s10 + $0x48] sm:$0xff]
        %v2373 = vld [vmem:[%s10 + $0x50] sm:$0xff]
        %v2374 = vld [vmem:[%s10 + $0x58] sm:$0xff]
        %v2375 = vld [vmem:[%s10 + $0x60] sm:$0xff]
        %v2376 = vld [vmem:[%s10 + $0x68] sm:$0xff]
        %v2377 = vld [vmem:[%s10 + $0x70] sm:$0xff]
        %v2378 = vld [vmem:[%s10 + $0x78] sm:$0xff]
        %v2379 = vld [vmem:[%s10 + $0x80] sm:$0xff]
        %v2380 = vld [vmem:[%s10 + $0x88] sm:$0xff]
        %v2381 = vld [vmem:[%s10 + $0x90] sm:$0xff]
        %v2382 = vld [vmem:[%s10 + $0x98] sm:$0xff]
        %v2383 = vld [vmem:[%s10 + $0xa0] sm:$0xff]
        %v2384 = vld [vmem:[%s10 + $0xa8] sm:$0xff]
        %v2385 = vld [vmem:[%s10 + $0xb0] sm:$0xff]
        %v2386 = vld [vmem:[%s10 + $0xb8] sm:$0xff]
        %v2387 = vld [vmem:[%s10 + $0xc0] sm:$0xff]
        %v2388 = vld [vmem:[%s10 + $0xc8] sm:$0xff]
        %v2389 = vld [vmem:[%s10 + $0xd0] sm:$0xff]
        %v2390 = vld [vmem:[%s10 + $0xd8] sm:$0xff]
        %v2391 = vld [vmem:[%s10 + $0xe0] sm:$0xff]
        %v2392 = vld [vmem:[%s10 + $0xe8] sm:$0xff]
        %v2393 = vld [vmem:[%s10 + $0xf0] sm:$0xff]
        %v2394 = vld [vmem:[%s10 + $0xf8] sm:$0xff]
        %2395 = vmatprep.subr.mxu0 %v2364
        %2396 = vmatpush1.msra.mxu0 %v2363
        %2397 = vmatprep.subr.mxu0 %v2366
        %2398 = vmatpush1.msra.mxu0 %v2365
        %2399 = vmatprep.subr.mxu0 %v2368
        %2400 = vmatpush1.msra.mxu0 %v2367
        %2401 = vmatprep.subr.mxu0 %v2370
        %2402 = vmatpush1.msra.mxu0 %v2369
        %2403 = vmatprep.subr.mxu0 %v2372
        %2404 = vmatpush1.msra.mxu0 %v2371
        %2405 = vmatprep.subr.mxu0 %v2374
        %2406 = vmatpush1.msra.mxu0 %v2373
        %2407 = vmatprep.subr.mxu0 %v2376
        %2408 = vmatpush1.msra.mxu0 %v2375
        %2409 = vmatprep.subr.mxu0 %v2378
        %2410 = vmatpush1.msra.mxu0 %v2377
        %2411 = vmatprep.subr.mxu0 %v2380
        %2412 = vmatpush1.msra.mxu0 %v2379
        %2413 = vmatprep.subr.mxu0 %v2382
        %2414 = vmatpush1.msra.mxu0 %v2381
        %2415 = vmatprep.subr.mxu0 %v2384
        %2416 = vmatpush1.msra.mxu0 %v2383
        %2417 = vmatprep.subr.mxu0 %v2386
        %2418 = vmatpush1.msra.mxu0 %v2385
        %2419 = vmatprep.subr.mxu0 %v2388
        %2420 = vmatpush1.msra.mxu0 %v2387
        %2421 = vmatprep.subr.mxu0 %v2390
        %2422 = vmatpush1.msra.mxu0 %v2389
        %2423 = vmatprep.subr.mxu0 %v2392
        %2424 = vmatpush1.msra.mxu0 %v2391
        %2425 = vmatprep.subr.mxu0 %v2394
        %2426 = vmatpush1.msra.mxu0 %v2393
        %2427 = vmatprep.subr.mxu0 0.0
        %2428 = vmatpush1.msra.mxu0 0.0
        %2429 = vmatprep.subr.mxu0 0.0
        %2430 = vmatpush1.msra.mxu0 0.0
        %2431 = vmatprep.subr.mxu0 0.0
        %2432 = vmatpush1.msra.mxu0 0.0
        %2433 = vmatprep.subr.mxu0 0.0
        %2434 = vmatpush1.msra.mxu0 0.0
        %2435 = vmatprep.subr.mxu0 0.0
        %2436 = vmatpush1.msra.mxu0 0.0
        %2437 = vmatprep.subr.mxu0 0.0
        %2438 = vmatpush1.msra.mxu0 0.0
        %2439 = vmatprep.subr.mxu0 0.0
        %2440 = vmatpush1.msra.mxu0 0.0
        %2441 = vmatprep.subr.mxu0 0.0
        %2442 = vmatpush1.msra.mxu0 0.0
        %2443 = vmatprep.subr.mxu0 0.0
        %2444 = vmatpush1.msra.mxu0 0.0
        %2445 = vmatprep.subr.mxu0 0.0
        %2446 = vmatpush1.msra.mxu0 0.0
        %2447 = vmatprep.subr.mxu0 0.0
        %2448 = vmatpush1.msra.mxu0 0.0
        %2449 = vmatprep.subr.mxu0 0.0
        %2450 = vmatpush1.msra.mxu0 0.0
        %2451 = vmatprep.subr.mxu0 0.0
        %2452 = vmatpush1.msra.mxu0 0.0
        %2453 = vmatprep.subr.mxu0 0.0
        %2454 = vmatpush1.msra.mxu0 0.0
        %2455 = vmatprep.subr.mxu0 0.0
        %2456 = vmatpush1.msra.mxu0 0.0
        %2457 = vmatprep.subr.mxu0 0.0
        %2458 = vmatpush1.msra.mxu0 0.0
        %2459 = vmatprep.mubr.f32.mxu0 0.0
        %2460 = vmatmul.mubr.f32.gmra.mrb[0].mxu0 %v2359
        %v2461 = vpop.f32.mrb[0].mxu0
        %v2462 = vadd.f32 0.0, %v2461
        %v2463 = vpop.f32.mrb[0].mxu0
        %v2464 = vadd.f32 0.0, %v2463
        %2465 = vmatprep.mubr.f32.mxu0 0.0
        %2466 = vmatmul.mubr.f32.gmra.mrb[0].mxu0 %v2360
        %v2467 = vpop.f32.mrb[0].mxu0
        %v2468 = vadd.f32 0.0, %v2467
        %v2469 = vpop.f32.mrb[0].mxu0
        %v2470 = vadd.f32 0.0, %v2469
        %2471 = vmatprep.mubr.f32.mxu0 0.0
        %2472 = vmatmul.mubr.f32.gmra.mrb[0].mxu0 %v2361
        %v2473 = vpop.f32.mrb[0].mxu0
        %v2474 = vadd.f32 0.0, %v2473
        %v2475 = vpop.f32.mrb[0].mxu0
        %v2476 = vadd.f32 0.0, %v2475
        %2477 = vmatprep.mubr.f32.mxu0 0.0
        %2478 = vmatmul.mubr.f32.gmra.mrb[0].mxu0 %v2362
        %v2479 = vpop.f32.mrb[0].mxu0
        %v2480 = vadd.f32 0.0, %v2479
        %v2481 = vpop.f32.mrb[0].mxu0
        %v2482 = vadd.f32 0.0, %v2481
        %2483 = vdwg.mxu0
        %v2484 = vld [vmem:[%s11] sm:$0xff]
        %v2485 = vld [vmem:[%s11 + $0x8] sm:$0xff]
        %v2486 = vld [vmem:[%s11 + $0x10] sm:$0xff]
        %v2487 = vld [vmem:[%s11 + $0x18] sm:$0xff]
        %v2488 = vld [vmem:[%s11 + $0x20] sm:$0xff]
        %v2489 = vld [vmem:[%s11 + $0x28] sm:$0xff]
        %v2490 = vld [vmem:[%s11 + $0x30] sm:$0xff]
        %v2491 = vld [vmem:[%s11 + $0x38] sm:$0xff]
        %s2492 = scalar_lea.vmem %s10, 256
        %v2493 = vld [vmem:[%s2492] sm:$0xff]
        %v2494 = vld [vmem:[%s2492 + $0x8] sm:$0xff]
        %v2495 = vld [vmem:[%s2492 + $0x10] sm:$0xff]
        %v2496 = vld [vmem:[%s2492 + $0x18] sm:$0xff]
        %v2497 = vld [vmem:[%s2492 + $0x20] sm:$0xff]
        %v2498 = vld [vmem:[%s2492 + $0x28] sm:$0xff]
        %v2499 = vld [vmem:[%s2492 + $0x30] sm:$0xff]
        %v2500 = vld [vmem:[%s2492 + $0x38] sm:$0xff]
        %v2501 = vld [vmem:[%s2492 + $0x40] sm:$0xff]
        %v2502 = vld [vmem:[%s2492 + $0x48] sm:$0xff]
        %v2503 = vld [vmem:[%s2492 + $0x50] sm:$0xff]
        %v2504 = vld [vmem:[%s2492 + $0x58] sm:$0xff]
        %v2505 = vld [vmem:[%s2492 + $0x60] sm:$0xff]
        %v2506 = vld [vmem:[%s2492 + $0x68] sm:$0xff]
        %v2507 = vld [vmem:[%s2492 + $0x70] sm:$0xff]
        %v2508 = vld [vmem:[%s2492 + $0x78] sm:$0xff]
        %v2509 = vld [vmem:[%s2492 + $0x80] sm:$0xff]
        %v2510 = vld [vmem:[%s2492 + $0x88] sm:$0xff]
        %v2511 = vld [vmem:[%s2492 + $0x90] sm:$0xff]
        %v2512 = vld [vmem:[%s2492 + $0x98] sm:$0xff]
        %v2513 = vld [vmem:[%s2492 + $0xa0] sm:$0xff]
        %v2514 = vld [vmem:[%s2492 + $0xa8] sm:$0xff]
        %v2515 = vld [vmem:[%s2492 + $0xb0] sm:$0xff]
        %v2516 = vld [vmem:[%s2492 + $0xb8] sm:$0xff]
        %v2517 = vld [vmem:[%s2492 + $0xc0] sm:$0xff]
        %v2518 = vld [vmem:[%s2492 + $0xc8] sm:$0xff]
        %v2519 = vld [vmem:[%s2492 + $0xd0] sm:$0xff]
        %v2520 = vld [vmem:[%s2492 + $0xd8] sm:$0xff]
        %v2521 = vld [vmem:[%s2492 + $0xe0] sm:$0xff]
        %v2522 = vld [vmem:[%s2492 + $0xe8] sm:$0xff]
        %v2523 = vld [vmem:[%s2492 + $0xf0] sm:$0xff]
        %v2524 = vld [vmem:[%s2492 + $0xf8] sm:$0xff]
        %2525 = vmatprep.subr.mxu0 %v2494
        %2526 = vmatpush1.msra.mxu0 %v2493
        %2527 = vmatprep.subr.mxu0 %v2496
        %2528 = vmatpush1.msra.mxu0 %v2495
        %2529 = vmatprep.subr.mxu0 %v2498
        %2530 = vmatpush1.msra.mxu0 %v2497
        %2531 = vmatprep.subr.mxu0 %v2500
        %2532 = vmatpush1.msra.mxu0 %v2499
        %2533 = vmatprep.subr.mxu0 %v2502
        %2534 = vmatpush1.msra.mxu0 %v2501
        %2535 = vmatprep.subr.mxu0 %v2504
        %2536 = vmatpush1.msra.mxu0 %v2503
        %2537 = vmatprep.subr.mxu0 %v2506
        %2538 = vmatpush1.msra.mxu0 %v2505
        %2539 = vmatprep.subr.mxu0 %v2508
        %2540 = vmatpush1.msra.mxu0 %v2507
        %2541 = vmatprep.subr.mxu0 %v2510
        %2542 = vmatpush1.msra.mxu0 %v2509
        %2543 = vmatprep.subr.mxu0 %v2512
        %2544 = vmatpush1.msra.mxu0 %v2511
        %2545 = vmatprep.subr.mxu0 %v2514
        %2546 = vmatpush1.msra.mxu0 %v2513
        %2547 = vmatprep.subr.mxu0 %v2516
        %2548 = vmatpush1.msra.mxu0 %v2515
        %2549 = vmatprep.subr.mxu0 %v2518
        %2550 = vmatpush1.msra.mxu0 %v2517
        %2551 = vmatprep.subr.mxu0 %v2520
        %2552 = vmatpush1.msra.mxu0 %v2519
        %2553 = vmatprep.subr.mxu0 %v2522
        %2554 = vmatpush1.msra.mxu0 %v2521
        %2555 = vmatprep.subr.mxu0 %v2524
        %2556 = vmatpush1.msra.mxu0 %v2523
        %2557 = vmatprep.subr.mxu0 0.0
        %2558 = vmatpush1.msra.mxu0 0.0
        %2559 = vmatprep.subr.mxu0 0.0
        %2560 = vmatpush1.msra.mxu0 0.0
        %2561 = vmatprep.subr.mxu0 0.0
        %2562 = vmatpush1.msra.mxu0 0.0
        %2563 = vmatprep.subr.mxu0 0.0
        %2564 = vmatpush1.msra.mxu0 0.0
        %2565 = vmatprep.subr.mxu0 0.0
        %2566 = vmatpush1.msra.mxu0 0.0
        %2567 = vmatprep.subr.mxu0 0.0
        %2568 = vmatpush1.msra.mxu0 0.0
        %2569 = vmatprep.subr.mxu0 0.0
        %2570 = vmatpush1.msra.mxu0 0.0
        %2571 = vmatprep.subr.mxu0 0.0
        %2572 = vmatpush1.msra.mxu0 0.0
        %2573 = vmatprep.subr.mxu0 0.0
        %2574 = vmatpush1.msra.mxu0 0.0
        %2575 = vmatprep.subr.mxu0 0.0
        %2576 = vmatpush1.msra.mxu0 0.0
        %2577 = vmatprep.subr.mxu0 0.0
        %2578 = vmatpush1.msra.mxu0 0.0
        %2579 = vmatprep.subr.mxu0 0.0
        %2580 = vmatpush1.msra.mxu0 0.0
        %2581 = vmatprep.subr.mxu0 0.0
        %2582 = vmatpush1.msra.mxu0 0.0
        %2583 = vmatprep.subr.mxu0 0.0
        %2584 = vmatpush1.msra.mxu0 0.0
        %2585 = vmatprep.subr.mxu0 0.0
        %2586 = vmatpush1.msra.mxu0 0.0
        %2587 = vmatprep.subr.mxu0 0.0
        %2588 = vmatpush1.msra.mxu0 0.0
        %2589 = vmatprep.mubr.f32.mxu0 0.0
        %2590 = vmatmul.mubr.f32.gmra.mrb[0].mxu0 %v2359
        %v2591 = vpop.f32.mrb[0].mxu0
        %v2592 = vadd.f32 0.0, %v2591
        %v2593 = vpop.f32.mrb[0].mxu0
        %v2594 = vadd.f32 0.0, %v2593
        %2595 = vmatprep.mubr.f32.mxu0 0.0
        %2596 = vmatmul.mubr.f32.gmra.mrb[0].mxu0 %v2360
        %v2597 = vpop.f32.mrb[0].mxu0
        %v2598 = vadd.f32 0.0, %v2597
        %v2599 = vpop.f32.mrb[0].mxu0
        %v2600 = vadd.f32 0.0, %v2599
        %2601 = vmatprep.mubr.f32.mxu0 0.0
        %2602 = vmatmul.mubr.f32.gmra.mrb[0].mxu0 %v2361
        %v2603 = vpop.f32.mrb[0].mxu0
        %v2604 = vadd.f32 0.0, %v2603
        %v2605 = vpop.f32.mrb[0].mxu0
        %v2606 = vadd.f32 0.0, %v2605
        %2607 = vmatprep.mubr.f32.mxu0 0.0
        %2608 = vmatmul.mubr.f32.gmra.mrb[0].mxu0 %v2362
        %v2609 = vpop.f32.mrb[0].mxu0
        %v2610 = vadd.f32 0.0, %v2609
        %v2611 = vpop.f32.mrb[0].mxu0
        %v2612 = vadd.f32 0.0, %v2611
        %2613 = vdwg.mxu0
        %s2614 = scalar_lea.vmem %s11, 64
        %v2615 = vld [vmem:[%s2614] sm:$0xff]
        %v2616 = vld [vmem:[%s2614 + $0x8] sm:$0xff]
        %v2617 = vld [vmem:[%s2614 + $0x10] sm:$0xff]
        %v2618 = vld [vmem:[%s2614 + $0x18] sm:$0xff]
        %v2619 = vld [vmem:[%s2614 + $0x20] sm:$0xff]
        %v2620 = vld [vmem:[%s2614 + $0x28] sm:$0xff]
        %v2621 = vld [vmem:[%s2614 + $0x30] sm:$0xff]
        %v2622 = vld [vmem:[%s2614 + $0x38] sm:$0xff]
        %vm2623 = vcmask 261120
        %v2625 = vsel %vm2623, %v2615, 0
        %v2628 = vsel %vm2623, %v2616, 0
        %v2631 = vsel %vm2623, %v2617, 0
        %v2634 = vsel %vm2623, %v2618, 0
        %v2637 = vsel %vm2623, %v2619, 0
        %v2640 = vsel %vm2623, %v2620, 0
        %v2643 = vsel %vm2623, %v2621, 0
        %v2646 = vsel %vm2623, %v2622, 0
        %2648 = vmatprep.subr.mxu0 %v2594
        %2649 = vmatpush1.msra.mxu0 %v2592
        %2650 = vmatprep.subr.mxu0 %v2600
        %2651 = vmatpush1.msra.mxu0 %v2598
        %2652 = vmatprep.subr.mxu0 %v2606
        %2653 = vmatpush1.msra.mxu0 %v2604
        %2654 = vmatprep.subr.mxu0 %v2612
        %2655 = vmatpush1.msra.mxu0 %v2610
        %2656 = vmatprep.subr.mxu0 0.0
        %2657 = vmatpush1.msra.mxu0 0.0
        %2658 = vmatprep.subr.mxu0 0.0
        %2659 = vmatpush1.msra.mxu0 0.0
        %2660 = vmatprep.subr.mxu0 0.0
        %2661 = vmatpush1.msra.mxu0 0.0
        %2662 = vmatprep.subr.mxu0 0.0
        %2663 = vmatpush1.msra.mxu0 0.0
        %2664 = vmatprep.subr.mxu0 0.0
        %2665 = vmatpush1.msra.mxu0 0.0
        %2666 = vmatprep.subr.mxu0 0.0
        %2667 = vmatpush1.msra.mxu0 0.0
        %2668 = vmatprep.subr.mxu0 0.0
        %2669 = vmatpush1.msra.mxu0 0.0
        %2670 = vmatprep.subr.mxu0 0.0
        %2671 = vmatpush1.msra.mxu0 0.0
        %2672 = vmatprep.subr.mxu0 0.0
        %2673 = vmatpush1.msra.mxu0 0.0
        %2674 = vmatprep.subr.mxu0 0.0
        %2675 = vmatpush1.msra.mxu0 0.0
        %2676 = vmatprep.subr.mxu0 0.0
        %2677 = vmatpush1.msra.mxu0 0.0
        %2678 = vmatprep.subr.mxu0 0.0
        %2679 = vmatpush1.msra.mxu0 0.0
        %2680 = vmatprep.subr.mxu0 0.0
        %2681 = vmatpush1.msra.mxu0 0.0
        %2682 = vmatprep.subr.mxu0 0.0
        %2683 = vmatpush1.msra.mxu0 0.0
        %2684 = vmatprep.subr.mxu0 0.0
        %2685 = vmatpush1.msra.mxu0 0.0
        %2686 = vmatprep.subr.mxu0 0.0
        %2687 = vmatpush1.msra.mxu0 0.0
        %2688 = vmatprep.subr.mxu0 0.0
        %2689 = vmatpush1.msra.mxu0 0.0
        %2690 = vmatprep.subr.mxu0 0.0
        %2691 = vmatpush1.msra.mxu0 0.0
        %2692 = vmatprep.subr.mxu0 0.0
        %2693 = vmatpush1.msra.mxu0 0.0
        %2694 = vmatprep.subr.mxu0 0.0
        %2695 = vmatpush1.msra.mxu0 0.0
        %2696 = vmatprep.subr.mxu0 0.0
        %2697 = vmatpush1.msra.mxu0 0.0
        %2698 = vmatprep.subr.mxu0 0.0
        %2699 = vmatpush1.msra.mxu0 0.0
        %2700 = vmatprep.subr.mxu0 0.0
        %2701 = vmatpush1.msra.mxu0 0.0
        %2702 = vmatprep.subr.mxu0 0.0
        %2703 = vmatpush1.msra.mxu0 0.0
        %2704 = vmatprep.subr.mxu0 0.0
        %2705 = vmatpush1.msra.mxu0 0.0
        %2706 = vmatprep.subr.mxu0 0.0
        %2707 = vmatpush1.msra.mxu0 0.0
        %2708 = vmatprep.subr.mxu0 0.0
        %2709 = vmatpush1.msra.mxu0 0.0
        %2710 = vmatprep.subr.mxu0 0.0
        %2711 = vmatpush1.msra.mxu0 0.0
        %2712 = vmatprep.mubr.f32.mxu0 0.0
        %2713 = vmatmul.mubr.f32.gmra.mrb[0].mxu0 %v2625
        %v2714 = vpop.f32.mrb[0].mxu0
        %v2715 = vadd.f32 0.0, %v2714
        %v2716 = vpop.f32.mrb[0].mxu0
        %v2717 = vadd.f32 0.0, %v2716
        %2718 = vmatprep.mubr.f32.mxu0 0.0
        %2719 = vmatmul.mubr.f32.gmra.mrb[0].mxu0 %v2628
        %v2720 = vpop.f32.mrb[0].mxu0
        %v2721 = vadd.f32 0.0, %v2720
        %v2722 = vpop.f32.mrb[0].mxu0
        %v2723 = vadd.f32 0.0, %v2722
        %2724 = vmatprep.mubr.f32.mxu0 0.0
        %2725 = vmatmul.mubr.f32.gmra.mrb[0].mxu0 %v2631
        %v2726 = vpop.f32.mrb[0].mxu0
        %v2727 = vadd.f32 0.0, %v2726
        %v2728 = vpop.f32.mrb[0].mxu0
        %v2729 = vadd.f32 0.0, %v2728
        %2730 = vmatprep.mubr.f32.mxu0 0.0
        %2731 = vmatmul.mubr.f32.gmra.mrb[0].mxu0 %v2634
        %v2732 = vpop.f32.mrb[0].mxu0
        %v2733 = vadd.f32 0.0, %v2732
        %v2734 = vpop.f32.mrb[0].mxu0
        %v2735 = vadd.f32 0.0, %v2734
        %2736 = vmatprep.mubr.f32.mxu0 0.0
        %2737 = vmatmul.mubr.f32.gmra.mrb[0].mxu0 %v2637
        %v2738 = vpop.f32.mrb[0].mxu0
        %v2739 = vadd.f32 0.0, %v2738
        %v2740 = vpop.f32.mrb[0].mxu0
        %v2741 = vadd.f32 0.0, %v2740
        %2742 = vmatprep.mubr.f32.mxu0 0.0
        %2743 = vmatmul.mubr.f32.gmra.mrb[0].mxu0 %v2640
        %v2744 = vpop.f32.mrb[0].mxu0
        %v2745 = vadd.f32 0.0, %v2744
        %v2746 = vpop.f32.mrb[0].mxu0
        %v2747 = vadd.f32 0.0, %v2746
        %2748 = vmatprep.mubr.f32.mxu0 0.0
        %2749 = vmatmul.mubr.f32.gmra.mrb[0].mxu0 %v2643
        %v2750 = vpop.f32.mrb[0].mxu0
        %v2751 = vadd.f32 0.0, %v2750
        %v2752 = vpop.f32.mrb[0].mxu0
        %v2753 = vadd.f32 0.0, %v2752
        %2754 = vmatprep.mubr.f32.mxu0 0.0
        %2755 = vmatmul.mubr.f32.gmra.mrb[0].mxu0 %v2646
        %v2756 = vpop.f32.mrb[0].mxu0
        %v2757 = vadd.f32 0.0, %v2756
        %v2758 = vpop.f32.mrb[0].mxu0
        %v2759 = vadd.f32 0.0, %v2758
        %2760 = vdwg.mxu0
        %v2762 = vsel %vm2623, %v2484, 0
        %v2765 = vsel %vm2623, %v2485, 0
        %v2768 = vsel %vm2623, %v2486, 0
        %v2771 = vsel %vm2623, %v2487, 0
        %v2774 = vsel %vm2623, %v2488, 0
        %v2777 = vsel %vm2623, %v2489, 0
        %v2780 = vsel %vm2623, %v2490, 0
        %v2783 = vsel %vm2623, %v2491, 0
        %2785 = vmatprep.subr.mxu0 %v2464
        %2786 = vmatpush1.msra.mxu0 %v2462
        %2787 = vmatprep.subr.mxu0 %v2470
        %2788 = vmatpush1.msra.mxu0 %v2468
        %2789 = vmatprep.subr.mxu0 %v2476
        %2790 = vmatpush1.msra.mxu0 %v2474
        %2791 = vmatprep.subr.mxu0 %v2482
        %2792 = vmatpush1.msra.mxu0 %v2480
        %2793 = vmatprep.subr.mxu0 0.0
        %2794 = vmatpush1.msra.mxu0 0.0
        %2795 = vmatprep.subr.mxu0 0.0
        %2796 = vmatpush1.msra.mxu0 0.0
        %2797 = vmatprep.subr.mxu0 0.0
        %2798 = vmatpush1.msra.mxu0 0.0
        %2799 = vmatprep.subr.mxu0 0.0
        %2800 = vmatpush1.msra.mxu0 0.0
        %2801 = vmatprep.subr.mxu0 0.0
        %2802 = vmatpush1.msra.mxu0 0.0
        %2803 = vmatprep.subr.mxu0 0.0
        %2804 = vmatpush1.msra.mxu0 0.0
        %2805 = vmatprep.subr.mxu0 0.0
        %2806 = vmatpush1.msra.mxu0 0.0
        %2807 = vmatprep.subr.mxu0 0.0
        %2808 = vmatpush1.msra.mxu0 0.0
        %2809 = vmatprep.subr.mxu0 0.0
        %2810 = vmatpush1.msra.mxu0 0.0
        %2811 = vmatprep.subr.mxu0 0.0
        %2812 = vmatpush1.msra.mxu0 0.0
        %2813 = vmatprep.subr.mxu0 0.0
        %2814 = vmatpush1.msra.mxu0 0.0
        %2815 = vmatprep.subr.mxu0 0.0
        %2816 = vmatpush1.msra.mxu0 0.0
        %2817 = vmatprep.subr.mxu0 0.0
        %2818 = vmatpush1.msra.mxu0 0.0
        %2819 = vmatprep.subr.mxu0 0.0
        %2820 = vmatpush1.msra.mxu0 0.0
        %2821 = vmatprep.subr.mxu0 0.0
        %2822 = vmatpush1.msra.mxu0 0.0
        %2823 = vmatprep.subr.mxu0 0.0
        %2824 = vmatpush1.msra.mxu0 0.0
        %2825 = vmatprep.subr.mxu0 0.0
        %2826 = vmatpush1.msra.mxu0 0.0
        %2827 = vmatprep.subr.mxu0 0.0
        %2828 = vmatpush1.msra.mxu0 0.0
        %2829 = vmatprep.subr.mxu0 0.0
        %2830 = vmatpush1.msra.mxu0 0.0
        %2831 = vmatprep.subr.mxu0 0.0
        %2832 = vmatpush1.msra.mxu0 0.0
        %2833 = vmatprep.subr.mxu0 0.0
        %2834 = vmatpush1.msra.mxu0 0.0
        %2835 = vmatprep.subr.mxu0 0.0
        %2836 = vmatpush1.msra.mxu0 0.0
        %2837 = vmatprep.subr.mxu0 0.0
        %2838 = vmatpush1.msra.mxu0 0.0
        %2839 = vmatprep.subr.mxu0 0.0
        %2840 = vmatpush1.msra.mxu0 0.0
        %2841 = vmatprep.subr.mxu0 0.0
        %2842 = vmatpush1.msra.mxu0 0.0
        %2843 = vmatprep.subr.mxu0 0.0
        %2844 = vmatpush1.msra.mxu0 0.0
        %2845 = vmatprep.subr.mxu0 0.0
        %2846 = vmatpush1.msra.mxu0 0.0
        %2847 = vmatprep.subr.mxu0 0.0
        %2848 = vmatpush1.msra.mxu0 0.0
        %2849 = vmatprep.mubr.f32.mxu0 0.0
        %2850 = vmatmul.mubr.f32.gmra.mrb[0].mxu0 %v2762
        %v2851 = vpop.f32.mrb[0].mxu0
        %v2852 = vadd.f32 %v2715, %v2851
        %v2853 = vpop.f32.mrb[0].mxu0
        %v2854 = vadd.f32 %v2717, %v2853
        %2855 = vmatprep.mubr.f32.mxu0 0.0
        %2856 = vmatmul.mubr.f32.gmra.mrb[0].mxu0 %v2765
        %v2857 = vpop.f32.mrb[0].mxu0
        %v2858 = vadd.f32 %v2721, %v2857
        %v2859 = vpop.f32.mrb[0].mxu0
        %v2860 = vadd.f32 %v2723, %v2859
        %2861 = vmatprep.mubr.f32.mxu0 0.0
        %2862 = vmatmul.mubr.f32.gmra.mrb[0].mxu0 %v2768
        %v2863 = vpop.f32.mrb[0].mxu0
        %v2864 = vadd.f32 %v2727, %v2863
        %v2865 = vpop.f32.mrb[0].mxu0
        %v2866 = vadd.f32 %v2729, %v2865
        %2867 = vmatprep.mubr.f32.mxu0 0.0
        %2868 = vmatmul.mubr.f32.gmra.mrb[0].mxu0 %v2771
        %v2869 = vpop.f32.mrb[0].mxu0
        %v2870 = vadd.f32 %v2733, %v2869
        %v2871 = vpop.f32.mrb[0].mxu0
        %v2872 = vadd.f32 %v2735, %v2871
        %2873 = vmatprep.mubr.f32.mxu0 0.0
        %2874 = vmatmul.mubr.f32.gmra.mrb[0].mxu0 %v2774
        %v2875 = vpop.f32.mrb[0].mxu0
        %v2876 = vadd.f32 %v2739, %v2875
        %v2877 = vpop.f32.mrb[0].mxu0
        %v2878 = vadd.f32 %v2741, %v2877
        %2879 = vmatprep.mubr.f32.mxu0 0.0
        %2880 = vmatmul.mubr.f32.gmra.mrb[0].mxu0 %v2777
        %v2881 = vpop.f32.mrb[0].mxu0
        %v2882 = vadd.f32 %v2745, %v2881
        %v2883 = vpop.f32.mrb[0].mxu0
        %v2884 = vadd.f32 %v2747, %v2883
        %2885 = vmatprep.mubr.f32.mxu0 0.0
        %2886 = vmatmul.mubr.f32.gmra.mrb[0].mxu0 %v2780
        %v2887 = vpop.f32.mrb[0].mxu0
        %v2888 = vadd.f32 %v2751, %v2887
        %v2889 = vpop.f32.mrb[0].mxu0
        %v2890 = vadd.f32 %v2753, %v2889
        %2891 = vmatprep.mubr.f32.mxu0 0.0
        %2892 = vmatmul.mubr.f32.gmra.mrb[0].mxu0 %v2783
        %v2893 = vpop.f32.mrb[0].mxu0
        %v2894 = vadd.f32 %v2757, %v2893
        %v2895 = vpop.f32.mrb[0].mxu0
        %v2896 = vadd.f32 %v2759, %v2895
        %2897 = vdwg.mxu0
        %s2898 = scalar_lea.vmem %s10, 512
        %v2899 = vld [vmem:[%s2898] sm:$0xff]
        %v2900 = vld [vmem:[%s2898 + $0x8] sm:$0xff]
        %v2901 = vld [vmem:[%s2898 + $0x10] sm:$0xff]
        %v2902 = vld [vmem:[%s2898 + $0x18] sm:$0xff]
        %v2903 = vld [vmem:[%s2898 + $0x20] sm:$0xff]
        %v2904 = vld [vmem:[%s2898 + $0x28] sm:$0xff]
        %v2905 = vld [vmem:[%s2898 + $0x30] sm:$0xff]
        %v2906 = vld [vmem:[%s2898 + $0x38] sm:$0xff]
        %v2907 = vld [vmem:[%s2898 + $0x40] sm:$0xff]
        %v2908 = vld [vmem:[%s2898 + $0x48] sm:$0xff]
        %v2909 = vld [vmem:[%s2898 + $0x50] sm:$0xff]
        %v2910 = vld [vmem:[%s2898 + $0x58] sm:$0xff]
        %v2911 = vld [vmem:[%s2898 + $0x60] sm:$0xff]
        %v2912 = vld [vmem:[%s2898 + $0x68] sm:$0xff]
        %v2913 = vld [vmem:[%s2898 + $0x70] sm:$0xff]
        %v2914 = vld [vmem:[%s2898 + $0x78] sm:$0xff]
        %v2915 = vld [vmem:[%s2898 + $0x80] sm:$0xff]
        %v2916 = vld [vmem:[%s2898 + $0x88] sm:$0xff]
        %v2917 = vld [vmem:[%s2898 + $0x90] sm:$0xff]
        %v2918 = vld [vmem:[%s2898 + $0x98] sm:$0xff]
        %v2919 = vld [vmem:[%s2898 + $0xa0] sm:$0xff]
        %v2920 = vld [vmem:[%s2898 + $0xa8] sm:$0xff]
        %v2921 = vld [vmem:[%s2898 + $0xb0] sm:$0xff]
        %v2922 = vld [vmem:[%s2898 + $0xb8] sm:$0xff]
        %v2923 = vld [vmem:[%s2898 + $0xc0] sm:$0xff]
        %v2924 = vld [vmem:[%s2898 + $0xc8] sm:$0xff]
        %v2925 = vld [vmem:[%s2898 + $0xd0] sm:$0xff]
        %v2926 = vld [vmem:[%s2898 + $0xd8] sm:$0xff]
        %v2927 = vld [vmem:[%s2898 + $0xe0] sm:$0xff]
        %v2928 = vld [vmem:[%s2898 + $0xe8] sm:$0xff]
        %v2929 = vld [vmem:[%s2898 + $0xf0] sm:$0xff]
        %v2930 = vld [vmem:[%s2898 + $0xf8] sm:$0xff]
        %2931 = vmatprep.subr.mxu0 %v2900
        %2932 = vmatpush1.msra.mxu0 %v2899
        %2933 = vmatprep.subr.mxu0 %v2902
        %2934 = vmatpush1.msra.mxu0 %v2901
        %2935 = vmatprep.subr.mxu0 %v2904
        %2936 = vmatpush1.msra.mxu0 %v2903
        %2937 = vmatprep.subr.mxu0 %v2906
        %2938 = vmatpush1.msra.mxu0 %v2905
        %2939 = vmatprep.subr.mxu0 %v2908
        %2940 = vmatpush1.msra.mxu0 %v2907
        %2941 = vmatprep.subr.mxu0 %v2910
        %2942 = vmatpush1.msra.mxu0 %v2909
        %2943 = vmatprep.subr.mxu0 %v2912
        %2944 = vmatpush1.msra.mxu0 %v2911
        %2945 = vmatprep.subr.mxu0 %v2914
        %2946 = vmatpush1.msra.mxu0 %v2913
        %2947 = vmatprep.subr.mxu0 %v2916
        %2948 = vmatpush1.msra.mxu0 %v2915
        %2949 = vmatprep.subr.mxu0 %v2918
        %2950 = vmatpush1.msra.mxu0 %v2917
        %2951 = vmatprep.subr.mxu0 %v2920
        %2952 = vmatpush1.msra.mxu0 %v2919
        %2953 = vmatprep.subr.mxu0 %v2922
        %2954 = vmatpush1.msra.mxu0 %v2921
        %2955 = vmatprep.subr.mxu0 %v2924
        %2956 = vmatpush1.msra.mxu0 %v2923
        %2957 = vmatprep.subr.mxu0 %v2926
        %2958 = vmatpush1.msra.mxu0 %v2925
        %2959 = vmatprep.subr.mxu0 %v2928
        %2960 = vmatpush1.msra.mxu0 %v2927
        %2961 = vmatprep.subr.mxu0 %v2930
        %2962 = vmatpush1.msra.mxu0 %v2929
        %2963 = vmatprep.subr.mxu0 0.0
        %2964 = vmatpush1.msra.mxu0 0.0
        %2965 = vmatprep.subr.mxu0 0.0
        %2966 = vmatpush1.msra.mxu0 0.0
        %2967 = vmatprep.subr.mxu0 0.0
        %2968 = vmatpush1.msra.mxu0 0.0
        %2969 = vmatprep.subr.mxu0 0.0
        %2970 = vmatpush1.msra.mxu0 0.0
        %2971 = vmatprep.subr.mxu0 0.0
        %2972 = vmatpush1.msra.mxu0 0.0
        %2973 = vmatprep.subr.mxu0 0.0
        %2974 = vmatpush1.msra.mxu0 0.0
        %2975 = vmatprep.subr.mxu0 0.0
        %2976 = vmatpush1.msra.mxu0 0.0
        %2977 = vmatprep.subr.mxu0 0.0
        %2978 = vmatpush1.msra.mxu0 0.0
        %2979 = vmatprep.subr.mxu0 0.0
        %2980 = vmatpush1.msra.mxu0 0.0
        %2981 = vmatprep.subr.mxu0 0.0
        %2982 = vmatpush1.msra.mxu0 0.0
        %2983 = vmatprep.subr.mxu0 0.0
        %2984 = vmatpush1.msra.mxu0 0.0
        %2985 = vmatprep.subr.mxu0 0.0
        %2986 = vmatpush1.msra.mxu0 0.0
        %2987 = vmatprep.subr.mxu0 0.0
        %2988 = vmatpush1.msra.mxu0 0.0
        %2989 = vmatprep.subr.mxu0 0.0
        %2990 = vmatpush1.msra.mxu0 0.0
        %2991 = vmatprep.subr.mxu0 0.0
        %2992 = vmatpush1.msra.mxu0 0.0
        %2993 = vmatprep.subr.mxu0 0.0
        %2994 = vmatpush1.msra.mxu0 0.0
        %2995 = vmatprep.mubr.f32.mxu0 0.0
        %2996 = vmatmul.mubr.f32.gmra.mrb[0].mxu0 %v2359
        %v2997 = vpop.f32.mrb[0].mxu0
        %v2998 = vadd.f32 0.0, %v2997
        %v2999 = vpop.f32.mrb[0].mxu0
        %v3000 = vadd.f32 0.0, %v2999
        %3001 = vmatprep.mubr.f32.mxu0 0.0
        %3002 = vmatmul.mubr.f32.gmra.mrb[0].mxu0 %v2360
        %v3003 = vpop.f32.mrb[0].mxu0
        %v3004 = vadd.f32 0.0, %v3003
        %v3005 = vpop.f32.mrb[0].mxu0
        %v3006 = vadd.f32 0.0, %v3005
        %3007 = vmatprep.mubr.f32.mxu0 0.0
        %3008 = vmatmul.mubr.f32.gmra.mrb[0].mxu0 %v2361
        %v3009 = vpop.f32.mrb[0].mxu0
        %v3010 = vadd.f32 0.0, %v3009
        %v3011 = vpop.f32.mrb[0].mxu0
        %v3012 = vadd.f32 0.0, %v3011
        %3013 = vmatprep.mubr.f32.mxu0 0.0
        %3014 = vmatmul.mubr.f32.gmra.mrb[0].mxu0 %v2362
        %v3015 = vpop.f32.mrb[0].mxu0
        %v3016 = vadd.f32 0.0, %v3015
        %v3017 = vpop.f32.mrb[0].mxu0
        %v3018 = vadd.f32 0.0, %v3017
        %3019 = vdwg.mxu0
        %s3020 = scalar_lea.vmem %s11, 128
        %v3021 = vld [vmem:[%s3020] sm:$0xff]
        %v3022 = vld [vmem:[%s3020 + $0x8] sm:$0xff]
        %v3023 = vld [vmem:[%s3020 + $0x10] sm:$0xff]
        %v3024 = vld [vmem:[%s3020 + $0x18] sm:$0xff]
        %v3025 = vld [vmem:[%s3020 + $0x20] sm:$0xff]
        %v3026 = vld [vmem:[%s3020 + $0x28] sm:$0xff]
        %v3027 = vld [vmem:[%s3020 + $0x30] sm:$0xff]
        %v3028 = vld [vmem:[%s3020 + $0x38] sm:$0xff]
        %v3030 = vsel %vm2623, %v3021, 0
        %v3033 = vsel %vm2623, %v3022, 0
        %v3036 = vsel %vm2623, %v3023, 0
        %v3039 = vsel %vm2623, %v3024, 0
        %v3042 = vsel %vm2623, %v3025, 0
        %v3045 = vsel %vm2623, %v3026, 0
        %v3048 = vsel %vm2623, %v3027, 0
        %v3051 = vsel %vm2623, %v3028, 0
        %3053 = vmatprep.subr.mxu0 %v3000
        %3054 = vmatpush1.msra.mxu0 %v2998
        %3055 = vmatprep.subr.mxu0 %v3006
        %3056 = vmatpush1.msra.mxu0 %v3004
        %3057 = vmatprep.subr.mxu0 %v3012
        %3058 = vmatpush1.msra.mxu0 %v3010
        %3059 = vmatprep.subr.mxu0 %v3018
        %3060 = vmatpush1.msra.mxu0 %v3016
        %3061 = vmatprep.subr.mxu0 0.0
        %3062 = vmatpush1.msra.mxu0 0.0
        %3063 = vmatprep.subr.mxu0 0.0
        %3064 = vmatpush1.msra.mxu0 0.0
        %3065 = vmatprep.subr.mxu0 0.0
        %3066 = vmatpush1.msra.mxu0 0.0
        %3067 = vmatprep.subr.mxu0 0.0
        %3068 = vmatpush1.msra.mxu0 0.0
        %3069 = vmatprep.subr.mxu0 0.0
        %3070 = vmatpush1.msra.mxu0 0.0
        %3071 = vmatprep.subr.mxu0 0.0
        %3072 = vmatpush1.msra.mxu0 0.0
        %3073 = vmatprep.subr.mxu0 0.0
        %3074 = vmatpush1.msra.mxu0 0.0
        %3075 = vmatprep.subr.mxu0 0.0
        %3076 = vmatpush1.msra.mxu0 0.0
        %3077 = vmatprep.subr.mxu0 0.0
        %3078 = vmatpush1.msra.mxu0 0.0
        %3079 = vmatprep.subr.mxu0 0.0
        %3080 = vmatpush1.msra.mxu0 0.0
        %3081 = vmatprep.subr.mxu0 0.0
        %3082 = vmatpush1.msra.mxu0 0.0
        %3083 = vmatprep.subr.mxu0 0.0
        %3084 = vmatpush1.msra.mxu0 0.0
        %3085 = vmatprep.subr.mxu0 0.0
        %3086 = vmatpush1.msra.mxu0 0.0
        %3087 = vmatprep.subr.mxu0 0.0
        %3088 = vmatpush1.msra.mxu0 0.0
        %3089 = vmatprep.subr.mxu0 0.0
        %3090 = vmatpush1.msra.mxu0 0.0
        %3091 = vmatprep.subr.mxu0 0.0
        %3092 = vmatpush1.msra.mxu0 0.0
        %3093 = vmatprep.subr.mxu0 0.0
        %3094 = vmatpush1.msra.mxu0 0.0
        %3095 = vmatprep.subr.mxu0 0.0
        %3096 = vmatpush1.msra.mxu0 0.0
        %3097 = vmatprep.subr.mxu0 0.0
        %3098 = vmatpush1.msra.mxu0 0.0
        %3099 = vmatprep.subr.mxu0 0.0
        %3100 = vmatpush1.msra.mxu0 0.0
        %3101 = vmatprep.subr.mxu0 0.0
        %3102 = vmatpush1.msra.mxu0 0.0
        %3103 = vmatprep.subr.mxu0 0.0
        %3104 = vmatpush1.msra.mxu0 0.0
        %3105 = vmatprep.subr.mxu0 0.0
        %3106 = vmatpush1.msra.mxu0 0.0
        %3107 = vmatprep.subr.mxu0 0.0
        %3108 = vmatpush1.msra.mxu0 0.0
        %3109 = vmatprep.subr.mxu0 0.0
        %3110 = vmatpush1.msra.mxu0 0.0
        %3111 = vmatprep.subr.mxu0 0.0
        %3112 = vmatpush1.msra.mxu0 0.0
        %3113 = vmatprep.subr.mxu0 0.0
        %3114 = vmatpush1.msra.mxu0 0.0
        %3115 = vmatprep.subr.mxu0 0.0
        %3116 = vmatpush1.msra.mxu0 0.0
        %3117 = vmatprep.mubr.f32.mxu0 0.0
        %3118 = vmatmul.mubr.f32.gmra.mrb[0].mxu0 %v3030
        %v3119 = vpop.f32.mrb[0].mxu0
        %v3120 = vadd.f32 0.0, %v3119
        %v3121 = vpop.f32.mrb[0].mxu0
        %v3122 = vadd.f32 0.0, %v3121
        %3123 = vmatprep.mubr.f32.mxu0 0.0
        %3124 = vmatmul.mubr.f32.gmra.mrb[0].mxu0 %v3033
        %v3125 = vpop.f32.mrb[0].mxu0
        %v3126 = vadd.f32 0.0, %v3125
        %v3127 = vpop.f32.mrb[0].mxu0
        %v3128 = vadd.f32 0.0, %v3127
        %3129 = vmatprep.mubr.f32.mxu0 0.0
        %3130 = vmatmul.mubr.f32.gmra.mrb[0].mxu0 %v3036
        %v3131 = vpop.f32.mrb[0].mxu0
        %v3132 = vadd.f32 0.0, %v3131
        %v3133 = vpop.f32.mrb[0].mxu0
        %v3134 = vadd.f32 0.0, %v3133
        %3135 = vmatprep.mubr.f32.mxu0 0.0
        %3136 = vmatmul.mubr.f32.gmra.mrb[0].mxu0 %v3039
        %v3137 = vpop.f32.mrb[0].mxu0
        %v3138 = vadd.f32 0.0, %v3137
        %v3139 = vpop.f32.mrb[0].mxu0
        %v3140 = vadd.f32 0.0, %v3139
        %3141 = vmatprep.mubr.f32.mxu0 0.0
        %3142 = vmatmul.mubr.f32.gmra.mrb[0].mxu0 %v3042
        %v3143 = vpop.f32.mrb[0].mxu0
        %v3144 = vadd.f32 0.0, %v3143
        %v3145 = vpop.f32.mrb[0].mxu0
        %v3146 = vadd.f32 0.0, %v3145
        %3147 = vmatprep.mubr.f32.mxu0 0.0
        %3148 = vmatmul.mubr.f32.gmra.mrb[0].mxu0 %v3045
        %v3149 = vpop.f32.mrb[0].mxu0
        %v3150 = vadd.f32 0.0, %v3149
        %v3151 = vpop.f32.mrb[0].mxu0
        %v3152 = vadd.f32 0.0, %v3151
        %3153 = vmatprep.mubr.f32.mxu0 0.0
        %3154 = vmatmul.mubr.f32.gmra.mrb[0].mxu0 %v3048
        %v3155 = vpop.f32.mrb[0].mxu0
        %v3156 = vadd.f32 0.0, %v3155
        %v3157 = vpop.f32.mrb[0].mxu0
        %v3158 = vadd.f32 0.0, %v3157
        %3159 = vmatprep.mubr.f32.mxu0 0.0
        %3160 = vmatmul.mubr.f32.gmra.mrb[0].mxu0 %v3051
        %v3161 = vpop.f32.mrb[0].mxu0
        %v3162 = vadd.f32 0.0, %v3161
        %v3163 = vpop.f32.mrb[0].mxu0
        %v3164 = vadd.f32 0.0, %v3163
        %3165 = vdwg.mxu0
        %v3166 = vadd.f32 %v2852, %v3120
        %v3167 = vadd.f32 %v2854, %v3122
        %v3168 = vadd.f32 %v2858, %v3126
        %v3169 = vadd.f32 %v2860, %v3128
        %v3170 = vadd.f32 %v2864, %v3132
        %v3171 = vadd.f32 %v2866, %v3134
        %v3172 = vadd.f32 %v2870, %v3138
        %v3173 = vadd.f32 %v2872, %v3140
        %v3174 = vadd.f32 %v2876, %v3144
        %v3175 = vadd.f32 %v2878, %v3146
        %v3176 = vadd.f32 %v2882, %v3150
        %v3177 = vadd.f32 %v2884, %v3152
        %v3178 = vadd.f32 %v2888, %v3156
        %v3179 = vadd.f32 %v2890, %v3158
        %v3180 = vadd.f32 %v2894, %v3162
        %v3181 = vadd.f32 %v2896, %v3164
        %v3182 = vld [vmem:[%s12] sm:$0x3]
        %v3184 = vlaneseq
        %v3185 = vshrl.u32 %v3184, 7
        %v3186 = vsub.s32 0, %v3185
        %v3187 = vrot.slane %v3182, %v3186
        %v3188 = vlaneseq
        %v3189 = vshrl.u32 %v3188, 7
        %v3190 = vsub.s32 1, %v3189
        %v3191 = vrot.slane %v3182, %v3190
        %v3194 = vadd.f32 %v3166, %v3187
        %v3195 = vadd.f32 %v3167, %v3191
        %v3196 = vadd.f32 %v3168, %v3187
        %v3197 = vadd.f32 %v3169, %v3191
        %v3198 = vadd.f32 %v3170, %v3187
        %v3199 = vadd.f32 %v3171, %v3191
        %v3200 = vadd.f32 %v3172, %v3187
        %v3201 = vadd.f32 %v3173, %v3191
        %v3202 = vadd.f32 %v3174, %v3187
        %v3203 = vadd.f32 %v3175, %v3191
        %v3204 = vadd.f32 %v3176, %v3187
        %v3205 = vadd.f32 %v3177, %v3191
        %v3206 = vadd.f32 %v3178, %v3187
        %v3207 = vadd.f32 %v3179, %v3191
        %v3208 = vadd.f32 %v3180, %v3187
        %v3209 = vadd.f32 %v3181, %v3191
        %v3210 = vsub.f32 0.0, %v3194
        %v3211 = vsub.f32 0.0, %v3195
        %v3212 = vsub.f32 0.0, %v3196
        %v3213 = vsub.f32 0.0, %v3197
        %v3214 = vsub.f32 0.0, %v3198
        %v3215 = vsub.f32 0.0, %v3199
        %v3216 = vsub.f32 0.0, %v3200
        %v3217 = vsub.f32 0.0, %v3201
        %v3218 = vsub.f32 0.0, %v3202
        %v3219 = vsub.f32 0.0, %v3203
        %v3220 = vsub.f32 0.0, %v3204
        %v3221 = vsub.f32 0.0, %v3205
        %v3222 = vsub.f32 0.0, %v3206
        %v3223 = vsub.f32 0.0, %v3207
        %v3224 = vsub.f32 0.0, %v3208
        %v3225 = vsub.f32 0.0, %v3209
        %v3226 = vmul.f32 %v3210, 1.442695
        %v3227 = vpow.pop %v3226
        %v3228 = vmul.f32 %v3211, 1.442695
        %v3229 = vpow.pop %v3228
        %v3230 = vmul.f32 %v3212, 1.442695
        %v3231 = vpow.pop %v3230
        %v3232 = vmul.f32 %v3213, 1.442695
        %v3233 = vpow.pop %v3232
        %v3234 = vmul.f32 %v3214, 1.442695
        %v3235 = vpow.pop %v3234
        %v3236 = vmul.f32 %v3215, 1.442695
        %v3237 = vpow.pop %v3236
        %v3238 = vmul.f32 %v3216, 1.442695
        %v3239 = vpow.pop %v3238
        %v3240 = vmul.f32 %v3217, 1.442695
        %v3241 = vpow.pop %v3240
        %v3242 = vmul.f32 %v3218, 1.442695
        %v3243 = vpow.pop %v3242
        %v3244 = vmul.f32 %v3219, 1.442695
        %v3245 = vpow.pop %v3244
        %v3246 = vmul.f32 %v3220, 1.442695
        %v3247 = vpow.pop %v3246
        %v3248 = vmul.f32 %v3221, 1.442695
        %v3249 = vpow.pop %v3248
        %v3250 = vmul.f32 %v3222, 1.442695
        %v3251 = vpow.pop %v3250
        %v3252 = vmul.f32 %v3223, 1.442695
        %v3253 = vpow.pop %v3252
        %v3254 = vmul.f32 %v3224, 1.442695
        %v3255 = vpow.pop %v3254
        %v3256 = vmul.f32 %v3225, 1.442695
        %v3257 = vpow.pop %v3256
        %v3258 = vadd.f32 %v3227, 1.0
        %v3259 = vadd.f32 %v3229, 1.0
        %v3260 = vadd.f32 %v3231, 1.0
        %v3261 = vadd.f32 %v3233, 1.0
        %v3262 = vadd.f32 %v3235, 1.0
        %v3263 = vadd.f32 %v3237, 1.0
        %v3264 = vadd.f32 %v3239, 1.0
        %v3265 = vadd.f32 %v3241, 1.0
        %v3266 = vadd.f32 %v3243, 1.0
        %v3267 = vadd.f32 %v3245, 1.0
        %v3268 = vadd.f32 %v3247, 1.0
        %v3269 = vadd.f32 %v3249, 1.0
        %v3270 = vadd.f32 %v3251, 1.0
        %v3271 = vadd.f32 %v3253, 1.0
        %v3272 = vadd.f32 %v3255, 1.0
        %v3273 = vadd.f32 %v3257, 1.0
        %v3274 = vrcp.pop %v3258
        %v3275 = vrcp.pop %v3259
        %v3276 = vrcp.pop %v3260
        %v3277 = vrcp.pop %v3261
        %v3278 = vrcp.pop %v3262
        %v3279 = vrcp.pop %v3263
        %v3280 = vrcp.pop %v3264
        %v3281 = vrcp.pop %v3265
        %v3282 = vrcp.pop %v3266
        %v3283 = vrcp.pop %v3267
        %v3284 = vrcp.pop %v3268
        %v3285 = vrcp.pop %v3269
        %v3286 = vrcp.pop %v3270
        %v3287 = vrcp.pop %v3271
        %v3288 = vrcp.pop %v3272
        %v3289 = vrcp.pop %v3273
        %3290 = vst [vmem:[%s431] sm:$0xff] %v3274
        %3291 = vst.msk [vmem:[%s431 + $0x8] sm:$0xff] %vm445, %v3275
        %3292 = vst [vmem:[%s431 + $0x10] sm:$0xff] %v3276
        %3293 = vst.msk [vmem:[%s431 + $0x18] sm:$0xff] %vm445, %v3277
        %3294 = vst [vmem:[%s431 + $0x20] sm:$0xff] %v3278
        %3295 = vst.msk [vmem:[%s431 + $0x28] sm:$0xff] %vm445, %v3279
        %3296 = vst [vmem:[%s431 + $0x30] sm:$0xff] %v3280
        %3297 = vst.msk [vmem:[%s431 + $0x38] sm:$0xff] %vm445, %v3281
        %3298 = vst [vmem:[%s431 + $0x40] sm:$0xff] %v3282
        %3299 = vst.msk [vmem:[%s431 + $0x48] sm:$0xff] %vm445, %v3283
        %3300 = vst [vmem:[%s431 + $0x50] sm:$0xff] %v3284
        %3301 = vst.msk [vmem:[%s431 + $0x58] sm:$0xff] %vm445, %v3285
        %3302 = vst [vmem:[%s431 + $0x60] sm:$0xff] %v3286
        %3303 = vst.msk [vmem:[%s431 + $0x68] sm:$0xff] %vm445, %v3287
        %3304 = vst [vmem:[%s431 + $0x70] sm:$0xff] %v3288
        %3305 = vst.msk [vmem:[%s431 + $0x78] sm:$0xff] %vm445, %v3289
        %s3306 = sand.u32 %s313, 1
        %s3307 = scalar_lea.sflag [#allocation3], %s3306
        %s3308 = sand.u32 %s313, 1
        %s3309 = smul.addr %s3308, 128
        %s3310 = scalar_lea.vmem [#allocation2], %s3309
        // Predicated region
        $region73: #{tpu_custom_call.1} parent=71 // pred_check
          %p3311 = pneg %p323
        $region74: #{tpu_custom_call.1} parent=71 // pred_check_branch
          %3313 = sbr.rel (%p3311) target = $region76
        $region75: #{tpu_custom_call.1} parent=71 // pred_region
          %s3315 = ssub.s32 2048, 2048
          %3316 = vsyncadd %s3307, %s3315
          %s3317 = smul.addr %s27, 16
          %s3318 = smul.addr %s3317, 128
          %s3319 = scalar_lea.hbm %s13, %s3318
          %s3320 = sshll.u32 %s3310, 4
          %s3321 = int_to_ptr.vmem [resolvable:$true] %s3320
          %3326 = dma.vmem_to_hbm [thread:$0]  %s3321, 2048, %s3319, %s3307, 256, 256, 16
        $region76: #{tpu_custom_call.1} parent=71 // pred_fallthru
          _
      $region72: #{tpu_custom_call.1} parent=5 // pred_fallthru
        _
      %p3327 = scmp.le.s32.totalorder 2, %s22
      // Predicated region
      $region77: #{tpu_custom_call.1} parent=5 // pred_check
        %p3328 = pneg %p3327
      $region78: #{tpu_custom_call.1} parent=5 // pred_check_branch
        %3330 = sbr.rel (%p3328) target = $region80
      $region79: #{tpu_custom_call.1} parent=5 // pred_region
        %s3331 = ssub.s32 %s22, 2
        // Predicated region
        $region81: #{tpu_custom_call.1} parent=79 // pred_check
          %p3332 = pneg %p329
        $region82: #{tpu_custom_call.1} parent=79 // pred_check_branch
          %3334 = sbr.rel (%p3332) target = $region84
        $region83: #{tpu_custom_call.1} parent=79 // pred_region
          %s3335 = sand.u32 %s314, 1
          %s3336 = scalar_lea.sflag [#allocation3], %s3335
          %s3337 = sand.u32 %s314, 1
          %s3338 = smul.addr %s3337, 128
          %s3339 = scalar_lea.vmem [#allocation2], %s3338
          %3340 = dma.done %s3336, 2048
        $region84: #{tpu_custom_call.1} parent=79 // pred_fallthru
          _
      $region80: #{tpu_custom_call.1} parent=5 // pred_fallthru
        _
    $region6: #{tpu_custom_call.1} parent=1 // loop_footer
      %s26 = sadd.s32 1, %s22
    $region7: #{tpu_custom_call.1} parent=1 // loop_footer_branch
      %21 = sbr.rel target = $region3
    $region8: #{tpu_custom_call.1} parent=1 // loop_exit
      _
    %3341 = vsyncpa [#allocation3], 1
    %s3342 = scalar_lea.sflag [#allocation3], 1
    %3343 = vsyncpa %s3342, 1

</llo_original>
